<compile_context>
chip_gen: v5e
topology: v5e:2x2
jax: 0.10.0
libtpu: 0.0.40
codegen_flags: <defaults>
</compile_context>

<pallas_src>
import functools

import jax
import jax.numpy as jnp
from jax.experimental import pallas as pl
from jax.experimental.pallas import tpu as pltpu


def char_rnn_kernel(x_ref, hid_ref,
                    wih0_ref, bih0_ref, whh0_ref, bhh0_ref,
                    wih1_ref, bih1_ref, whh1_ref, bhh1_ref,
                    wl_ref, bl_ref,
                    y_ref, hn_ref, hout_s,
                    *, hidden_size, seq_len, batch):
    H, T, B = hidden_size, seq_len, batch
    f32 = jnp.float32
    bf16 = jnp.bfloat16

    # ---- Hoisted layer-0 input gates: one (T*B, H) @ (H, 3H) MXU matmul. ----
    # b_ih0 folded in once for all timesteps. Sliced per step with static offsets
    # (loop is fully unrolled), no VMEM scratch round-trip.
    x_all = x_ref[...].reshape(T * B, H).astype(bf16)
    gi0_all = jnp.dot(x_all, wih0_ref[...], preferred_element_type=f32) + bih0_ref[...]

    # ---- Hoisted bias broadcasts (JAX does not CSE broadcast_in_dim). ----
    bhh0 = jnp.broadcast_to(bhh0_ref[...], (B, 3 * H))
    bih1 = jnp.broadcast_to(bih1_ref[...], (B, 3 * H))
    bhh1 = jnp.broadcast_to(bhh1_ref[...], (B, 3 * H))

    # Weights loaded once (bf16, VMEM resident).
    whh0 = whh0_ref[...]                                   # (H, 3H)
    wih1 = wih1_ref[...]                                   # (H, 3H)
    whh1 = whh1_ref[...]                                   # (H, 3H)

    h0 = hid_ref[0]                                        # (B, H) f32
    h1 = hid_ref[1]                                        # (B, H) f32

    # Recurrence, fully unrolled (T static): per step only two dependent MXU
    # pushes remain on the serial chain (h0@W_hh0 then h0_new@W_ih1); gh1 is
    # issued at the top of the step, off the chain.
    for t in range(T):
        # ---- layer-1 hidden gates: depends only on previous step's h1. ----
        gh1 = jnp.dot(h1.astype(bf16), whh1, preferred_element_type=f32) + bhh1

        gi0_t = gi0_all[t * B:(t + 1) * B]                 # (B, 3H), b_ih0 folded

        # ---- layer 0: only the h-dependent matmul stays on the chain. ----
        gh0 = jnp.dot(h0.astype(bf16), whh0, preferred_element_type=f32) + bhh0
        r0 = jax.nn.sigmoid(gi0_t[:, :H] + gh0[:, :H])                 # feeds tanh
        n0 = jnp.tanh(gi0_t[:, 2 * H:] + r0 * gh0[:, 2 * H:])
        z0 = jax.nn.sigmoid(gi0_t[:, H:2 * H] + gh0[:, H:2 * H])       # only feeds blend
        h0 = n0 + z0 * (h0 - n0)

        # ---- layer 1: on-chain matmul is the h0-dependent input-gate one. ----
        gi1 = jnp.dot(h0.astype(bf16), wih1, preferred_element_type=f32) + bih1
        r1 = jax.nn.sigmoid(gi1[:, :H] + gh1[:, :H])
        n1 = jnp.tanh(gi1[:, 2 * H:] + r1 * gh1[:, 2 * H:])
        z1 = jax.nn.sigmoid(gi1[:, H:2 * H] + gh1[:, H:2 * H])
        h1 = n1 + z1 * (h1 - n1)

        # Time-major full-tile staging store (bf16).
        hout_s[t] = h1.astype(bf16)

    hn_ref[0] = h0
    hn_ref[1] = h1

    # ---- Epilogue: reorder (T,B,H)->(B,T,H) ONCE, then one lane-dense matmul. ----
    # Row order after reshape is b*T + t, matching batch_first=True .view(-1, H).
    h_all = jnp.transpose(hout_s[...], (1, 0, 2)).reshape(B * T, H)    # bf16
    y_ref[...] = jnp.dot(h_all, wl_ref[...], preferred_element_type=f32) + bl_ref[...]


def pack_params(p):
    """Pre-pack PyTorch-layout params for the kernel (bf16 weights, f32 biases)."""
    bf16 = jnp.bfloat16
    f32 = jnp.float32
    return {
        "embedding": p["embedding"].astype(f32),
        "w_ih0": p["w_ih"][0].astype(bf16),
        "b_ih0": p["b_ih"][0].astype(f32),
        "w_hh0": p["w_hh"][0].astype(bf16),
        "b_hh0": p["b_hh"][0].astype(f32),
        "w_ih1": p["w_ih"][1].astype(bf16),
        "b_ih1": p["b_ih"][1].astype(f32),
        "w_hh1": p["w_hh"][1].astype(bf16),
        "b_hh1": p["b_hh"][1].astype(f32),
        "w_lin": p["w_lin"].astype(bf16),
        "b_lin": p["b_lin"].astype(f32),
    }


def char_rnn_forward(packed, input_ids, hidden):
    """input_ids: (B, T) int32, hidden: (2, B, H) f32 -> (logits (B*T, O), h_n (2, B, H))."""
    B, T = input_ids.shape
    H = packed["w_hh0"].shape[0]
    O = packed["w_lin"].shape[1]

    # Embedding gather directly in time-major order (no wrapper transposes left).
    x = jnp.take(packed["embedding"], input_ids.T, axis=0)            # (T, B, H) f32

    kernel = functools.partial(char_rnn_kernel, hidden_size=H, seq_len=T, batch=B)
    vmem = pl.BlockSpec(memory_space=pltpu.MemorySpace.VMEM)

    # Gridless, fully VMEM-resident (~0.7 MB with bf16 weights).
    # TODO(synk): for v7x with B >= 16 independent sequences, add a leading batch
    # grid axis with dimension_semantics=("parallel",) to use both TensorCores;
    # if output_size grows to a real vocab, tile the deferred projection over O.
    logits, h_n = pl.pallas_call(
        kernel,
        out_shape=(jax.ShapeDtypeStruct((B * T, O), jnp.float32),
                   jax.ShapeDtypeStruct((2, B, H), jnp.float32)),
        in_specs=[vmem] * 12,
        out_specs=(vmem, vmem),
        scratch_shapes=[pltpu.VMEM((T, B, H), jnp.bfloat16)],          # time-major staged h1
    )(x, hidden,
      packed["w_ih0"], packed["b_ih0"], packed["w_hh0"], packed["b_hh0"],
      packed["w_ih1"], packed["b_ih1"], packed["w_hh1"], packed["b_hh1"],
      packed["w_lin"], packed["b_lin"])

    return logits, h_n


def init_params(key, input_size, hidden_size, output_size, n_layers=2):
    H, O, V = hidden_size, output_size, input_size
    k = jax.random.split(key, 8)
    s = 1.0 / jnp.sqrt(H)
    return {
        # nn.Embedding: N(0, 1)
        "embedding": jax.random.normal(k[0], (V, H), jnp.float32),
        # nn.GRU weights, stored transposed so the kernel does x @ W: (layer, in, 3H)
        "w_ih": jax.random.uniform(k[1], (n_layers, H, 3 * H), jnp.float32, -s, s),
        "w_hh": jax.random.uniform(k[2], (n_layers, H, 3 * H), jnp.float32, -s, s),
        "b_ih": jax.random.uniform(k[3], (n_layers, 1, 3 * H), jnp.float32, -s, s),
        "b_hh": jax.random.uniform(k[4], (n_layers, 1, 3 * H), jnp.float32, -s, s),
        # nn.Linear (transposed): (H, O), bias (1, O)
        "w_lin": jax.random.uniform(k[5], (H, O), jnp.float32, -s, s),
        "b_lin": jax.random.uniform(k[6], (1, O), jnp.float32, -s, s),
    }


def _reference_forward(params, input_ids, hidden):
    """Pure-JAX reference mirroring PyTorch GRU/Linear semantics (gate order r,z,n;
    batch_first=True row order b*T + t). Matmul operands cast to bf16 with f32
    accumulation, matching the kernel's MXU precision policy; gate math is f32.
    """
    bf16 = jnp.bfloat16
    B, T = input_ids.shape
    H = params["w_hh"].shape[-2]

    def cell(x, h, w_ih, w_hh, b_ih, b_hh):
        gi = jnp.dot(x.astype(bf16), w_ih.astype(bf16),
                     preferred_element_type=jnp.float32) + b_ih
        gh = jnp.dot(h.astype(bf16), w_hh.astype(bf16),
                     preferred_element_type=jnp.float32) + b_hh
        r = jax.nn.sigmoid(gi[:, :H] + gh[:, :H])
        z = jax.nn.sigmoid(gi[:, H:2 * H] + gh[:, H:2 * H])
        n = jnp.tanh(gi[:, 2 * H:] + r * gh[:, 2 * H:])
        return (1.0 - z) * n + z * h

    emb = jnp.take(params["embedding"], input_ids, axis=0)            # (B, T, H)
    h0, h1 = hidden[0], hidden[1]
    outs = []
    for t in range(T):
        x_t = emb[:, t, :]
        h0 = cell(x_t, h0, params["w_ih"][0], params["w_hh"][0],
                  params["b_ih"][0], params["b_hh"][0])
        h1 = cell(h0, h1, params["w_ih"][1], params["w_hh"][1],
                  params["b_ih"][1], params["b_hh"][1])
        outs.append(h1)
    gru_out = jnp.stack(outs, axis=1)                                 # (B, T, H)
    logits = jnp.dot(gru_out.reshape(B * T, H).astype(bf16),
                     params["w_lin"].astype(bf16),
                     preferred_element_type=jnp.float32) + params["b_lin"]
    return logits, jnp.stack([h0, h1], axis=0)


if __name__ == "__main__":
    # Small shapes consistent with the module's forward.
    input_size = 64      # vocab
    hidden_size = 128    # H (lane-aligned)
    output_size = 128    # O (lane-aligned)
    batch = 8
    seq_len = 8
    n_layers = 2

    key = jax.random.PRNGKey(0)
    pkey, ikey = jax.random.split(key)
    params = init_params(pkey, input_size, hidden_size, output_size, n_layers)
    packed = pack_params(params)

    input_ids = jax.random.randint(ikey, (batch, seq_len), 0, input_size, jnp.int32)
    hidden0 = jnp.zeros((n_layers, batch, hidden_size), jnp.float32)  # init_hidden

    fwd = jax.jit(char_rnn_forward)
    logits, h_n = jax.block_until_ready(fwd(packed, input_ids, hidden0))

    assert logits.shape == (batch * seq_len, output_size)
    assert h_n.shape == (n_layers, batch, hidden_size)

    ref_logits, ref_hn = _reference_forward(params, input_ids, hidden0)
    # bf16 matmul operands on both sides -> differences are tiny; 1e-2 gives margin.
    assert jnp.allclose(logits, ref_logits, rtol=1e-2, atol=1e-2), \
        float(jnp.max(jnp.abs(logits - ref_logits)))
    assert jnp.allclose(h_n, ref_hn, rtol=1e-2, atol=1e-2), \
        float(jnp.max(jnp.abs(h_n - ref_hn)))

    print("KERNEL_OK")
</pallas_src>

<mosaic_0001>
module attributes {stable_mosaic.version = 11 : i64} {
  func.func @char_rnn_kernel(%arg0: memref<8x8x128xf32, #tpu.memory_space<vmem>>, %arg1: memref<2x8x128xf32, #tpu.memory_space<vmem>>, %arg2: memref<128x384xbf16, #tpu.memory_space<vmem>>, %arg3: memref<1x384xf32, #tpu.memory_space<vmem>>, %arg4: memref<128x384xbf16, #tpu.memory_space<vmem>>, %arg5: memref<1x384xf32, #tpu.memory_space<vmem>>, %arg6: memref<128x384xbf16, #tpu.memory_space<vmem>>, %arg7: memref<1x384xf32, #tpu.memory_space<vmem>>, %arg8: memref<128x384xbf16, #tpu.memory_space<vmem>>, %arg9: memref<1x384xf32, #tpu.memory_space<vmem>>, %arg10: memref<128x128xbf16, #tpu.memory_space<vmem>>, %arg11: memref<1x128xf32, #tpu.memory_space<vmem>>, %arg12: memref<64x128xf32, #tpu.memory_space<vmem>>, %arg13: memref<2x8x128xf32, #tpu.memory_space<vmem>>, %arg14: memref<8x8x128xbf16, #tpu.memory_space<vmem>>) attributes {dimension_semantics = [], scalar_prefetch = 0 : i64, scratch_operands = 1 : i64, tpu.core_type = #tpu.core_type<tc>} {
    %c0 = arith.constant 0 : index
    %c0_0 = arith.constant 0 : index
    %c0_1 = arith.constant 0 : index
    %0 = vector.load %arg0[%c0, %c0_0, %c0_1] : memref<8x8x128xf32, #tpu.memory_space<vmem>>, vector<8x8x128xf32>
    %1 = vector.shape_cast %0 : vector<8x8x128xf32> to vector<64x128xf32>
    %2 = arith.truncf %1 : vector<64x128xf32> to vector<64x128xbf16>
    %c0_2 = arith.constant 0 : index
    %c0_3 = arith.constant 0 : index
    %3 = vector.load %arg2[%c0_2, %c0_3] : memref<128x384xbf16, #tpu.memory_space<vmem>>, vector<128x384xbf16>
    %cst = arith.constant dense<0.000000e+00> : vector<64x384xf32>
    %4 = tpu.matmul %2, %3, %cst {dimension_numbers = #tpu.dot_dimension_numbers<[1], [0], [0], [1], [0, 0, 1, 1], [], []>} : vector<64x128xbf16>, vector<128x384xbf16>, vector<64x384xf32> -> vector<64x384xf32>
    %c0_4 = arith.constant 0 : index
    %c0_5 = arith.constant 0 : index
    %5 = vector.load %arg3[%c0_4, %c0_5] : memref<1x384xf32, #tpu.memory_space<vmem>>, vector<1x384xf32>
    %6 = vector.broadcast %5 : vector<1x384xf32> to vector<64x384xf32>
    %7 = arith.addf %4, %6 : vector<64x384xf32>
    %c0_6 = arith.constant 0 : index
    %c0_7 = arith.constant 0 : index
    %8 = vector.load %arg5[%c0_6, %c0_7] : memref<1x384xf32, #tpu.memory_space<vmem>>, vector<1x384xf32>
    %9 = vector.shape_cast %8 : vector<1x384xf32> to vector<1x384xf32>
    %10 = vector.broadcast %9 : vector<1x384xf32> to vector<8x384xf32>
    %c0_8 = arith.constant 0 : index
    %c0_9 = arith.constant 0 : index
    %11 = vector.load %arg7[%c0_8, %c0_9] : memref<1x384xf32, #tpu.memory_space<vmem>>, vector<1x384xf32>
    %12 = vector.shape_cast %11 : vector<1x384xf32> to vector<1x384xf32>
    %13 = vector.broadcast %12 : vector<1x384xf32> to vector<8x384xf32>
    %c0_10 = arith.constant 0 : index
    %c0_11 = arith.constant 0 : index
    %14 = vector.load %arg9[%c0_10, %c0_11] : memref<1x384xf32, #tpu.memory_space<vmem>>, vector<1x384xf32>
    %15 = vector.shape_cast %14 : vector<1x384xf32> to vector<1x384xf32>
    %16 = vector.broadcast %15 : vector<1x384xf32> to vector<8x384xf32>
    %c0_12 = arith.constant 0 : index
    %c0_13 = arith.constant 0 : index
    %17 = vector.load %arg4[%c0_12, %c0_13] : memref<128x384xbf16, #tpu.memory_space<vmem>>, vector<128x384xbf16>
    %c0_14 = arith.constant 0 : index
    %c0_15 = arith.constant 0 : index
    %18 = vector.load %arg6[%c0_14, %c0_15] : memref<128x384xbf16, #tpu.memory_space<vmem>>, vector<128x384xbf16>
    %c0_16 = arith.constant 0 : index
    %c0_17 = arith.constant 0 : index
    %19 = vector.load %arg8[%c0_16, %c0_17] : memref<128x384xbf16, #tpu.memory_space<vmem>>, vector<128x384xbf16>
    %c0_18 = arith.constant 0 : index
    %c0_19 = arith.constant 0 : index
    %c0_20 = arith.constant 0 : index
    %20 = vector.load %arg1[%c0_18, %c0_19, %c0_20] : memref<2x8x128xf32, #tpu.memory_space<vmem>>, vector<1x8x128xf32>
    %21 = vector.shape_cast %20 : vector<1x8x128xf32> to vector<8x128xf32>
    %c1 = arith.constant 1 : index
    %c0_21 = arith.constant 0 : index
    %c0_22 = arith.constant 0 : index
    %22 = vector.load %arg1[%c1, %c0_21, %c0_22] : memref<2x8x128xf32, #tpu.memory_space<vmem>>, vector<1x8x128xf32>
    %23 = vector.shape_cast %22 : vector<1x8x128xf32> to vector<8x128xf32>
    %24 = arith.truncf %23 : vector<8x128xf32> to vector<8x128xbf16>
    %cst_23 = arith.constant dense<0.000000e+00> : vector<8x384xf32>
    %25 = tpu.matmul %24, %19, %cst_23 {dimension_numbers = #tpu.dot_dimension_numbers<[1], [0], [0], [1], [0, 0, 1, 1], [], []>} : vector<8x128xbf16>, vector<128x384xbf16>, vector<8x384xf32> -> vector<8x384xf32>
    %26 = arith.addf %25, %16 : vector<8x384xf32>
    %27 = vector.extract_strided_slice %7 {offsets = [0, 0], sizes = [8, 384], strides = [1, 1]} : vector<64x384xf32> to vector<8x384xf32>
    %28 = arith.truncf %21 : vector<8x128xf32> to vector<8x128xbf16>
    %cst_24 = arith.constant dense<0.000000e+00> : vector<8x384xf32>
    %29 = tpu.matmul %28, %17, %cst_24 {dimension_numbers = #tpu.dot_dimension_numbers<[1], [0], [0], [1], [0, 0, 1, 1], [], []>} : vector<8x128xbf16>, vector<128x384xbf16>, vector<8x384xf32> -> vector<8x384xf32>
    %30 = arith.addf %29, %10 : vector<8x384xf32>
    %31 = vector.extract_strided_slice %27 {offsets = [0, 0], sizes = [8, 128], strides = [1, 1]} : vector<8x384xf32> to vector<8x128xf32>
    %32 = vector.extract_strided_slice %30 {offsets = [0, 0], sizes = [8, 128], strides = [1, 1]} : vector<8x384xf32> to vector<8x128xf32>
    %33 = arith.addf %31, %32 : vector<8x128xf32>
    %34 = arith.negf %33 : vector<8x128xf32>
    %35 = math.exp %34 : vector<8x128xf32>
    %cst_25 = arith.constant 1.000000e+00 : f32
    %36 = vector.broadcast %cst_25 : f32 to vector<8x128xf32>
    %37 = arith.addf %36, %35 : vector<8x128xf32>
    %38 = arith.divf %36, %37 : vector<8x128xf32>
    %39 = vector.extract_strided_slice %27 {offsets = [0, 256], sizes = [8, 128], strides = [1, 1]} : vector<8x384xf32> to vector<8x128xf32>
    %40 = vector.extract_strided_slice %30 {offsets = [0, 256], sizes = [8, 128], strides = [1, 1]} : vector<8x384xf32> to vector<8x128xf32>
    %41 = arith.mulf %38, %40 : vector<8x128xf32>
    %42 = arith.addf %39, %41 : vector<8x128xf32>
    %43 = math.tanh %42 : vector<8x128xf32>
    %44 = vector.extract_strided_slice %27 {offsets = [0, 128], sizes = [8, 128], strides = [1, 1]} : vector<8x384xf32> to vector<8x128xf32>
    %45 = vector.extract_strided_slice %30 {offsets = [0, 128], sizes = [8, 128], strides = [1, 1]} : vector<8x384xf32> to vector<8x128xf32>
    %46 = arith.addf %44, %45 : vector<8x128xf32>
    %47 = arith.negf %46 : vector<8x128xf32>
    %48 = math.exp %47 : vector<8x128xf32>
    %cst_26 = arith.constant 1.000000e+00 : f32
    %49 = vector.broadcast %cst_26 : f32 to vector<8x128xf32>
    %50 = arith.addf %49, %48 : vector<8x128xf32>
    %51 = arith.divf %49, %50 : vector<8x128xf32>
    %52 = arith.subf %21, %43 : vector<8x128xf32>
    %53 = arith.mulf %51, %52 : vector<8x128xf32>
    %54 = arith.addf %43, %53 : vector<8x128xf32>
    %55 = arith.truncf %54 : vector<8x128xf32> to vector<8x128xbf16>
    %cst_27 = arith.constant dense<0.000000e+00> : vector<8x384xf32>
    %56 = tpu.matmul %55, %18, %cst_27 {dimension_numbers = #tpu.dot_dimension_numbers<[1], [0], [0], [1], [0, 0, 1, 1], [], []>} : vector<8x128xbf16>, vector<128x384xbf16>, vector<8x384xf32> -> vector<8x384xf32>
    %57 = arith.addf %56, %13 : vector<8x384xf32>
    %58 = vector.extract_strided_slice %57 {offsets = [0, 0], sizes = [8, 128], strides = [1, 1]} : vector<8x384xf32> to vector<8x128xf32>
    %59 = vector.extract_strided_slice %26 {offsets = [0, 0], sizes = [8, 128], strides = [1, 1]} : vector<8x384xf32> to vector<8x128xf32>
    %60 = arith.addf %58, %59 : vector<8x128xf32>
    %61 = arith.negf %60 : vector<8x128xf32>
    %62 = math.exp %61 : vector<8x128xf32>
    %cst_28 = arith.constant 1.000000e+00 : f32
    %63 = vector.broadcast %cst_28 : f32 to vector<8x128xf32>
    %64 = arith.addf %63, %62 : vector<8x128xf32>
    %65 = arith.divf %63, %64 : vector<8x128xf32>
    %66 = vector.extract_strided_slice %57 {offsets = [0, 256], sizes = [8, 128], strides = [1, 1]} : vector<8x384xf32> to vector<8x128xf32>
    %67 = vector.extract_strided_slice %26 {offsets = [0, 256], sizes = [8, 128], strides = [1, 1]} : vector<8x384xf32> to vector<8x128xf32>
    %68 = arith.mulf %65, %67 : vector<8x128xf32>
    %69 = arith.addf %66, %68 : vector<8x128xf32>
    %70 = math.tanh %69 : vector<8x128xf32>
    %71 = vector.extract_strided_slice %57 {offsets = [0, 128], sizes = [8, 128], strides = [1, 1]} : vector<8x384xf32> to vector<8x128xf32>
    %72 = vector.extract_strided_slice %26 {offsets = [0, 128], sizes = [8, 128], strides = [1, 1]} : vector<8x384xf32> to vector<8x128xf32>
    %73 = arith.addf %71, %72 : vector<8x128xf32>
    %74 = arith.negf %73 : vector<8x128xf32>
    %75 = math.exp %74 : vector<8x128xf32>
    %cst_29 = arith.constant 1.000000e+00 : f32
    %76 = vector.broadcast %cst_29 : f32 to vector<8x128xf32>
    %77 = arith.addf %76, %75 : vector<8x128xf32>
    %78 = arith.divf %76, %77 : vector<8x128xf32>
    %79 = arith.subf %23, %70 : vector<8x128xf32>
    %80 = arith.mulf %78, %79 : vector<8x128xf32>
    %81 = arith.addf %70, %80 : vector<8x128xf32>
    %82 = arith.truncf %81 : vector<8x128xf32> to vector<8x128xbf16>
    %c0_30 = arith.constant 0 : index
    %c0_31 = arith.constant 0 : index
    %c0_32 = arith.constant 0 : index
    %83 = vector.load %arg14[%c0_30, %c0_31, %c0_32] : memref<8x8x128xbf16, #tpu.memory_space<vmem>>, vector<1x8x128xbf16>
    %84 = vector.shape_cast %83 : vector<1x8x128xbf16> to vector<8x128xbf16>
    %85 = vector.shape_cast %82 : vector<8x128xbf16> to vector<1x8x128xbf16>
    tpu.vector_store %arg14[%c0_30, %c0_31, %c0_32], %85 {strides = array<i32>} : memref<8x8x128xbf16, #tpu.memory_space<vmem>>, vector<1x8x128xbf16>,
    %86 = arith.truncf %81 : vector<8x128xf32> to vector<8x128xbf16>
    %cst_33 = arith.constant dense<0.000000e+00> : vector<8x384xf32>
    %87 = tpu.matmul %86, %19, %cst_33 {dimension_numbers = #tpu.dot_dimension_numbers<[1], [0], [0], [1], [0, 0, 1, 1], [], []>} : vector<8x128xbf16>, vector<128x384xbf16>, vector<8x384xf32> -> vector<8x384xf32>
    %88 = arith.addf %87, %16 : vector<8x384xf32>
    %89 = vector.extract_strided_slice %7 {offsets = [8, 0], sizes = [8, 384], strides = [1, 1]} : vector<64x384xf32> to vector<8x384xf32>
    %90 = arith.truncf %54 : vector<8x128xf32> to vector<8x128xbf16>
    %cst_34 = arith.constant dense<0.000000e+00> : vector<8x384xf32>
    %91 = tpu.matmul %90, %17, %cst_34 {dimension_numbers = #tpu.dot_dimension_numbers<[1], [0], [0], [1], [0, 0, 1, 1], [], []>} : vector<8x128xbf16>, vector<128x384xbf16>, vector<8x384xf32> -> vector<8x384xf32>
    %92 = arith.addf %91, %10 : vector<8x384xf32>
    %93 = vector.extract_strided_slice %89 {offsets = [0, 0], sizes = [8, 128], strides = [1, 1]} : vector<8x384xf32> to vector<8x128xf32>
    %94 = vector.extract_strided_slice %92 {offsets = [0, 0], sizes = [8, 128], strides = [1, 1]} : vector<8x384xf32> to vector<8x128xf32>
    %95 = arith.addf %93, %94 : vector<8x128xf32>
    %96 = arith.negf %95 : vector<8x128xf32>
    %97 = math.exp %96 : vector<8x128xf32>
    %cst_35 = arith.constant 1.000000e+00 : f32
    %98 = vector.broadcast %cst_35 : f32 to vector<8x128xf32>
    %99 = arith.addf %98, %97 : vector<8x128xf32>
    %100 = arith.divf %98, %99 : vector<8x128xf32>
    %101 = vector.extract_strided_slice %89 {offsets = [0, 256], sizes = [8, 128], strides = [1, 1]} : vector<8x384xf32> to vector<8x128xf32>
    %102 = vector.extract_strided_slice %92 {offsets = [0, 256], sizes = [8, 128], strides = [1, 1]} : vector<8x384xf32> to vector<8x128xf32>
    %103 = arith.mulf %100, %102 : vector<8x128xf32>
    %104 = arith.addf %101, %103 : vector<8x128xf32>
    %105 = math.tanh %104 : vector<8x128xf32>
    %106 = vector.extract_strided_slice %89 {offsets = [0, 128], sizes = [8, 128], strides = [1, 1]} : vector<8x384xf32> to vector<8x128xf32>
    %107 = vector.extract_strided_slice %92 {offsets = [0, 128], sizes = [8, 128], strides = [1, 1]} : vector<8x384xf32> to vector<8x128xf32>
    %108 = arith.addf %106, %107 : vector<8x128xf32>
    %109 = arith.negf %108 : vector<8x128xf32>
    %110 = math.exp %109 : vector<8x128xf32>
    %cst_36 = arith.constant 1.000000e+00 : f32
    %111 = vector.broadcast %cst_36 : f32 to vector<8x128xf32>
    %112 = arith.addf %111, %110 : vector<8x128xf32>
    %113 = arith.divf %111, %112 : vector<8x128xf32>
    %114 = arith.subf %54, %105 : vector<8x128xf32>
    %115 = arith.mulf %113, %114 : vector<8x128xf32>
    %116 = arith.addf %105, %115 : vector<8x128xf32>
    %117 = arith.truncf %116 : vector<8x128xf32> to vector<8x128xbf16>
    %cst_37 = arith.constant dense<0.000000e+00> : vector<8x384xf32>
    %118 = tpu.matmul %117, %18, %cst_37 {dimension_numbers = #tpu.dot_dimension_numbers<[1], [0], [0], [1], [0, 0, 1, 1], [], []>} : vector<8x128xbf16>, vector<128x384xbf16>, vector<8x384xf32> -> vector<8x384xf32>
    %119 = arith.addf %118, %13 : vector<8x384xf32>
    %120 = vector.extract_strided_slice %119 {offsets = [0, 0], sizes = [8, 128], strides = [1, 1]} : vector<8x384xf32> to vector<8x128xf32>
    %121 = vector.extract_strided_slice %88 {offsets = [0, 0], sizes = [8, 128], strides = [1, 1]} : vector<8x384xf32> to vector<8x128xf32>
    %122 = arith.addf %120, %121 : vector<8x128xf32>
    %123 = arith.negf %122 : vector<8x128xf32>
    %124 = math.exp %123 : vector<8x128xf32>
    %cst_38 = arith.constant 1.000000e+00 : f32
    %125 = vector.broadcast %cst_38 : f32 to vector<8x128xf32>
    %126 = arith.addf %125, %124 : vector<8x128xf32>
    %127 = arith.divf %125, %126 : vector<8x128xf32>
    %128 = vector.extract_strided_slice %119 {offsets = [0, 256], sizes = [8, 128], strides = [1, 1]} : vector<8x384xf32> to vector<8x128xf32>
    %129 = vector.extract_strided_slice %88 {offsets = [0, 256], sizes = [8, 128], strides = [1, 1]} : vector<8x384xf32> to vector<8x128xf32>
    %130 = arith.mulf %127, %129 : vector<8x128xf32>
    %131 = arith.addf %128, %130 : vector<8x128xf32>
    %132 = math.tanh %131 : vector<8x128xf32>
    %133 = vector.extract_strided_slice %119 {offsets = [0, 128], sizes = [8, 128], strides = [1, 1]} : vector<8x384xf32> to vector<8x128xf32>
    %134 = vector.extract_strided_slice %88 {offsets = [0, 128], sizes = [8, 128], strides = [1, 1]} : vector<8x384xf32> to vector<8x128xf32>
    %135 = arith.addf %133, %134 : vector<8x128xf32>
    %136 = arith.negf %135 : vector<8x128xf32>
    %137 = math.exp %136 : vector<8x128xf32>
    %cst_39 = arith.constant 1.000000e+00 : f32
    %138 = vector.broadcast %cst_39 : f32 to vector<8x128xf32>
    %139 = arith.addf %138, %137 : vector<8x128xf32>
    %140 = arith.divf %138, %139 : vector<8x128xf32>
    %141 = arith.subf %81, %132 : vector<8x128xf32>
    %142 = arith.mulf %140, %141 : vector<8x128xf32>
    %143 = arith.addf %132, %142 : vector<8x128xf32>
    %144 = arith.truncf %143 : vector<8x128xf32> to vector<8x128xbf16>
    %c1_40 = arith.constant 1 : index
    %c0_41 = arith.constant 0 : index
    %c0_42 = arith.constant 0 : index
    %145 = vector.load %arg14[%c1_40, %c0_41, %c0_42] : memref<8x8x128xbf16, #tpu.memory_space<vmem>>, vector<1x8x128xbf16>
    %146 = vector.shape_cast %145 : vector<1x8x128xbf16> to vector<8x128xbf16>
    %147 = vector.shape_cast %144 : vector<8x128xbf16> to vector<1x8x128xbf16>
    tpu.vector_store %arg14[%c1_40, %c0_41, %c0_42], %147 {strides = array<i32>} : memref<8x8x128xbf16, #tpu.memory_space<vmem>>, vector<1x8x128xbf16>,
    %148 = arith.truncf %143 : vector<8x128xf32> to vector<8x128xbf16>
    %cst_43 = arith.constant dense<0.000000e+00> : vector<8x384xf32>
    %149 = tpu.matmul %148, %19, %cst_43 {dimension_numbers = #tpu.dot_dimension_numbers<[1], [0], [0], [1], [0, 0, 1, 1], [], []>} : vector<8x128xbf16>, vector<128x384xbf16>, vector<8x384xf32> -> vector<8x384xf32>
    %150 = arith.addf %149, %16 : vector<8x384xf32>
    %151 = vector.extract_strided_slice %7 {offsets = [16, 0], sizes = [8, 384], strides = [1, 1]} : vector<64x384xf32> to vector<8x384xf32>
    %152 = arith.truncf %116 : vector<8x128xf32> to vector<8x128xbf16>
    %cst_44 = arith.constant dense<0.000000e+00> : vector<8x384xf32>
    %153 = tpu.matmul %152, %17, %cst_44 {dimension_numbers = #tpu.dot_dimension_numbers<[1], [0], [0], [1], [0, 0, 1, 1], [], []>} : vector<8x128xbf16>, vector<128x384xbf16>, vector<8x384xf32> -> vector<8x384xf32>
    %154 = arith.addf %153, %10 : vector<8x384xf32>
    %155 = vector.extract_strided_slice %151 {offsets = [0, 0], sizes = [8, 128], strides = [1, 1]} : vector<8x384xf32> to vector<8x128xf32>
    %156 = vector.extract_strided_slice %154 {offsets = [0, 0], sizes = [8, 128], strides = [1, 1]} : vector<8x384xf32> to vector<8x128xf32>
    %157 = arith.addf %155, %156 : vector<8x128xf32>
    %158 = arith.negf %157 : vector<8x128xf32>
    %159 = math.exp %158 : vector<8x128xf32>
    %cst_45 = arith.constant 1.000000e+00 : f32
    %160 = vector.broadcast %cst_45 : f32 to vector<8x128xf32>
    %161 = arith.addf %160, %159 : vector<8x128xf32>
    %162 = arith.divf %160, %161 : vector<8x128xf32>
    %163 = vector.extract_strided_slice %151 {offsets = [0, 256], sizes = [8, 128], strides = [1, 1]} : vector<8x384xf32> to vector<8x128xf32>
    %164 = vector.extract_strided_slice %154 {offsets = [0, 256], sizes = [8, 128], strides = [1, 1]} : vector<8x384xf32> to vector<8x128xf32>
    %165 = arith.mulf %162, %164 : vector<8x128xf32>
    %166 = arith.addf %163, %165 : vector<8x128xf32>
    %167 = math.tanh %166 : vector<8x128xf32>
    %168 = vector.extract_strided_slice %151 {offsets = [0, 128], sizes = [8, 128], strides = [1, 1]} : vector<8x384xf32> to vector<8x128xf32>
    %169 = vector.extract_strided_slice %154 {offsets = [0, 128], sizes = [8, 128], strides = [1, 1]} : vector<8x384xf32> to vector<8x128xf32>
    %170 = arith.addf %168, %169 : vector<8x128xf32>
    %171 = arith.negf %170 : vector<8x128xf32>
    %172 = math.exp %171 : vector<8x128xf32>
    %cst_46 = arith.constant 1.000000e+00 : f32
    %173 = vector.broadcast %cst_46 : f32 to vector<8x128xf32>
    %174 = arith.addf %173, %172 : vector<8x128xf32>
    %175 = arith.divf %173, %174 : vector<8x128xf32>
    %176 = arith.subf %116, %167 : vector<8x128xf32>
    %177 = arith.mulf %175, %176 : vector<8x128xf32>
    %178 = arith.addf %167, %177 : vector<8x128xf32>
    %179 = arith.truncf %178 : vector<8x128xf32> to vector<8x128xbf16>
    %cst_47 = arith.constant dense<0.000000e+00> : vector<8x384xf32>
    %180 = tpu.matmul %179, %18, %cst_47 {dimension_numbers = #tpu.dot_dimension_numbers<[1], [0], [0], [1], [0, 0, 1, 1], [], []>} : vector<8x128xbf16>, vector<128x384xbf16>, vector<8x384xf32> -> vector<8x384xf32>
    %181 = arith.addf %180, %13 : vector<8x384xf32>
    %182 = vector.extract_strided_slice %181 {offsets = [0, 0], sizes = [8, 128], strides = [1, 1]} : vector<8x384xf32> to vector<8x128xf32>
    %183 = vector.extract_strided_slice %150 {offsets = [0, 0], sizes = [8, 128], strides = [1, 1]} : vector<8x384xf32> to vector<8x128xf32>
    %184 = arith.addf %182, %183 : vector<8x128xf32>
    %185 = arith.negf %184 : vector<8x128xf32>
    %186 = math.exp %185 : vector<8x128xf32>
    %cst_48 = arith.constant 1.000000e+00 : f32
    %187 = vector.broadcast %cst_48 : f32 to vector<8x128xf32>
    %188 = arith.addf %187, %186 : vector<8x128xf32>
    %189 = arith.divf %187, %188 : vector<8x128xf32>
    %190 = vector.extract_strided_slice %181 {offsets = [0, 256], sizes = [8, 128], strides = [1, 1]} : vector<8x384xf32> to vector<8x128xf32>
    %191 = vector.extract_strided_slice %150 {offsets = [0, 256], sizes = [8, 128], strides = [1, 1]} : vector<8x384xf32> to vector<8x128xf32>
    %192 = arith.mulf %189, %191 : vector<8x128xf32>
    %193 = arith.addf %190, %192 : vector<8x128xf32>
    %194 = math.tanh %193 : vector<8x128xf32>
    %195 = vector.extract_strided_slice %181 {offsets = [0, 128], sizes = [8, 128], strides = [1, 1]} : vector<8x384xf32> to vector<8x128xf32>
    %196 = vector.extract_strided_slice %150 {offsets = [0, 128], sizes = [8, 128], strides = [1, 1]} : vector<8x384xf32> to vector<8x128xf32>
    %197 = arith.addf %195, %196 : vector<8x128xf32>
    %198 = arith.negf %197 : vector<8x128xf32>
    %199 = math.exp %198 : vector<8x128xf32>
    %cst_49 = arith.constant 1.000000e+00 : f32
    %200 = vector.broadcast %cst_49 : f32 to vector<8x128xf32>
    %201 = arith.addf %200, %199 : vector<8x128xf32>
    %202 = arith.divf %200, %201 : vector<8x128xf32>
    %203 = arith.subf %143, %194 : vector<8x128xf32>
    %204 = arith.mulf %202, %203 : vector<8x128xf32>
    %205 = arith.addf %194, %204 : vector<8x128xf32>
    %206 = arith.truncf %205 : vector<8x128xf32> to vector<8x128xbf16>
    %c2 = arith.constant 2 : index
    %c0_50 = arith.constant 0 : index
    %c0_51 = arith.constant 0 : index
    %207 = vector.load %arg14[%c2, %c0_50, %c0_51] : memref<8x8x128xbf16, #tpu.memory_space<vmem>>, vector<1x8x128xbf16>
    %208 = vector.shape_cast %207 : vector<1x8x128xbf16> to vector<8x128xbf16>
    %209 = vector.shape_cast %206 : vector<8x128xbf16> to vector<1x8x128xbf16>
    tpu.vector_store %arg14[%c2, %c0_50, %c0_51], %209 {strides = array<i32>} : memref<8x8x128xbf16, #tpu.memory_space<vmem>>, vector<1x8x128xbf16>,
    %210 = arith.truncf %205 : vector<8x128xf32> to vector<8x128xbf16>
    %cst_52 = arith.constant dense<0.000000e+00> : vector<8x384xf32>
    %211 = tpu.matmul %210, %19, %cst_52 {dimension_numbers = #tpu.dot_dimension_numbers<[1], [0], [0], [1], [0, 0, 1, 1], [], []>} : vector<8x128xbf16>, vector<128x384xbf16>, vector<8x384xf32> -> vector<8x384xf32>
    %212 = arith.addf %211, %16 : vector<8x384xf32>
    %213 = vector.extract_strided_slice %7 {offsets = [24, 0], sizes = [8, 384], strides = [1, 1]} : vector<64x384xf32> to vector<8x384xf32>
    %214 = arith.truncf %178 : vector<8x128xf32> to vector<8x128xbf16>
    %cst_53 = arith.constant dense<0.000000e+00> : vector<8x384xf32>
    %215 = tpu.matmul %214, %17, %cst_53 {dimension_numbers = #tpu.dot_dimension_numbers<[1], [0], [0], [1], [0, 0, 1, 1], [], []>} : vector<8x128xbf16>, vector<128x384xbf16>, vector<8x384xf32> -> vector<8x384xf32>
    %216 = arith.addf %215, %10 : vector<8x384xf32>
    %217 = vector.extract_strided_slice %213 {offsets = [0, 0], sizes = [8, 128], strides = [1, 1]} : vector<8x384xf32> to vector<8x128xf32>
    %218 = vector.extract_strided_slice %216 {offsets = [0, 0], sizes = [8, 128], strides = [1, 1]} : vector<8x384xf32> to vector<8x128xf32>
    %219 = arith.addf %217, %218 : vector<8x128xf32>
    %220 = arith.negf %219 : vector<8x128xf32>
    %221 = math.exp %220 : vector<8x128xf32>
    %cst_54 = arith.constant 1.000000e+00 : f32
    %222 = vector.broadcast %cst_54 : f32 to vector<8x128xf32>
    %223 = arith.addf %222, %221 : vector<8x128xf32>
    %224 = arith.divf %222, %223 : vector<8x128xf32>
    %225 = vector.extract_strided_slice %213 {offsets = [0, 256], sizes = [8, 128], strides = [1, 1]} : vector<8x384xf32> to vector<8x128xf32>
    %226 = vector.extract_strided_slice %216 {offsets = [0, 256], sizes = [8, 128], strides = [1, 1]} : vector<8x384xf32> to vector<8x128xf32>
    %227 = arith.mulf %224, %226 : vector<8x128xf32>
    %228 = arith.addf %225, %227 : vector<8x128xf32>
    %229 = math.tanh %228 : vector<8x128xf32>
    %230 = vector.extract_strided_slice %213 {offsets = [0, 128], sizes = [8, 128], strides = [1, 1]} : vector<8x384xf32> to vector<8x128xf32>
    %231 = vector.extract_strided_slice %216 {offsets = [0, 128], sizes = [8, 128], strides = [1, 1]} : vector<8x384xf32> to vector<8x128xf32>
    %232 = arith.addf %230, %231 : vector<8x128xf32>
    %233 = arith.negf %232 : vector<8x128xf32>
    %234 = math.exp %233 : vector<8x128xf32>
    %cst_55 = arith.constant 1.000000e+00 : f32
    %235 = vector.broadcast %cst_55 : f32 to vector<8x128xf32>
    %236 = arith.addf %235, %234 : vector<8x128xf32>
    %237 = arith.divf %235, %236 : vector<8x128xf32>
    %238 = arith.subf %178, %229 : vector<8x128xf32>
    %239 = arith.mulf %237, %238 : vector<8x128xf32>
    %240 = arith.addf %229, %239 : vector<8x128xf32>
    %241 = arith.truncf %240 : vector<8x128xf32> to vector<8x128xbf16>
    %cst_56 = arith.constant dense<0.000000e+00> : vector<8x384xf32>
    %242 = tpu.matmul %241, %18, %cst_56 {dimension_numbers = #tpu.dot_dimension_numbers<[1], [0], [0], [1], [0, 0, 1, 1], [], []>} : vector<8x128xbf16>, vector<128x384xbf16>, vector<8x384xf32> -> vector<8x384xf32>
    %243 = arith.addf %242, %13 : vector<8x384xf32>
    %244 = vector.extract_strided_slice %243 {offsets = [0, 0], sizes = [8, 128], strides = [1, 1]} : vector<8x384xf32> to vector<8x128xf32>
    %245 = vector.extract_strided_slice %212 {offsets = [0, 0], sizes = [8, 128], strides = [1, 1]} : vector<8x384xf32> to vector<8x128xf32>
    %246 = arith.addf %244, %245 : vector<8x128xf32>
    %247 = arith.negf %246 : vector<8x128xf32>
    %248 = math.exp %247 : vector<8x128xf32>
    %cst_57 = arith.constant 1.000000e+00 : f32
    %249 = vector.broadcast %cst_57 : f32 to vector<8x128xf32>
    %250 = arith.addf %249, %248 : vector<8x128xf32>
    %251 = arith.divf %249, %250 : vector<8x128xf32>
    %252 = vector.extract_strided_slice %243 {offsets = [0, 256], sizes = [8, 128], strides = [1, 1]} : vector<8x384xf32> to vector<8x128xf32>
    %253 = vector.extract_strided_slice %212 {offsets = [0, 256], sizes = [8, 128], strides = [1, 1]} : vector<8x384xf32> to vector<8x128xf32>
    %254 = arith.mulf %251, %253 : vector<8x128xf32>
    %255 = arith.addf %252, %254 : vector<8x128xf32>
    %256 = math.tanh %255 : vector<8x128xf32>
    %257 = vector.extract_strided_slice %243 {offsets = [0, 128], sizes = [8, 128], strides = [1, 1]} : vector<8x384xf32> to vector<8x128xf32>
    %258 = vector.extract_strided_slice %212 {offsets = [0, 128], sizes = [8, 128], strides = [1, 1]} : vector<8x384xf32> to vector<8x128xf32>
    %259 = arith.addf %257, %258 : vector<8x128xf32>
    %260 = arith.negf %259 : vector<8x128xf32>
    %261 = math.exp %260 : vector<8x128xf32>
    %cst_58 = arith.constant 1.000000e+00 : f32
    %262 = vector.broadcast %cst_58 : f32 to vector<8x128xf32>
    %263 = arith.addf %262, %261 : vector<8x128xf32>
    %264 = arith.divf %262, %263 : vector<8x128xf32>
    %265 = arith.subf %205, %256 : vector<8x128xf32>
    %266 = arith.mulf %264, %265 : vector<8x128xf32>
    %267 = arith.addf %256, %266 : vector<8x128xf32>
    %268 = arith.truncf %267 : vector<8x128xf32> to vector<8x128xbf16>
    %c3 = arith.constant 3 : index
    %c0_59 = arith.constant 0 : index
    %c0_60 = arith.constant 0 : index
    %269 = vector.load %arg14[%c3, %c0_59, %c0_60] : memref<8x8x128xbf16, #tpu.memory_space<vmem>>, vector<1x8x128xbf16>
    %270 = vector.shape_cast %269 : vector<1x8x128xbf16> to vector<8x128xbf16>
    %271 = vector.shape_cast %268 : vector<8x128xbf16> to vector<1x8x128xbf16>
    tpu.vector_store %arg14[%c3, %c0_59, %c0_60], %271 {strides = array<i32>} : memref<8x8x128xbf16, #tpu.memory_space<vmem>>, vector<1x8x128xbf16>,
    %272 = arith.truncf %267 : vector<8x128xf32> to vector<8x128xbf16>
    %cst_61 = arith.constant dense<0.000000e+00> : vector<8x384xf32>
    %273 = tpu.matmul %272, %19, %cst_61 {dimension_numbers = #tpu.dot_dimension_numbers<[1], [0], [0], [1], [0, 0, 1, 1], [], []>} : vector<8x128xbf16>, vector<128x384xbf16>, vector<8x384xf32> -> vector<8x384xf32>
    %274 = arith.addf %273, %16 : vector<8x384xf32>
    %275 = vector.extract_strided_slice %7 {offsets = [32, 0], sizes = [8, 384], strides = [1, 1]} : vector<64x384xf32> to vector<8x384xf32>
    %276 = arith.truncf %240 : vector<8x128xf32> to vector<8x128xbf16>
    %cst_62 = arith.constant dense<0.000000e+00> : vector<8x384xf32>
    %277 = tpu.matmul %276, %17, %cst_62 {dimension_numbers = #tpu.dot_dimension_numbers<[1], [0], [0], [1], [0, 0, 1, 1], [], []>} : vector<8x128xbf16>, vector<128x384xbf16>, vector<8x384xf32> -> vector<8x384xf32>
    %278 = arith.addf %277, %10 : vector<8x384xf32>
    %279 = vector.extract_strided_slice %275 {offsets = [0, 0], sizes = [8, 128], strides = [1, 1]} : vector<8x384xf32> to vector<8x128xf32>
    %280 = vector.extract_strided_slice %278 {offsets = [0, 0], sizes = [8, 128], strides = [1, 1]} : vector<8x384xf32> to vector<8x128xf32>
    %281 = arith.addf %279, %280 : vector<8x128xf32>
    %282 = arith.negf %281 : vector<8x128xf32>
    %283 = math.exp %282 : vector<8x128xf32>
    %cst_63 = arith.constant 1.000000e+00 : f32
    %284 = vector.broadcast %cst_63 : f32 to vector<8x128xf32>
    %285 = arith.addf %284, %283 : vector<8x128xf32>
    %286 = arith.divf %284, %285 : vector<8x128xf32>
    %287 = vector.extract_strided_slice %275 {offsets = [0, 256], sizes = [8, 128], strides = [1, 1]} : vector<8x384xf32> to vector<8x128xf32>
    %288 = vector.extract_strided_slice %278 {offsets = [0, 256], sizes = [8, 128], strides = [1, 1]} : vector<8x384xf32> to vector<8x128xf32>
    %289 = arith.mulf %286, %288 : vector<8x128xf32>
    %290 = arith.addf %287, %289 : vector<8x128xf32>
    %291 = math.tanh %290 : vector<8x128xf32>
    %292 = vector.extract_strided_slice %275 {offsets = [0, 128], sizes = [8, 128], strides = [1, 1]} : vector<8x384xf32> to vector<8x128xf32>
    %293 = vector.extract_strided_slice %278 {offsets = [0, 128], sizes = [8, 128], strides = [1, 1]} : vector<8x384xf32> to vector<8x128xf32>
    %294 = arith.addf %292, %293 : vector<8x128xf32>
    %295 = arith.negf %294 : vector<8x128xf32>
    %296 = math.exp %295 : vector<8x128xf32>
    %cst_64 = arith.constant 1.000000e+00 : f32
    %297 = vector.broadcast %cst_64 : f32 to vector<8x128xf32>
    %298 = arith.addf %297, %296 : vector<8x128xf32>
    %299 = arith.divf %297, %298 : vector<8x128xf32>
    %300 = arith.subf %240, %291 : vector<8x128xf32>
    %301 = arith.mulf %299, %300 : vector<8x128xf32>
    %302 = arith.addf %291, %301 : vector<8x128xf32>
    %303 = arith.truncf %302 : vector<8x128xf32> to vector<8x128xbf16>
    %cst_65 = arith.constant dense<0.000000e+00> : vector<8x384xf32>
    %304 = tpu.matmul %303, %18, %cst_65 {dimension_numbers = #tpu.dot_dimension_numbers<[1], [0], [0], [1], [0, 0, 1, 1], [], []>} : vector<8x128xbf16>, vector<128x384xbf16>, vector<8x384xf32> -> vector<8x384xf32>
    %305 = arith.addf %304, %13 : vector<8x384xf32>
    %306 = vector.extract_strided_slice %305 {offsets = [0, 0], sizes = [8, 128], strides = [1, 1]} : vector<8x384xf32> to vector<8x128xf32>
    %307 = vector.extract_strided_slice %274 {offsets = [0, 0], sizes = [8, 128], strides = [1, 1]} : vector<8x384xf32> to vector<8x128xf32>
    %308 = arith.addf %306, %307 : vector<8x128xf32>
    %309 = arith.negf %308 : vector<8x128xf32>
    %310 = math.exp %309 : vector<8x128xf32>
    %cst_66 = arith.constant 1.000000e+00 : f32
    %311 = vector.broadcast %cst_66 : f32 to vector<8x128xf32>
    %312 = arith.addf %311, %310 : vector<8x128xf32>
    %313 = arith.divf %311, %312 : vector<8x128xf32>
    %314 = vector.extract_strided_slice %305 {offsets = [0, 256], sizes = [8, 128], strides = [1, 1]} : vector<8x384xf32> to vector<8x128xf32>
    %315 = vector.extract_strided_slice %274 {offsets = [0, 256], sizes = [8, 128], strides = [1, 1]} : vector<8x384xf32> to vector<8x128xf32>
    %316 = arith.mulf %313, %315 : vector<8x128xf32>
    %317 = arith.addf %314, %316 : vector<8x128xf32>
    %318 = math.tanh %317 : vector<8x128xf32>
    %319 = vector.extract_strided_slice %305 {offsets = [0, 128], sizes = [8, 128], strides = [1, 1]} : vector<8x384xf32> to vector<8x128xf32>
    %320 = vector.extract_strided_slice %274 {offsets = [0, 128], sizes = [8, 128], strides = [1, 1]} : vector<8x384xf32> to vector<8x128xf32>
    %321 = arith.addf %319, %320 : vector<8x128xf32>
    %322 = arith.negf %321 : vector<8x128xf32>
    %323 = math.exp %322 : vector<8x128xf32>
    %cst_67 = arith.constant 1.000000e+00 : f32
    %324 = vector.broadcast %cst_67 : f32 to vector<8x128xf32>
    %325 = arith.addf %324, %323 : vector<8x128xf32>
    %326 = arith.divf %324, %325 : vector<8x128xf32>
    %327 = arith.subf %267, %318 : vector<8x128xf32>
    %328 = arith.mulf %326, %327 : vector<8x128xf32>
    %329 = arith.addf %318, %328 : vector<8x128xf32>
    %330 = arith.truncf %329 : vector<8x128xf32> to vector<8x128xbf16>
    %c4 = arith.constant 4 : index
    %c0_68 = arith.constant 0 : index
    %c0_69 = arith.constant 0 : index
    %331 = vector.load %arg14[%c4, %c0_68, %c0_69] : memref<8x8x128xbf16, #tpu.memory_space<vmem>>, vector<1x8x128xbf16>
    %332 = vector.shape_cast %331 : vector<1x8x128xbf16> to vector<8x128xbf16>
    %333 = vector.shape_cast %330 : vector<8x128xbf16> to vector<1x8x128xbf16>
    tpu.vector_store %arg14[%c4, %c0_68, %c0_69], %333 {strides = array<i32>} : memref<8x8x128xbf16, #tpu.memory_space<vmem>>, vector<1x8x128xbf16>,
    %334 = arith.truncf %329 : vector<8x128xf32> to vector<8x128xbf16>
    %cst_70 = arith.constant dense<0.000000e+00> : vector<8x384xf32>
    %335 = tpu.matmul %334, %19, %cst_70 {dimension_numbers = #tpu.dot_dimension_numbers<[1], [0], [0], [1], [0, 0, 1, 1], [], []>} : vector<8x128xbf16>, vector<128x384xbf16>, vector<8x384xf32> -> vector<8x384xf32>
    %336 = arith.addf %335, %16 : vector<8x384xf32>
    %337 = vector.extract_strided_slice %7 {offsets = [40, 0], sizes = [8, 384], strides = [1, 1]} : vector<64x384xf32> to vector<8x384xf32>
    %338 = arith.truncf %302 : vector<8x128xf32> to vector<8x128xbf16>
    %cst_71 = arith.constant dense<0.000000e+00> : vector<8x384xf32>
    %339 = tpu.matmul %338, %17, %cst_71 {dimension_numbers = #tpu.dot_dimension_numbers<[1], [0], [0], [1], [0, 0, 1, 1], [], []>} : vector<8x128xbf16>, vector<128x384xbf16>, vector<8x384xf32> -> vector<8x384xf32>
    %340 = arith.addf %339, %10 : vector<8x384xf32>
    %341 = vector.extract_strided_slice %337 {offsets = [0, 0], sizes = [8, 128], strides = [1, 1]} : vector<8x384xf32> to vector<8x128xf32>
    %342 = vector.extract_strided_slice %340 {offsets = [0, 0], sizes = [8, 128], strides = [1, 1]} : vector<8x384xf32> to vector<8x128xf32>
    %343 = arith.addf %341, %342 : vector<8x128xf32>
    %344 = arith.negf %343 : vector<8x128xf32>
    %345 = math.exp %344 : vector<8x128xf32>
    %cst_72 = arith.constant 1.000000e+00 : f32
    %346 = vector.broadcast %cst_72 : f32 to vector<8x128xf32>
    %347 = arith.addf %346, %345 : vector<8x128xf32>
    %348 = arith.divf %346, %347 : vector<8x128xf32>
    %349 = vector.extract_strided_slice %337 {offsets = [0, 256], sizes = [8, 128], strides = [1, 1]} : vector<8x384xf32> to vector<8x128xf32>
    %350 = vector.extract_strided_slice %340 {offsets = [0, 256], sizes = [8, 128], strides = [1, 1]} : vector<8x384xf32> to vector<8x128xf32>
    %351 = arith.mulf %348, %350 : vector<8x128xf32>
    %352 = arith.addf %349, %351 : vector<8x128xf32>
    %353 = math.tanh %352 : vector<8x128xf32>
    %354 = vector.extract_strided_slice %337 {offsets = [0, 128], sizes = [8, 128], strides = [1, 1]} : vector<8x384xf32> to vector<8x128xf32>
    %355 = vector.extract_strided_slice %340 {offsets = [0, 128], sizes = [8, 128], strides = [1, 1]} : vector<8x384xf32> to vector<8x128xf32>
    %356 = arith.addf %354, %355 : vector<8x128xf32>
    %357 = arith.negf %356 : vector<8x128xf32>
    %358 = math.exp %357 : vector<8x128xf32>
    %cst_73 = arith.constant 1.000000e+00 : f32
    %359 = vector.broadcast %cst_73 : f32 to vector<8x128xf32>
    %360 = arith.addf %359, %358 : vector<8x128xf32>
    %361 = arith.divf %359, %360 : vector<8x128xf32>
    %362 = arith.subf %302, %353 : vector<8x128xf32>
    %363 = arith.mulf %361, %362 : vector<8x128xf32>
    %364 = arith.addf %353, %363 : vector<8x128xf32>
    %365 = arith.truncf %364 : vector<8x128xf32> to vector<8x128xbf16>
    %cst_74 = arith.constant dense<0.000000e+00> : vector<8x384xf32>
    %366 = tpu.matmul %365, %18, %cst_74 {dimension_numbers = #tpu.dot_dimension_numbers<[1], [0], [0], [1], [0, 0, 1, 1], [], []>} : vector<8x128xbf16>, vector<128x384xbf16>, vector<8x384xf32> -> vector<8x384xf32>
    %367 = arith.addf %366, %13 : vector<8x384xf32>
    %368 = vector.extract_strided_slice %367 {offsets = [0, 0], sizes = [8, 128], strides = [1, 1]} : vector<8x384xf32> to vector<8x128xf32>
    %369 = vector.extract_strided_slice %336 {offsets = [0, 0], sizes = [8, 128], strides = [1, 1]} : vector<8x384xf32> to vector<8x128xf32>
    %370 = arith.addf %368, %369 : vector<8x128xf32>
    %371 = arith.negf %370 : vector<8x128xf32>
    %372 = math.exp %371 : vector<8x128xf32>
    %cst_75 = arith.constant 1.000000e+00 : f32
    %373 = vector.broadcast %cst_75 : f32 to vector<8x128xf32>
    %374 = arith.addf %373, %372 : vector<8x128xf32>
    %375 = arith.divf %373, %374 : vector<8x128xf32>
    %376 = vector.extract_strided_slice %367 {offsets = [0, 256], sizes = [8, 128], strides = [1, 1]} : vector<8x384xf32> to vector<8x128xf32>
    %377 = vector.extract_strided_slice %336 {offsets = [0, 256], sizes = [8, 128], strides = [1, 1]} : vector<8x384xf32> to vector<8x128xf32>
    %378 = arith.mulf %375, %377 : vector<8x128xf32>
    %379 = arith.addf %376, %378 : vector<8x128xf32>
    %380 = math.tanh %379 : vector<8x128xf32>
    %381 = vector.extract_strided_slice %367 {offsets = [0, 128], sizes = [8, 128], strides = [1, 1]} : vector<8x384xf32> to vector<8x128xf32>
    %382 = vector.extract_strided_slice %336 {offsets = [0, 128], sizes = [8, 128], strides = [1, 1]} : vector<8x384xf32> to vector<8x128xf32>
    %383 = arith.addf %381, %382 : vector<8x128xf32>
    %384 = arith.negf %383 : vector<8x128xf32>
    %385 = math.exp %384 : vector<8x128xf32>
    %cst_76 = arith.constant 1.000000e+00 : f32
    %386 = vector.broadcast %cst_76 : f32 to vector<8x128xf32>
    %387 = arith.addf %386, %385 : vector<8x128xf32>
    %388 = arith.divf %386, %387 : vector<8x128xf32>
    %389 = arith.subf %329, %380 : vector<8x128xf32>
    %390 = arith.mulf %388, %389 : vector<8x128xf32>
    %391 = arith.addf %380, %390 : vector<8x128xf32>
    %392 = arith.truncf %391 : vector<8x128xf32> to vector<8x128xbf16>
    %c5 = arith.constant 5 : index
    %c0_77 = arith.constant 0 : index
    %c0_78 = arith.constant 0 : index
    %393 = vector.load %arg14[%c5, %c0_77, %c0_78] : memref<8x8x128xbf16, #tpu.memory_space<vmem>>, vector<1x8x128xbf16>
    %394 = vector.shape_cast %393 : vector<1x8x128xbf16> to vector<8x128xbf16>
    %395 = vector.shape_cast %392 : vector<8x128xbf16> to vector<1x8x128xbf16>
    tpu.vector_store %arg14[%c5, %c0_77, %c0_78], %395 {strides = array<i32>} : memref<8x8x128xbf16, #tpu.memory_space<vmem>>, vector<1x8x128xbf16>,
    %396 = arith.truncf %391 : vector<8x128xf32> to vector<8x128xbf16>
    %cst_79 = arith.constant dense<0.000000e+00> : vector<8x384xf32>
    %397 = tpu.matmul %396, %19, %cst_79 {dimension_numbers = #tpu.dot_dimension_numbers<[1], [0], [0], [1], [0, 0, 1, 1], [], []>} : vector<8x128xbf16>, vector<128x384xbf16>, vector<8x384xf32> -> vector<8x384xf32>
    %398 = arith.addf %397, %16 : vector<8x384xf32>
    %399 = vector.extract_strided_slice %7 {offsets = [48, 0], sizes = [8, 384], strides = [1, 1]} : vector<64x384xf32> to vector<8x384xf32>
    %400 = arith.truncf %364 : vector<8x128xf32> to vector<8x128xbf16>
    %cst_80 = arith.constant dense<0.000000e+00> : vector<8x384xf32>
    %401 = tpu.matmul %400, %17, %cst_80 {dimension_numbers = #tpu.dot_dimension_numbers<[1], [0], [0], [1], [0, 0, 1, 1], [], []>} : vector<8x128xbf16>, vector<128x384xbf16>, vector<8x384xf32> -> vector<8x384xf32>
    %402 = arith.addf %401, %10 : vector<8x384xf32>
    %403 = vector.extract_strided_slice %399 {offsets = [0, 0], sizes = [8, 128], strides = [1, 1]} : vector<8x384xf32> to vector<8x128xf32>
    %404 = vector.extract_strided_slice %402 {offsets = [0, 0], sizes = [8, 128], strides = [1, 1]} : vector<8x384xf32> to vector<8x128xf32>
    %405 = arith.addf %403, %404 : vector<8x128xf32>
    %406 = arith.negf %405 : vector<8x128xf32>
    %407 = math.exp %406 : vector<8x128xf32>
    %cst_81 = arith.constant 1.000000e+00 : f32
    %408 = vector.broadcast %cst_81 : f32 to vector<8x128xf32>
    %409 = arith.addf %408, %407 : vector<8x128xf32>
    %410 = arith.divf %408, %409 : vector<8x128xf32>
    %411 = vector.extract_strided_slice %399 {offsets = [0, 256], sizes = [8, 128], strides = [1, 1]} : vector<8x384xf32> to vector<8x128xf32>
    %412 = vector.extract_strided_slice %402 {offsets = [0, 256], sizes = [8, 128], strides = [1, 1]} : vector<8x384xf32> to vector<8x128xf32>
    %413 = arith.mulf %410, %412 : vector<8x128xf32>
    %414 = arith.addf %411, %413 : vector<8x128xf32>
    %415 = math.tanh %414 : vector<8x128xf32>
    %416 = vector.extract_strided_slice %399 {offsets = [0, 128], sizes = [8, 128], strides = [1, 1]} : vector<8x384xf32> to vector<8x128xf32>
    %417 = vector.extract_strided_slice %402 {offsets = [0, 128], sizes = [8, 128], strides = [1, 1]} : vector<8x384xf32> to vector<8x128xf32>
    %418 = arith.addf %416, %417 : vector<8x128xf32>
    %419 = arith.negf %418 : vector<8x128xf32>
    %420 = math.exp %419 : vector<8x128xf32>
    %cst_82 = arith.constant 1.000000e+00 : f32
    %421 = vector.broadcast %cst_82 : f32 to vector<8x128xf32>
    %422 = arith.addf %421, %420 : vector<8x128xf32>
    %423 = arith.divf %421, %422 : vector<8x128xf32>
    %424 = arith.subf %364, %415 : vector<8x128xf32>
    %425 = arith.mulf %423, %424 : vector<8x128xf32>
    %426 = arith.addf %415, %425 : vector<8x128xf32>
    %427 = arith.truncf %426 : vector<8x128xf32> to vector<8x128xbf16>
    %cst_83 = arith.constant dense<0.000000e+00> : vector<8x384xf32>
    %428 = tpu.matmul %427, %18, %cst_83 {dimension_numbers = #tpu.dot_dimension_numbers<[1], [0], [0], [1], [0, 0, 1, 1], [], []>} : vector<8x128xbf16>, vector<128x384xbf16>, vector<8x384xf32> -> vector<8x384xf32>
    %429 = arith.addf %428, %13 : vector<8x384xf32>
    %430 = vector.extract_strided_slice %429 {offsets = [0, 0], sizes = [8, 128], strides = [1, 1]} : vector<8x384xf32> to vector<8x128xf32>
    %431 = vector.extract_strided_slice %398 {offsets = [0, 0], sizes = [8, 128], strides = [1, 1]} : vector<8x384xf32> to vector<8x128xf32>
    %432 = arith.addf %430, %431 : vector<8x128xf32>
    %433 = arith.negf %432 : vector<8x128xf32>
    %434 = math.exp %433 : vector<8x128xf32>
    %cst_84 = arith.constant 1.000000e+00 : f32
    %435 = vector.broadcast %cst_84 : f32 to vector<8x128xf32>
    %436 = arith.addf %435, %434 : vector<8x128xf32>
    %437 = arith.divf %435, %436 : vector<8x128xf32>
    %438 = vector.extract_strided_slice %429 {offsets = [0, 256], sizes = [8, 128], strides = [1, 1]} : vector<8x384xf32> to vector<8x128xf32>
    %439 = vector.extract_strided_slice %398 {offsets = [0, 256], sizes = [8, 128], strides = [1, 1]} : vector<8x384xf32> to vector<8x128xf32>
    %440 = arith.mulf %437, %439 : vector<8x128xf32>
    %441 = arith.addf %438, %440 : vector<8x128xf32>
    %442 = math.tanh %441 : vector<8x128xf32>
    %443 = vector.extract_strided_slice %429 {offsets = [0, 128], sizes = [8, 128], strides = [1, 1]} : vector<8x384xf32> to vector<8x128xf32>
    %444 = vector.extract_strided_slice %398 {offsets = [0, 128], sizes = [8, 128], strides = [1, 1]} : vector<8x384xf32> to vector<8x128xf32>
    %445 = arith.addf %443, %444 : vector<8x128xf32>
    %446 = arith.negf %445 : vector<8x128xf32>
    %447 = math.exp %446 : vector<8x128xf32>
    %cst_85 = arith.constant 1.000000e+00 : f32
    %448 = vector.broadcast %cst_85 : f32 to vector<8x128xf32>
    %449 = arith.addf %448, %447 : vector<8x128xf32>
    %450 = arith.divf %448, %449 : vector<8x128xf32>
    %451 = arith.subf %391, %442 : vector<8x128xf32>
    %452 = arith.mulf %450, %451 : vector<8x128xf32>
    %453 = arith.addf %442, %452 : vector<8x128xf32>
    %454 = arith.truncf %453 : vector<8x128xf32> to vector<8x128xbf16>
    %c6 = arith.constant 6 : index
    %c0_86 = arith.constant 0 : index
    %c0_87 = arith.constant 0 : index
    %455 = vector.load %arg14[%c6, %c0_86, %c0_87] : memref<8x8x128xbf16, #tpu.memory_space<vmem>>, vector<1x8x128xbf16>
    %456 = vector.shape_cast %455 : vector<1x8x128xbf16> to vector<8x128xbf16>
    %457 = vector.shape_cast %454 : vector<8x128xbf16> to vector<1x8x128xbf16>
    tpu.vector_store %arg14[%c6, %c0_86, %c0_87], %457 {strides = array<i32>} : memref<8x8x128xbf16, #tpu.memory_space<vmem>>, vector<1x8x128xbf16>,
    %458 = arith.truncf %453 : vector<8x128xf32> to vector<8x128xbf16>
    %cst_88 = arith.constant dense<0.000000e+00> : vector<8x384xf32>
    %459 = tpu.matmul %458, %19, %cst_88 {dimension_numbers = #tpu.dot_dimension_numbers<[1], [0], [0], [1], [0, 0, 1, 1], [], []>} : vector<8x128xbf16>, vector<128x384xbf16>, vector<8x384xf32> -> vector<8x384xf32>
    %460 = arith.addf %459, %16 : vector<8x384xf32>
    %461 = vector.extract_strided_slice %7 {offsets = [56, 0], sizes = [8, 384], strides = [1, 1]} : vector<64x384xf32> to vector<8x384xf32>
    %462 = arith.truncf %426 : vector<8x128xf32> to vector<8x128xbf16>
    %cst_89 = arith.constant dense<0.000000e+00> : vector<8x384xf32>
    %463 = tpu.matmul %462, %17, %cst_89 {dimension_numbers = #tpu.dot_dimension_numbers<[1], [0], [0], [1], [0, 0, 1, 1], [], []>} : vector<8x128xbf16>, vector<128x384xbf16>, vector<8x384xf32> -> vector<8x384xf32>
    %464 = arith.addf %463, %10 : vector<8x384xf32>
    %465 = vector.extract_strided_slice %461 {offsets = [0, 0], sizes = [8, 128], strides = [1, 1]} : vector<8x384xf32> to vector<8x128xf32>
    %466 = vector.extract_strided_slice %464 {offsets = [0, 0], sizes = [8, 128], strides = [1, 1]} : vector<8x384xf32> to vector<8x128xf32>
    %467 = arith.addf %465, %466 : vector<8x128xf32>
    %468 = arith.negf %467 : vector<8x128xf32>
    %469 = math.exp %468 : vector<8x128xf32>
    %cst_90 = arith.constant 1.000000e+00 : f32
    %470 = vector.broadcast %cst_90 : f32 to vector<8x128xf32>
    %471 = arith.addf %470, %469 : vector<8x128xf32>
    %472 = arith.divf %470, %471 : vector<8x128xf32>
    %473 = vector.extract_strided_slice %461 {offsets = [0, 256], sizes = [8, 128], strides = [1, 1]} : vector<8x384xf32> to vector<8x128xf32>
    %474 = vector.extract_strided_slice %464 {offsets = [0, 256], sizes = [8, 128], strides = [1, 1]} : vector<8x384xf32> to vector<8x128xf32>
    %475 = arith.mulf %472, %474 : vector<8x128xf32>
    %476 = arith.addf %473, %475 : vector<8x128xf32>
    %477 = math.tanh %476 : vector<8x128xf32>
    %478 = vector.extract_strided_slice %461 {offsets = [0, 128], sizes = [8, 128], strides = [1, 1]} : vector<8x384xf32> to vector<8x128xf32>
    %479 = vector.extract_strided_slice %464 {offsets = [0, 128], sizes = [8, 128], strides = [1, 1]} : vector<8x384xf32> to vector<8x128xf32>
    %480 = arith.addf %478, %479 : vector<8x128xf32>
    %481 = arith.negf %480 : vector<8x128xf32>
    %482 = math.exp %481 : vector<8x128xf32>
    %cst_91 = arith.constant 1.000000e+00 : f32
    %483 = vector.broadcast %cst_91 : f32 to vector<8x128xf32>
    %484 = arith.addf %483, %482 : vector<8x128xf32>
    %485 = arith.divf %483, %484 : vector<8x128xf32>
    %486 = arith.subf %426, %477 : vector<8x128xf32>
    %487 = arith.mulf %485, %486 : vector<8x128xf32>
    %488 = arith.addf %477, %487 : vector<8x128xf32>
    %489 = arith.truncf %488 : vector<8x128xf32> to vector<8x128xbf16>
    %cst_92 = arith.constant dense<0.000000e+00> : vector<8x384xf32>
    %490 = tpu.matmul %489, %18, %cst_92 {dimension_numbers = #tpu.dot_dimension_numbers<[1], [0], [0], [1], [0, 0, 1, 1], [], []>} : vector<8x128xbf16>, vector<128x384xbf16>, vector<8x384xf32> -> vector<8x384xf32>
    %491 = arith.addf %490, %13 : vector<8x384xf32>
    %492 = vector.extract_strided_slice %491 {offsets = [0, 0], sizes = [8, 128], strides = [1, 1]} : vector<8x384xf32> to vector<8x128xf32>
    %493 = vector.extract_strided_slice %460 {offsets = [0, 0], sizes = [8, 128], strides = [1, 1]} : vector<8x384xf32> to vector<8x128xf32>
    %494 = arith.addf %492, %493 : vector<8x128xf32>
    %495 = arith.negf %494 : vector<8x128xf32>
    %496 = math.exp %495 : vector<8x128xf32>
    %cst_93 = arith.constant 1.000000e+00 : f32
    %497 = vector.broadcast %cst_93 : f32 to vector<8x128xf32>
    %498 = arith.addf %497, %496 : vector<8x128xf32>
    %499 = arith.divf %497, %498 : vector<8x128xf32>
    %500 = vector.extract_strided_slice %491 {offsets = [0, 256], sizes = [8, 128], strides = [1, 1]} : vector<8x384xf32> to vector<8x128xf32>
    %501 = vector.extract_strided_slice %460 {offsets = [0, 256], sizes = [8, 128], strides = [1, 1]} : vector<8x384xf32> to vector<8x128xf32>
    %502 = arith.mulf %499, %501 : vector<8x128xf32>
    %503 = arith.addf %500, %502 : vector<8x128xf32>
    %504 = math.tanh %503 : vector<8x128xf32>
    %505 = vector.extract_strided_slice %491 {offsets = [0, 128], sizes = [8, 128], strides = [1, 1]} : vector<8x384xf32> to vector<8x128xf32>
    %506 = vector.extract_strided_slice %460 {offsets = [0, 128], sizes = [8, 128], strides = [1, 1]} : vector<8x384xf32> to vector<8x128xf32>
    %507 = arith.addf %505, %506 : vector<8x128xf32>
    %508 = arith.negf %507 : vector<8x128xf32>
    %509 = math.exp %508 : vector<8x128xf32>
    %cst_94 = arith.constant 1.000000e+00 : f32
    %510 = vector.broadcast %cst_94 : f32 to vector<8x128xf32>
    %511 = arith.addf %510, %509 : vector<8x128xf32>
    %512 = arith.divf %510, %511 : vector<8x128xf32>
    %513 = arith.subf %453, %504 : vector<8x128xf32>
    %514 = arith.mulf %512, %513 : vector<8x128xf32>
    %515 = arith.addf %504, %514 : vector<8x128xf32>
    %516 = arith.truncf %515 : vector<8x128xf32> to vector<8x128xbf16>
    %c7 = arith.constant 7 : index
    %c0_95 = arith.constant 0 : index
    %c0_96 = arith.constant 0 : index
    %517 = vector.load %arg14[%c7, %c0_95, %c0_96] : memref<8x8x128xbf16, #tpu.memory_space<vmem>>, vector<1x8x128xbf16>
    %518 = vector.shape_cast %517 : vector<1x8x128xbf16> to vector<8x128xbf16>
    %519 = vector.shape_cast %516 : vector<8x128xbf16> to vector<1x8x128xbf16>
    tpu.vector_store %arg14[%c7, %c0_95, %c0_96], %519 {strides = array<i32>} : memref<8x8x128xbf16, #tpu.memory_space<vmem>>, vector<1x8x128xbf16>,
    %c0_97 = arith.constant 0 : index
    %c0_98 = arith.constant 0 : index
    %c0_99 = arith.constant 0 : index
    %520 = vector.load %arg13[%c0_97, %c0_98, %c0_99] : memref<2x8x128xf32, #tpu.memory_space<vmem>>, vector<1x8x128xf32>
    %521 = vector.shape_cast %520 : vector<1x8x128xf32> to vector<8x128xf32>
    %522 = vector.shape_cast %488 : vector<8x128xf32> to vector<1x8x128xf32>
    tpu.vector_store %arg13[%c0_97, %c0_98, %c0_99], %522 {strides = array<i32>} : memref<2x8x128xf32, #tpu.memory_space<vmem>>, vector<1x8x128xf32>,
    %c1_100 = arith.constant 1 : index
    %c0_101 = arith.constant 0 : index
    %c0_102 = arith.constant 0 : index
    %523 = vector.load %arg13[%c1_100, %c0_101, %c0_102] : memref<2x8x128xf32, #tpu.memory_space<vmem>>, vector<1x8x128xf32>
    %524 = vector.shape_cast %523 : vector<1x8x128xf32> to vector<8x128xf32>
    %525 = vector.shape_cast %515 : vector<8x128xf32> to vector<1x8x128xf32>
    tpu.vector_store %arg13[%c1_100, %c0_101, %c0_102], %525 {strides = array<i32>} : memref<2x8x128xf32, #tpu.memory_space<vmem>>, vector<1x8x128xf32>,
    %c0_103 = arith.constant 0 : index
    %c0_104 = arith.constant 0 : index
    %c0_105 = arith.constant 0 : index
    %526 = vector.load %arg14[%c0_103, %c0_104, %c0_105] : memref<8x8x128xbf16, #tpu.memory_space<vmem>>, vector<8x8x128xbf16>
    %527 = tpu.transpose %526, [1, 0, 2] : vector<8x8x128xbf16> -> vector<8x8x128xbf16>
    %528 = vector.shape_cast %527 : vector<8x8x128xbf16> to vector<64x128xbf16>
    %c0_106 = arith.constant 0 : index
    %c0_107 = arith.constant 0 : index
    %529 = vector.load %arg10[%c0_106, %c0_107] : memref<128x128xbf16, #tpu.memory_space<vmem>>, vector<128x128xbf16>
    %cst_108 = arith.constant dense<0.000000e+00> : vector<64x128xf32>
    %530 = tpu.matmul %528, %529, %cst_108 {dimension_numbers = #tpu.dot_dimension_numbers<[1], [0], [0], [1], [0, 0, 1, 1], [], []>} : vector<64x128xbf16>, vector<128x128xbf16>, vector<64x128xf32> -> vector<64x128xf32>
    %c0_109 = arith.constant 0 : index
    %c0_110 = arith.constant 0 : index
    %531 = vector.load %arg11[%c0_109, %c0_110] : memref<1x128xf32, #tpu.memory_space<vmem>>, vector<1x128xf32>
    %532 = vector.broadcast %531 : vector<1x128xf32> to vector<64x128xf32>
    %533 = arith.addf %530, %532 : vector<64x128xf32>
    %c0_111 = arith.constant 0 : index
    %c0_112 = arith.constant 0 : index
    %534 = vector.load %arg12[%c0_111, %c0_112] : memref<64x128xf32, #tpu.memory_space<vmem>>, vector<64x128xf32>
    tpu.vector_store %arg12[%c0_111, %c0_112], %533 {strides = array<i32>} : memref<64x128xf32, #tpu.memory_space<vmem>>, vector<64x128xf32>,
    return
  }
}

</mosaic_0001>

<llo_original>
// kernel: char_rnn_forward.1
$region0: #{char_rnn_forward.1}
  #allocation0 [shape = 'u32[]', space=smem, size = 0x4, offset = 0x4, fixed_abs, tag = 'smem constant byte address 0x4 - core index']
  #allocation1 [shape = 'u32[72,128]{1,0:T(1,128)}', space=vmem, size = 0x9000, scoped, tag = 'internal scratch']
  #allocation2 [shape = 'bf16[8,8,128]{2,1,0:T(8,128)(2,1)}', space=vmem, size = 0x4000, scoped, tag = 'scratch operand']
  %s0 = inlined_call_operand.vmem [shape: f32[8,8,128], index: 0, kind: input, shape index: {}]
  %s1 = inlined_call_operand.hbm [shape: f32[2,8,128], index: 1, kind: input, shape index: {}]
  %s2 = inlined_call_operand.vmem [shape: bf16[128,384], index: 2, kind: input, shape index: {}]
  %s3 = inlined_call_operand.vmem [shape: f32[1,384], index: 3, kind: input, shape index: {}]
  %s4 = inlined_call_operand.vmem [shape: bf16[128,384], index: 4, kind: input, shape index: {}]
  %s5 = inlined_call_operand.vmem [shape: f32[1,384], index: 5, kind: input, shape index: {}]
  %s6 = inlined_call_operand.vmem [shape: bf16[128,384], index: 6, kind: input, shape index: {}]
  %s7 = inlined_call_operand.vmem [shape: f32[1,384], index: 7, kind: input, shape index: {}]
  %s8 = inlined_call_operand.vmem [shape: bf16[128,384], index: 8, kind: input, shape index: {}]
  %s9 = inlined_call_operand.hbm [shape: f32[1,384], index: 9, kind: input, shape index: {}]
  %s10 = inlined_call_operand.hbm [shape: bf16[128,128], index: 10, kind: input, shape index: {}]
  %s11 = inlined_call_operand.vmem [shape: f32[1,128], index: 11, kind: input, shape index: {}]
  %s12 = inlined_call_operand.hbm [shape: f32[64,128], index: 12, kind: output, shape index: {0}]
  %s13 = inlined_call_operand.hbm [shape: f32[2,8,128], index: 13, kind: output, shape index: {1}]
  %14 = xla_tuple %s12, %s13
  %s15 = sld [smem:[#allocation0]]
  $region78: #{char_rnn_forward.1} parent=0
    _
  %s17 = ssub.s32 1, %s15
  %s18 = scalar_select 0, %s17, %s15
  $region1: #{char_rnn_forward.1} parent=0
    #allocation3 [shape = 'u8[8192]{0}', space=vmem, size = 0x2000, scoped, tag = 'input window, operand 1, single buffered']
    #allocation4 [shape = 's32[1]{0}', space=sflag, size = 0x4, scoped, tag = 'scoped memory for char_rnn_forward.1']
    #allocation5 [shape = 's32[1]{0}', space=sflag, size = 0x4, scoped, tag = 'scoped memory for char_rnn_forward.1']
    #allocation6 [shape = 'u8[1536]{0}', space=vmem, size = 0x800, scoped, tag = 'input window, operand 9, single buffered']
    #allocation7 [shape = 's32[1]{0}', space=sflag, size = 0x4, scoped, tag = 'scoped memory for char_rnn_forward.1']
    #allocation8 [shape = 'u8[32768]{0}', space=vmem, size = 0x8000, scoped, tag = 'input window, operand 10, single buffered']
    #allocation9 [shape = 'u8[32768]{0}', space=vmem, size = 0x8000, scoped, tag = 'output window, operand 0, single buffered']
    #allocation10 [shape = 'u8[8192]{0}', space=vmem, size = 0x2000, scoped, tag = 'output window, operand 1, single buffered']
    #allocation11 [shape = 's32[1]{0}', space=sflag, size = 0x4, scoped, tag = 'scoped memory for char_rnn_forward.1']
    %19 = vsyncpa [#allocation4], 0
    %20 = vsyncpa [#allocation7], 0
    %21 = vsyncpa [#allocation5], 0
    %22 = vsyncpa [#allocation11], 0
    // Predicated region
    $region2: #{char_rnn_forward.1} parent=1 // pred_check
      _
    $region3: #{char_rnn_forward.1} parent=1 // pred_check_branch
      %24 = sbr.rel (0) target = $region5
    $region4: #{char_rnn_forward.1} parent=1 // pred_region
      _
    $region5: #{char_rnn_forward.1} parent=1 // pred_fallthru
      _
    // Predicated region
    $region6: #{char_rnn_forward.1} parent=1 // pred_check
      _
    $region7: #{char_rnn_forward.1} parent=1 // pred_check_branch
      %26 = sbr.rel (0) target = $region9
    $region8: #{char_rnn_forward.1} parent=1 // pred_region
      %28 = vsyncadd [#allocation4], 0
      %s29 = sshll.u32 %s1, 4
      %s30 = int_to_ptr.hbm [resolvable:$true] %s29
      %s31 = sshll.u32 [#allocation3], 4
      %s32 = int_to_ptr.vmem [resolvable:$true] %s31
      %37 = dma.hbm_to_vmem [thread:$0]  %s30, 256, %s32, [#allocation4], 128, 128, 8
    $region9: #{char_rnn_forward.1} parent=1 // pred_fallthru
      _
    // Predicated region
    $region10: #{char_rnn_forward.1} parent=1 // pred_check
      _
    $region11: #{char_rnn_forward.1} parent=1 // pred_check_branch
      %39 = sbr.rel (0) target = $region13
    $region12: #{char_rnn_forward.1} parent=1 // pred_region
      _
    $region13: #{char_rnn_forward.1} parent=1 // pred_fallthru
      _
    // Predicated region
    $region14: #{char_rnn_forward.1} parent=1 // pred_check
      _
    $region15: #{char_rnn_forward.1} parent=1 // pred_check_branch
      %41 = sbr.rel (0) target = $region17
    $region16: #{char_rnn_forward.1} parent=1 // pred_region
      _
    $region17: #{char_rnn_forward.1} parent=1 // pred_fallthru
      _
    // Predicated region
    $region18: #{char_rnn_forward.1} parent=1 // pred_check
      _
    $region19: #{char_rnn_forward.1} parent=1 // pred_check_branch
      %43 = sbr.rel (0) target = $region21
    $region20: #{char_rnn_forward.1} parent=1 // pred_region
      _
    $region21: #{char_rnn_forward.1} parent=1 // pred_fallthru
      _
    // Predicated region
    $region22: #{char_rnn_forward.1} parent=1 // pred_check
      _
    $region23: #{char_rnn_forward.1} parent=1 // pred_check_branch
      %45 = sbr.rel (0) target = $region25
    $region24: #{char_rnn_forward.1} parent=1 // pred_region
      _
    $region25: #{char_rnn_forward.1} parent=1 // pred_fallthru
      _
    // Predicated region
    $region26: #{char_rnn_forward.1} parent=1 // pred_check
      _
    $region27: #{char_rnn_forward.1} parent=1 // pred_check_branch
      %47 = sbr.rel (0) target = $region29
    $region28: #{char_rnn_forward.1} parent=1 // pred_region
      _
    $region29: #{char_rnn_forward.1} parent=1 // pred_fallthru
      _
    // Predicated region
    $region30: #{char_rnn_forward.1} parent=1 // pred_check
      _
    $region31: #{char_rnn_forward.1} parent=1 // pred_check_branch
      %49 = sbr.rel (0) target = $region33
    $region32: #{char_rnn_forward.1} parent=1 // pred_region
      _
    $region33: #{char_rnn_forward.1} parent=1 // pred_fallthru
      _
    // Predicated region
    $region34: #{char_rnn_forward.1} parent=1 // pred_check
      _
    $region35: #{char_rnn_forward.1} parent=1 // pred_check_branch
      %51 = sbr.rel (0) target = $region37
    $region36: #{char_rnn_forward.1} parent=1 // pred_region
      _
    $region37: #{char_rnn_forward.1} parent=1 // pred_fallthru
      _
    // Predicated region
    $region38: #{char_rnn_forward.1} parent=1 // pred_check
      _
    $region39: #{char_rnn_forward.1} parent=1 // pred_check_branch
      %53 = sbr.rel (0) target = $region41
    $region40: #{char_rnn_forward.1} parent=1 // pred_region
      %55 = vsyncadd [#allocation7], 0
      %s57 = sshll.u32 %s9, 4
      %s58 = int_to_ptr.hbm [resolvable:$true] %s57
      %s59 = sshll.u32 [#allocation6], 4
      %s60 = int_to_ptr.vmem [resolvable:$true] %s59
      %62 = dma.hbm_to_vmem [thread:$0]  %s58, 48, %s60, [#allocation7]
    $region41: #{char_rnn_forward.1} parent=1 // pred_fallthru
      _
    // Predicated region
    $region42: #{char_rnn_forward.1} parent=1 // pred_check
      _
    $region43: #{char_rnn_forward.1} parent=1 // pred_check_branch
      %64 = sbr.rel (0) target = $region45
    $region44: #{char_rnn_forward.1} parent=1 // pred_region
      %66 = vsyncadd [#allocation7], 0
      %s67 = sshll.u32 %s10, 4
      %s68 = int_to_ptr.hbm [resolvable:$true] %s67
      %s69 = sshll.u32 [#allocation8], 4
      %s70 = int_to_ptr.vmem [resolvable:$true] %s69
      %75 = dma.hbm_to_vmem [thread:$0]  %s68, 1024, %s70, [#allocation7], 64, 64, 4
    $region45: #{char_rnn_forward.1} parent=1 // pred_fallthru
      _
    // Predicated region
    $region46: #{char_rnn_forward.1} parent=1 // pred_check
      _
    $region47: #{char_rnn_forward.1} parent=1 // pred_check_branch
      %77 = sbr.rel (0) target = $region49
    $region48: #{char_rnn_forward.1} parent=1 // pred_region
      _
    $region49: #{char_rnn_forward.1} parent=1 // pred_fallthru
      _
    // Predicated region
    $region50: #{char_rnn_forward.1} parent=1 // pred_check
      _
    $region51: #{char_rnn_forward.1} parent=1 // pred_check_branch
      %79 = sbr.rel (0) target = $region53
    $region52: #{char_rnn_forward.1} parent=1 // pred_region
      %81 = dma.done [#allocation4], 256
    $region53: #{char_rnn_forward.1} parent=1 // pred_fallthru
      _
    // Predicated region
    $region54: #{char_rnn_forward.1} parent=1 // pred_check
      _
    $region55: #{char_rnn_forward.1} parent=1 // pred_check_branch
      %83 = sbr.rel (0) target = $region57
    $region56: #{char_rnn_forward.1} parent=1 // pred_region
      %85 = dma.done [#allocation7], 48
    $region57: #{char_rnn_forward.1} parent=1 // pred_fallthru
      _
    // Predicated region
    $region58: #{char_rnn_forward.1} parent=1 // pred_check
      _
    $region59: #{char_rnn_forward.1} parent=1 // pred_check_branch
      %87 = sbr.rel (0) target = $region61
    $region60: #{char_rnn_forward.1} parent=1 // pred_region
      %89 = dma.done [#allocation7], 1024
    $region61: #{char_rnn_forward.1} parent=1 // pred_fallthru
      _
    %v91 = vld [vmem:[%s0] sm:$0xff]
    %v92 = vld [vmem:[%s0 + $0x8] sm:$0xff]
    %v93 = vld [vmem:[%s0 + $0x10] sm:$0xff]
    %v94 = vld [vmem:[%s0 + $0x18] sm:$0xff]
    %v95 = vld [vmem:[%s0 + $0x20] sm:$0xff]
    %v96 = vld [vmem:[%s0 + $0x28] sm:$0xff]
    %v97 = vld [vmem:[%s0 + $0x30] sm:$0xff]
    %v98 = vld [vmem:[%s0 + $0x38] sm:$0xff]
    %v99 = vpack.c.bf16 %v92, %v91
    %v100 = vpack.c.bf16 %v94, %v93
    %v101 = vpack.c.bf16 %v96, %v95
    %v102 = vpack.c.bf16 %v98, %v97
    %v103 = vld [vmem:[%s2] sm:$0xff]
    %v104 = vld [vmem:[%s2 + $0x8] sm:$0xf]
    %v105 = vld [vmem:[%s2 + $0xc] sm:$0xff]
    %v106 = vld [vmem:[%s2 + $0x14] sm:$0xf]
    %v107 = vld [vmem:[%s2 + $0x18] sm:$0xff]
    %v108 = vld [vmem:[%s2 + $0x20] sm:$0xf]
    %v109 = vld [vmem:[%s2 + $0x24] sm:$0xff]
    %v110 = vld [vmem:[%s2 + $0x2c] sm:$0xf]
    %v111 = vld [vmem:[%s2 + $0x30] sm:$0xff]
    %v112 = vld [vmem:[%s2 + $0x38] sm:$0xf]
    %v113 = vld [vmem:[%s2 + $0x3c] sm:$0xff]
    %v114 = vld [vmem:[%s2 + $0x44] sm:$0xf]
    %v115 = vld [vmem:[%s2 + $0x48] sm:$0xff]
    %v116 = vld [vmem:[%s2 + $0x50] sm:$0xf]
    %v117 = vld [vmem:[%s2 + $0x54] sm:$0xff]
    %v118 = vld [vmem:[%s2 + $0x5c] sm:$0xf]
    %v119 = vld [vmem:[%s2 + $0x60] sm:$0xff]
    %v120 = vld [vmem:[%s2 + $0x68] sm:$0xf]
    %v121 = vld [vmem:[%s2 + $0x6c] sm:$0xff]
    %v122 = vld [vmem:[%s2 + $0x74] sm:$0xf]
    %v123 = vld [vmem:[%s2 + $0x78] sm:$0xff]
    %v124 = vld [vmem:[%s2 + $0x80] sm:$0xf]
    %v125 = vld [vmem:[%s2 + $0x84] sm:$0xff]
    %v126 = vld [vmem:[%s2 + $0x8c] sm:$0xf]
    %v127 = vld [vmem:[%s2 + $0x90] sm:$0xff]
    %v128 = vld [vmem:[%s2 + $0x98] sm:$0xf]
    %v129 = vld [vmem:[%s2 + $0x9c] sm:$0xff]
    %v130 = vld [vmem:[%s2 + $0xa4] sm:$0xf]
    %v131 = vld [vmem:[%s2 + $0xa8] sm:$0xff]
    %v132 = vld [vmem:[%s2 + $0xb0] sm:$0xf]
    %v133 = vld [vmem:[%s2 + $0xb4] sm:$0xff]
    %v134 = vld [vmem:[%s2 + $0xbc] sm:$0xf]
    %v135 = vld [vmem:[%s3] sm:$0x7]
    %v137 = vperm.slane %v135, 0
    %v138 = vperm.slane %v135, 1
    %v139 = vperm.slane %v135, 2
    %v175 = vunpack.c.l.b16 %v103
    %v176 = vunpack.c.h.b16 %v103
    %v177 = vunpack.c.l.b16 %v104
    %v178 = vunpack.c.l.b16 %v105
    %v179 = vunpack.c.h.b16 %v105
    %v180 = vunpack.c.l.b16 %v106
    %v181 = vunpack.c.l.b16 %v107
    %v182 = vunpack.c.h.b16 %v107
    %v183 = vunpack.c.l.b16 %v108
    %v184 = vunpack.c.l.b16 %v109
    %v185 = vunpack.c.h.b16 %v109
    %v186 = vunpack.c.l.b16 %v110
    %v187 = vunpack.c.l.b16 %v111
    %v188 = vunpack.c.h.b16 %v111
    %v189 = vunpack.c.l.b16 %v112
    %v190 = vunpack.c.l.b16 %v113
    %v191 = vunpack.c.h.b16 %v113
    %v192 = vunpack.c.l.b16 %v114
    %v193 = vunpack.c.l.b16 %v115
    %v194 = vunpack.c.h.b16 %v115
    %v195 = vunpack.c.l.b16 %v116
    %v196 = vunpack.c.l.b16 %v117
    %v197 = vunpack.c.h.b16 %v117
    %v198 = vunpack.c.l.b16 %v118
    %v199 = vunpack.c.l.b16 %v119
    %v200 = vunpack.c.h.b16 %v119
    %v201 = vunpack.c.l.b16 %v120
    %v202 = vunpack.c.l.b16 %v121
    %v203 = vunpack.c.h.b16 %v121
    %v204 = vunpack.c.l.b16 %v122
    %v205 = vunpack.c.l.b16 %v123
    %v206 = vunpack.c.h.b16 %v123
    %v207 = vunpack.c.l.b16 %v124
    %v208 = vunpack.c.l.b16 %v125
    %v209 = vunpack.c.h.b16 %v125
    %v210 = vunpack.c.l.b16 %v126
    %v211 = vunpack.c.l.b16 %v127
    %v212 = vunpack.c.h.b16 %v127
    %v213 = vunpack.c.l.b16 %v128
    %v214 = vunpack.c.l.b16 %v129
    %v215 = vunpack.c.h.b16 %v129
    %v216 = vunpack.c.l.b16 %v130
    %v217 = vunpack.c.l.b16 %v131
    %v218 = vunpack.c.h.b16 %v131
    %v219 = vunpack.c.l.b16 %v132
    %v220 = vunpack.c.l.b16 %v133
    %v221 = vunpack.c.h.b16 %v133
    %v222 = vunpack.c.l.b16 %v134
    %v223 = vpack.c.b16 %v178, %v175
    %v224 = vpack.c.b16 %v179, %v176
    %v225 = vpack.c.b16 %v180, %v177
    %v226 = vpack.c.b16 %v184, %v181
    %v227 = vpack.c.b16 %v185, %v182
    %v228 = vpack.c.b16 %v186, %v183
    %v229 = vpack.c.b16 %v190, %v187
    %v230 = vpack.c.b16 %v191, %v188
    %v231 = vpack.c.b16 %v192, %v189
    %v232 = vpack.c.b16 %v196, %v193
    %v233 = vpack.c.b16 %v197, %v194
    %v234 = vpack.c.b16 %v198, %v195
    %v235 = vpack.c.b16 %v202, %v199
    %v236 = vpack.c.b16 %v203, %v200
    %v237 = vpack.c.b16 %v204, %v201
    %v238 = vpack.c.b16 %v208, %v205
    %v239 = vpack.c.b16 %v209, %v206
    %v240 = vpack.c.b16 %v210, %v207
    %v241 = vpack.c.b16 %v214, %v211
    %v242 = vpack.c.b16 %v215, %v212
    %v243 = vpack.c.b16 %v216, %v213
    %v244 = vpack.c.b16 %v220, %v217
    %v245 = vpack.c.b16 %v221, %v218
    %v246 = vpack.c.b16 %v222, %v219
    %271 = vmatpush.bf16.msra.mxu0 %v244
    %272 = vmatpush.bf16.msra.mxu0 %v241
    %273 = vmatpush.bf16.msra.mxu0 %v238
    %274 = vmatpush.bf16.msra.mxu0 %v235
    %275 = vmatpush.bf16.msra.mxu0 %v232
    %276 = vmatpush.bf16.msra.mxu0 %v229
    %277 = vmatpush.bf16.msra.mxu0 %v226
    %278 = vmatpush.bf16.msra.mxu0 %v223
    %279 = vmatmul.bf16.gmra.mxu0 %v99
    %v280 = vpop.f32.mrf.mxu0
    %v281 = vadd.f32 %v137, %v280
    %v282 = vpop.f32.mrf.mxu0
    %v283 = vadd.f32 %v137, %v282
    %284 = vmatmul.bf16.gmra.mxu0 %v100
    %v285 = vpop.f32.mrf.mxu0
    %v286 = vadd.f32 %v137, %v285
    %v287 = vpop.f32.mrf.mxu0
    %v288 = vadd.f32 %v137, %v287
    %289 = vmatmul.bf16.gmra.mxu0 %v101
    %v290 = vpop.f32.mrf.mxu0
    %v291 = vadd.f32 %v137, %v290
    %v292 = vpop.f32.mrf.mxu0
    %v293 = vadd.f32 %v137, %v292
    %294 = vmatmul.bf16.gmra.mxu0 %v102
    %v295 = vpop.f32.mrf.mxu0
    %v296 = vadd.f32 %v137, %v295
    %v297 = vpop.f32.mrf.mxu0
    %v298 = vadd.f32 %v137, %v297
    %299 = vdwg.mxu0
    %300 = vmatpush.bf16.msra.mxu0 %v245
    %301 = vmatpush.bf16.msra.mxu0 %v242
    %302 = vmatpush.bf16.msra.mxu0 %v239
    %303 = vmatpush.bf16.msra.mxu0 %v236
    %304 = vmatpush.bf16.msra.mxu0 %v233
    %305 = vmatpush.bf16.msra.mxu0 %v230
    %306 = vmatpush.bf16.msra.mxu0 %v227
    %307 = vmatpush.bf16.msra.mxu0 %v224
    %308 = vmatmul.bf16.gmra.mxu0 %v99
    %v309 = vpop.f32.mrf.mxu0
    %v310 = vadd.f32 %v138, %v309
    %v311 = vpop.f32.mrf.mxu0
    %v312 = vadd.f32 %v138, %v311
    %313 = vmatmul.bf16.gmra.mxu0 %v100
    %v314 = vpop.f32.mrf.mxu0
    %v315 = vadd.f32 %v138, %v314
    %v316 = vpop.f32.mrf.mxu0
    %v317 = vadd.f32 %v138, %v316
    %318 = vmatmul.bf16.gmra.mxu0 %v101
    %v319 = vpop.f32.mrf.mxu0
    %v320 = vadd.f32 %v138, %v319
    %v321 = vpop.f32.mrf.mxu0
    %v322 = vadd.f32 %v138, %v321
    %323 = vmatmul.bf16.gmra.mxu0 %v102
    %v324 = vpop.f32.mrf.mxu0
    %v325 = vadd.f32 %v138, %v324
    %v326 = vpop.f32.mrf.mxu0
    %v327 = vadd.f32 %v138, %v326
    %328 = vdwg.mxu0
    %329 = vmatpush.bf16.msra.mxu0 %v246
    %330 = vmatpush.bf16.msra.mxu0 %v243
    %331 = vmatpush.bf16.msra.mxu0 %v240
    %332 = vmatpush.bf16.msra.mxu0 %v237
    %333 = vmatpush.bf16.msra.mxu0 %v234
    %334 = vmatpush.bf16.msra.mxu0 %v231
    %335 = vmatpush.bf16.msra.mxu0 %v228
    %336 = vmatpush.bf16.msra.mxu0 %v225
    %337 = vmatmul.bf16.gmra.mxu0 %v99
    %v338 = vpop.f32.mrf.mxu0
    %v339 = vadd.f32 %v139, %v338
    %v340 = vpop.f32.mrf.mxu0
    %v341 = vadd.f32 %v139, %v340
    %342 = vmatmul.bf16.gmra.mxu0 %v100
    %v343 = vpop.f32.mrf.mxu0
    %v344 = vadd.f32 %v139, %v343
    %v345 = vpop.f32.mrf.mxu0
    %v346 = vadd.f32 %v139, %v345
    %347 = vmatmul.bf16.gmra.mxu0 %v101
    %v348 = vpop.f32.mrf.mxu0
    %v349 = vadd.f32 %v139, %v348
    %v350 = vpop.f32.mrf.mxu0
    %v351 = vadd.f32 %v139, %v350
    %352 = vmatmul.bf16.gmra.mxu0 %v102
    %v353 = vpop.f32.mrf.mxu0
    %v354 = vadd.f32 %v139, %v353
    %v355 = vpop.f32.mrf.mxu0
    %v356 = vadd.f32 %v139, %v355
    %357 = vdwg.mxu0
    %v358 = vld [vmem:[%s5] sm:$0x7]
    %v360 = vperm.slane %v358, 0
    %v361 = vperm.slane %v358, 1
    %v362 = vperm.slane %v358, 2
    %v366 = vld [vmem:[%s7] sm:$0x7]
    %v368 = vperm.slane %v366, 0
    %v369 = vperm.slane %v366, 1
    %v370 = vperm.slane %v366, 2
    %v374 = vld [vmem:[#allocation6] sm:$0x7]
    %v376 = vperm.slane %v374, 0
    %v377 = vperm.slane %v374, 1
    %v378 = vperm.slane %v374, 2
    %v382 = vld [vmem:[%s4] sm:$0xff]
    %v383 = vld [vmem:[%s4 + $0x8] sm:$0xf]
    %v384 = vld [vmem:[%s4 + $0xc] sm:$0xff]
    %v385 = vld [vmem:[%s4 + $0x14] sm:$0xf]
    %v386 = vld [vmem:[%s4 + $0x18] sm:$0xff]
    %v387 = vld [vmem:[%s4 + $0x20] sm:$0xf]
    %v388 = vld [vmem:[%s4 + $0x24] sm:$0xff]
    %v389 = vld [vmem:[%s4 + $0x2c] sm:$0xf]
    %v390 = vld [vmem:[%s4 + $0x30] sm:$0xff]
    %v391 = vld [vmem:[%s4 + $0x38] sm:$0xf]
    %v392 = vld [vmem:[%s4 + $0x3c] sm:$0xff]
    %v393 = vld [vmem:[%s4 + $0x44] sm:$0xf]
    %v394 = vld [vmem:[%s4 + $0x48] sm:$0xff]
    %v395 = vld [vmem:[%s4 + $0x50] sm:$0xf]
    %v396 = vld [vmem:[%s4 + $0x54] sm:$0xff]
    %v397 = vld [vmem:[%s4 + $0x5c] sm:$0xf]
    %v398 = vld [vmem:[%s4 + $0x60] sm:$0xff]
    %v399 = vld [vmem:[%s4 + $0x68] sm:$0xf]
    %v400 = vld [vmem:[%s4 + $0x6c] sm:$0xff]
    %v401 = vld [vmem:[%s4 + $0x74] sm:$0xf]
    %v402 = vld [vmem:[%s4 + $0x78] sm:$0xff]
    %v403 = vld [vmem:[%s4 + $0x80] sm:$0xf]
    %v404 = vld [vmem:[%s4 + $0x84] sm:$0xff]
    %v405 = vld [vmem:[%s4 + $0x8c] sm:$0xf]
    %v406 = vld [vmem:[%s4 + $0x90] sm:$0xff]
    %v407 = vld [vmem:[%s4 + $0x98] sm:$0xf]
    %v408 = vld [vmem:[%s4 + $0x9c] sm:$0xff]
    %v409 = vld [vmem:[%s4 + $0xa4] sm:$0xf]
    %v410 = vld [vmem:[%s4 + $0xa8] sm:$0xff]
    %v411 = vld [vmem:[%s4 + $0xb0] sm:$0xf]
    %v412 = vld [vmem:[%s4 + $0xb4] sm:$0xff]
    %v413 = vld [vmem:[%s4 + $0xbc] sm:$0xf]
    %v414 = vld [vmem:[%s6] sm:$0xff]
    %v415 = vld [vmem:[%s6 + $0x8] sm:$0xf]
    %v416 = vld [vmem:[%s6 + $0xc] sm:$0xff]
    %v417 = vld [vmem:[%s6 + $0x14] sm:$0xf]
    %v418 = vld [vmem:[%s6 + $0x18] sm:$0xff]
    %v419 = vld [vmem:[%s6 + $0x20] sm:$0xf]
    %v420 = vld [vmem:[%s6 + $0x24] sm:$0xff]
    %v421 = vld [vmem:[%s6 + $0x2c] sm:$0xf]
    %v422 = vld [vmem:[%s6 + $0x30] sm:$0xff]
    %v423 = vld [vmem:[%s6 + $0x38] sm:$0xf]
    %v424 = vld [vmem:[%s6 + $0x3c] sm:$0xff]
    %v425 = vld [vmem:[%s6 + $0x44] sm:$0xf]
    %v426 = vld [vmem:[%s6 + $0x48] sm:$0xff]
    %v427 = vld [vmem:[%s6 + $0x50] sm:$0xf]
    %v428 = vld [vmem:[%s6 + $0x54] sm:$0xff]
    %v429 = vld [vmem:[%s6 + $0x5c] sm:$0xf]
    %v430 = vld [vmem:[%s6 + $0x60] sm:$0xff]
    %v431 = vld [vmem:[%s6 + $0x68] sm:$0xf]
    %v432 = vld [vmem:[%s6 + $0x6c] sm:$0xff]
    %v433 = vld [vmem:[%s6 + $0x74] sm:$0xf]
    %v434 = vld [vmem:[%s6 + $0x78] sm:$0xff]
    %v435 = vld [vmem:[%s6 + $0x80] sm:$0xf]
    %v436 = vld [vmem:[%s6 + $0x84] sm:$0xff]
    %v437 = vld [vmem:[%s6 + $0x8c] sm:$0xf]
    %v438 = vld [vmem:[%s6 + $0x90] sm:$0xff]
    %v439 = vld [vmem:[%s6 + $0x98] sm:$0xf]
    %v440 = vld [vmem:[%s6 + $0x9c] sm:$0xff]
    %v441 = vld [vmem:[%s6 + $0xa4] sm:$0xf]
    %v442 = vld [vmem:[%s6 + $0xa8] sm:$0xff]
    %v443 = vld [vmem:[%s6 + $0xb0] sm:$0xf]
    %v444 = vld [vmem:[%s6 + $0xb4] sm:$0xff]
    %v445 = vld [vmem:[%s6 + $0xbc] sm:$0xf]
    %v446 = vld [vmem:[%s8] sm:$0xff]
    %v447 = vld [vmem:[%s8 + $0x8] sm:$0xf]
    %v448 = vld [vmem:[%s8 + $0xc] sm:$0xff]
    %v449 = vld [vmem:[%s8 + $0x14] sm:$0xf]
    %v450 = vld [vmem:[%s8 + $0x18] sm:$0xff]
    %v451 = vld [vmem:[%s8 + $0x20] sm:$0xf]
    %v452 = vld [vmem:[%s8 + $0x24] sm:$0xff]
    %v453 = vld [vmem:[%s8 + $0x2c] sm:$0xf]
    %v454 = vld [vmem:[%s8 + $0x30] sm:$0xff]
    %v455 = vld [vmem:[%s8 + $0x38] sm:$0xf]
    %v456 = vld [vmem:[%s8 + $0x3c] sm:$0xff]
    %v457 = vld [vmem:[%s8 + $0x44] sm:$0xf]
    %v458 = vld [vmem:[%s8 + $0x48] sm:$0xff]
    %v459 = vld [vmem:[%s8 + $0x50] sm:$0xf]
    %v460 = vld [vmem:[%s8 + $0x54] sm:$0xff]
    %v461 = vld [vmem:[%s8 + $0x5c] sm:$0xf]
    %v462 = vld [vmem:[%s8 + $0x60] sm:$0xff]
    %v463 = vld [vmem:[%s8 + $0x68] sm:$0xf]
    %v464 = vld [vmem:[%s8 + $0x6c] sm:$0xff]
    %v465 = vld [vmem:[%s8 + $0x74] sm:$0xf]
    %v466 = vld [vmem:[%s8 + $0x78] sm:$0xff]
    %v467 = vld [vmem:[%s8 + $0x80] sm:$0xf]
    %v468 = vld [vmem:[%s8 + $0x84] sm:$0xff]
    %v469 = vld [vmem:[%s8 + $0x8c] sm:$0xf]
    %v470 = vld [vmem:[%s8 + $0x90] sm:$0xff]
    %v471 = vld [vmem:[%s8 + $0x98] sm:$0xf]
    %v472 = vld [vmem:[%s8 + $0x9c] sm:$0xff]
    %v473 = vld [vmem:[%s8 + $0xa4] sm:$0xf]
    %v474 = vld [vmem:[%s8 + $0xa8] sm:$0xff]
    %v475 = vld [vmem:[%s8 + $0xb0] sm:$0xf]
    %v476 = vld [vmem:[%s8 + $0xb4] sm:$0xff]
    %v477 = vld [vmem:[%s8 + $0xbc] sm:$0xf]
    %v478 = vld [vmem:[#allocation3] sm:$0xff]
    %s479 = scalar_lea.vmem [#allocation3], 8
    %v480 = vld [vmem:[%s479] sm:$0xff]
    %v481 = vpack.c.bf16 %v480, %v480
    %v514 = vunpack.c.l.b16 %v446
    %v515 = vunpack.c.h.b16 %v446
    %v516 = vunpack.c.l.b16 %v447
    %v517 = vunpack.c.l.b16 %v448
    %v518 = vunpack.c.h.b16 %v448
    %v519 = vunpack.c.l.b16 %v449
    %v520 = vunpack.c.l.b16 %v450
    %v521 = vunpack.c.h.b16 %v450
    %v522 = vunpack.c.l.b16 %v451
    %v523 = vunpack.c.l.b16 %v452
    %v524 = vunpack.c.h.b16 %v452
    %v525 = vunpack.c.l.b16 %v453
    %v526 = vunpack.c.l.b16 %v454
    %v527 = vunpack.c.h.b16 %v454
    %v528 = vunpack.c.l.b16 %v455
    %v529 = vunpack.c.l.b16 %v456
    %v530 = vunpack.c.h.b16 %v456
    %v531 = vunpack.c.l.b16 %v457
    %v532 = vunpack.c.l.b16 %v458
    %v533 = vunpack.c.h.b16 %v458
    %v534 = vunpack.c.l.b16 %v459
    %v535 = vunpack.c.l.b16 %v460
    %v536 = vunpack.c.h.b16 %v460
    %v537 = vunpack.c.l.b16 %v461
    %v538 = vunpack.c.l.b16 %v462
    %v539 = vunpack.c.h.b16 %v462
    %v540 = vunpack.c.l.b16 %v463
    %v541 = vunpack.c.l.b16 %v464
    %v542 = vunpack.c.h.b16 %v464
    %v543 = vunpack.c.l.b16 %v465
    %v544 = vunpack.c.l.b16 %v466
    %v545 = vunpack.c.h.b16 %v466
    %v546 = vunpack.c.l.b16 %v467
    %v547 = vunpack.c.l.b16 %v468
    %v548 = vunpack.c.h.b16 %v468
    %v549 = vunpack.c.l.b16 %v469
    %v550 = vunpack.c.l.b16 %v470
    %v551 = vunpack.c.h.b16 %v470
    %v552 = vunpack.c.l.b16 %v471
    %v553 = vunpack.c.l.b16 %v472
    %v554 = vunpack.c.h.b16 %v472
    %v555 = vunpack.c.l.b16 %v473
    %v556 = vunpack.c.l.b16 %v474
    %v557 = vunpack.c.h.b16 %v474
    %v558 = vunpack.c.l.b16 %v475
    %v559 = vunpack.c.l.b16 %v476
    %v560 = vunpack.c.h.b16 %v476
    %v561 = vunpack.c.l.b16 %v477
    %v562 = vpack.c.b16 %v517, %v514
    %v563 = vpack.c.b16 %v518, %v515
    %v564 = vpack.c.b16 %v519, %v516
    %v565 = vpack.c.b16 %v523, %v520
    %v566 = vpack.c.b16 %v524, %v521
    %v567 = vpack.c.b16 %v525, %v522
    %v568 = vpack.c.b16 %v529, %v526
    %v569 = vpack.c.b16 %v530, %v527
    %v570 = vpack.c.b16 %v531, %v528
    %v571 = vpack.c.b16 %v535, %v532
    %v572 = vpack.c.b16 %v536, %v533
    %v573 = vpack.c.b16 %v537, %v534
    %v574 = vpack.c.b16 %v541, %v538
    %v575 = vpack.c.b16 %v542, %v539
    %v576 = vpack.c.b16 %v543, %v540
    %v577 = vpack.c.b16 %v547, %v544
    %v578 = vpack.c.b16 %v548, %v545
    %v579 = vpack.c.b16 %v549, %v546
    %v580 = vpack.c.b16 %v553, %v550
    %v581 = vpack.c.b16 %v554, %v551
    %v582 = vpack.c.b16 %v555, %v552
    %v583 = vpack.c.b16 %v559, %v556
    %v584 = vpack.c.b16 %v560, %v557
    %v585 = vpack.c.b16 %v561, %v558
    %610 = vmatpush.bf16.msra.mxu0 %v583
    %611 = vmatpush.bf16.msra.mxu0 %v580
    %612 = vmatpush.bf16.msra.mxu0 %v577
    %613 = vmatpush.bf16.msra.mxu0 %v574
    %614 = vmatpush.bf16.msra.mxu0 %v571
    %615 = vmatpush.bf16.msra.mxu0 %v568
    %616 = vmatpush.bf16.msra.mxu0 %v565
    %617 = vmatpush.bf16.msra.mxu0 %v562
    %618 = vmatmul.bf16.gmra.mxu0 %v481
    %v619 = vpop.f32.mrf.mxu0
    %v620 = vadd.f32 %v376, %v619
    %v621 = vpop.f32.mrf.mxu0
    %622 = vdwg.mxu0
    %623 = vmatpush.bf16.msra.mxu0 %v584
    %624 = vmatpush.bf16.msra.mxu0 %v581
    %625 = vmatpush.bf16.msra.mxu0 %v578
    %626 = vmatpush.bf16.msra.mxu0 %v575
    %627 = vmatpush.bf16.msra.mxu0 %v572
    %628 = vmatpush.bf16.msra.mxu0 %v569
    %629 = vmatpush.bf16.msra.mxu0 %v566
    %630 = vmatpush.bf16.msra.mxu0 %v563
    %631 = vmatmul.bf16.gmra.mxu0 %v481
    %v632 = vpop.f32.mrf.mxu0
    %v633 = vadd.f32 %v377, %v632
    %v634 = vpop.f32.mrf.mxu0
    %635 = vdwg.mxu0
    %636 = vmatpush.bf16.msra.mxu0 %v585
    %637 = vmatpush.bf16.msra.mxu0 %v582
    %638 = vmatpush.bf16.msra.mxu0 %v579
    %639 = vmatpush.bf16.msra.mxu0 %v576
    %640 = vmatpush.bf16.msra.mxu0 %v573
    %641 = vmatpush.bf16.msra.mxu0 %v570
    %642 = vmatpush.bf16.msra.mxu0 %v567
    %643 = vmatpush.bf16.msra.mxu0 %v564
    %644 = vmatmul.bf16.gmra.mxu0 %v481
    %v645 = vpop.f32.mrf.mxu0
    %v646 = vadd.f32 %v378, %v645
    %v647 = vpop.f32.mrf.mxu0
    %648 = vdwg.mxu0
    %v649 = vpack.c.bf16 %v478, %v478
    %v682 = vunpack.c.l.b16 %v382
    %v683 = vunpack.c.h.b16 %v382
    %v684 = vunpack.c.l.b16 %v383
    %v685 = vunpack.c.l.b16 %v384
    %v686 = vunpack.c.h.b16 %v384
    %v687 = vunpack.c.l.b16 %v385
    %v688 = vunpack.c.l.b16 %v386
    %v689 = vunpack.c.h.b16 %v386
    %v690 = vunpack.c.l.b16 %v387
    %v691 = vunpack.c.l.b16 %v388
    %v692 = vunpack.c.h.b16 %v388
    %v693 = vunpack.c.l.b16 %v389
    %v694 = vunpack.c.l.b16 %v390
    %v695 = vunpack.c.h.b16 %v390
    %v696 = vunpack.c.l.b16 %v391
    %v697 = vunpack.c.l.b16 %v392
    %v698 = vunpack.c.h.b16 %v392
    %v699 = vunpack.c.l.b16 %v393
    %v700 = vunpack.c.l.b16 %v394
    %v701 = vunpack.c.h.b16 %v394
    %v702 = vunpack.c.l.b16 %v395
    %v703 = vunpack.c.l.b16 %v396
    %v704 = vunpack.c.h.b16 %v396
    %v705 = vunpack.c.l.b16 %v397
    %v706 = vunpack.c.l.b16 %v398
    %v707 = vunpack.c.h.b16 %v398
    %v708 = vunpack.c.l.b16 %v399
    %v709 = vunpack.c.l.b16 %v400
    %v710 = vunpack.c.h.b16 %v400
    %v711 = vunpack.c.l.b16 %v401
    %v712 = vunpack.c.l.b16 %v402
    %v713 = vunpack.c.h.b16 %v402
    %v714 = vunpack.c.l.b16 %v403
    %v715 = vunpack.c.l.b16 %v404
    %v716 = vunpack.c.h.b16 %v404
    %v717 = vunpack.c.l.b16 %v405
    %v718 = vunpack.c.l.b16 %v406
    %v719 = vunpack.c.h.b16 %v406
    %v720 = vunpack.c.l.b16 %v407
    %v721 = vunpack.c.l.b16 %v408
    %v722 = vunpack.c.h.b16 %v408
    %v723 = vunpack.c.l.b16 %v409
    %v724 = vunpack.c.l.b16 %v410
    %v725 = vunpack.c.h.b16 %v410
    %v726 = vunpack.c.l.b16 %v411
    %v727 = vunpack.c.l.b16 %v412
    %v728 = vunpack.c.h.b16 %v412
    %v729 = vunpack.c.l.b16 %v413
    %v730 = vpack.c.b16 %v685, %v682
    %v731 = vpack.c.b16 %v686, %v683
    %v732 = vpack.c.b16 %v687, %v684
    %v733 = vpack.c.b16 %v691, %v688
    %v734 = vpack.c.b16 %v692, %v689
    %v735 = vpack.c.b16 %v693, %v690
    %v736 = vpack.c.b16 %v697, %v694
    %v737 = vpack.c.b16 %v698, %v695
    %v738 = vpack.c.b16 %v699, %v696
    %v739 = vpack.c.b16 %v703, %v700
    %v740 = vpack.c.b16 %v704, %v701
    %v741 = vpack.c.b16 %v705, %v702
    %v742 = vpack.c.b16 %v709, %v706
    %v743 = vpack.c.b16 %v710, %v707
    %v744 = vpack.c.b16 %v711, %v708
    %v745 = vpack.c.b16 %v715, %v712
    %v746 = vpack.c.b16 %v716, %v713
    %v747 = vpack.c.b16 %v717, %v714
    %v748 = vpack.c.b16 %v721, %v718
    %v749 = vpack.c.b16 %v722, %v719
    %v750 = vpack.c.b16 %v723, %v720
    %v751 = vpack.c.b16 %v727, %v724
    %v752 = vpack.c.b16 %v728, %v725
    %v753 = vpack.c.b16 %v729, %v726
    %778 = vmatpush.bf16.msra.mxu0 %v751
    %779 = vmatpush.bf16.msra.mxu0 %v748
    %780 = vmatpush.bf16.msra.mxu0 %v745
    %781 = vmatpush.bf16.msra.mxu0 %v742
    %782 = vmatpush.bf16.msra.mxu0 %v739
    %783 = vmatpush.bf16.msra.mxu0 %v736
    %784 = vmatpush.bf16.msra.mxu0 %v733
    %785 = vmatpush.bf16.msra.mxu0 %v730
    %786 = vmatmul.bf16.gmra.mxu0 %v649
    %v787 = vpop.f32.mrf.mxu0
    %v788 = vadd.f32 %v360, %v787
    %v789 = vpop.f32.mrf.mxu0
    %790 = vdwg.mxu0
    %791 = vmatpush.bf16.msra.mxu0 %v752
    %792 = vmatpush.bf16.msra.mxu0 %v749
    %793 = vmatpush.bf16.msra.mxu0 %v746
    %794 = vmatpush.bf16.msra.mxu0 %v743
    %795 = vmatpush.bf16.msra.mxu0 %v740
    %796 = vmatpush.bf16.msra.mxu0 %v737
    %797 = vmatpush.bf16.msra.mxu0 %v734
    %798 = vmatpush.bf16.msra.mxu0 %v731
    %799 = vmatmul.bf16.gmra.mxu0 %v649
    %v800 = vpop.f32.mrf.mxu0
    %v801 = vadd.f32 %v361, %v800
    %v802 = vpop.f32.mrf.mxu0
    %803 = vdwg.mxu0
    %804 = vmatpush.bf16.msra.mxu0 %v753
    %805 = vmatpush.bf16.msra.mxu0 %v750
    %806 = vmatpush.bf16.msra.mxu0 %v747
    %807 = vmatpush.bf16.msra.mxu0 %v744
    %808 = vmatpush.bf16.msra.mxu0 %v741
    %809 = vmatpush.bf16.msra.mxu0 %v738
    %810 = vmatpush.bf16.msra.mxu0 %v735
    %811 = vmatpush.bf16.msra.mxu0 %v732
    %812 = vmatmul.bf16.gmra.mxu0 %v649
    %v813 = vpop.f32.mrf.mxu0
    %v814 = vadd.f32 %v362, %v813
    %v815 = vpop.f32.mrf.mxu0
    %816 = vdwg.mxu0
    %v817 = vadd.f32 %v281, %v788
    %v818 = vxor.u32 %v817, 2147483648
    %v819 = vmul.f32 %v818, 1.442695
    %v820 = vpow.pop %v819
    %v821 = vadd.f32 %v820, 1.0
    %v822 = vrcp.pop %v821
    %v823 = vmul.f32 %v821, %v822
    %v824 = vsub.f32 1.0, %v823
    %v825 = vmul.f32 %v822, %v824
    %v826 = vadd.f32 %v822, %v825
    %vm827 = vweird.f32 %v821
    %vm828 = vweird.f32 %v822
    %vm829 = vmor %vm827, %vm828
    %v830 = vsel %vm829, %v822, %v826
    %v831 = vand.u32 2147483647, %v821
    %vm832 = vcmp.eq.f32.partialorder %v831, 8.507059e+37
    %v833 = vand.u32 %v821, 2147483648
    %v834 = vor.u32 1.1754944e-38, %v833
    %v835 = vsel %vm832, %v834, %v830
    %v836 = vmul.f32 1.0, %v835
    %v837 = vmul.f32 %v836, %v814
    %v838 = vadd.f32 %v339, %v837
    %v839 = vtanh.pop %v838
    %v840 = vadd.f32 %v310, %v801
    %v841 = vxor.u32 %v840, 2147483648
    %v842 = vmul.f32 %v841, 1.442695
    %v843 = vpow.pop %v842
    %v844 = vadd.f32 %v843, 1.0
    %v845 = vrcp.pop %v844
    %v846 = vmul.f32 %v844, %v845
    %v847 = vsub.f32 1.0, %v846
    %v848 = vmul.f32 %v845, %v847
    %v849 = vadd.f32 %v845, %v848
    %vm850 = vweird.f32 %v844
    %vm851 = vweird.f32 %v845
    %vm852 = vmor %vm850, %vm851
    %v853 = vsel %vm852, %v845, %v849
    %v854 = vand.u32 2147483647, %v844
    %vm855 = vcmp.eq.f32.partialorder %v854, 8.507059e+37
    %v856 = vand.u32 %v844, 2147483648
    %v857 = vor.u32 1.1754944e-38, %v856
    %v858 = vsel %vm855, %v857, %v853
    %v859 = vmul.f32 1.0, %v858
    %v860 = vsub.f32 %v478, %v839
    %v861 = vmul.f32 %v859, %v860
    %v862 = vadd.f32 %v839, %v861
    %v863 = vpack.c.bf16 %v862, %v862
    %v896 = vunpack.c.l.b16 %v414
    %v897 = vunpack.c.h.b16 %v414
    %v898 = vunpack.c.l.b16 %v415
    %v899 = vunpack.c.l.b16 %v416
    %v900 = vunpack.c.h.b16 %v416
    %v901 = vunpack.c.l.b16 %v417
    %v902 = vunpack.c.l.b16 %v418
    %v903 = vunpack.c.h.b16 %v418
    %v904 = vunpack.c.l.b16 %v419
    %v905 = vunpack.c.l.b16 %v420
    %v906 = vunpack.c.h.b16 %v420
    %v907 = vunpack.c.l.b16 %v421
    %v908 = vunpack.c.l.b16 %v422
    %v909 = vunpack.c.h.b16 %v422
    %v910 = vunpack.c.l.b16 %v423
    %v911 = vunpack.c.l.b16 %v424
    %v912 = vunpack.c.h.b16 %v424
    %v913 = vunpack.c.l.b16 %v425
    %v914 = vunpack.c.l.b16 %v426
    %v915 = vunpack.c.h.b16 %v426
    %v916 = vunpack.c.l.b16 %v427
    %v917 = vunpack.c.l.b16 %v428
    %v918 = vunpack.c.h.b16 %v428
    %v919 = vunpack.c.l.b16 %v429
    %v920 = vunpack.c.l.b16 %v430
    %v921 = vunpack.c.h.b16 %v430
    %v922 = vunpack.c.l.b16 %v431
    %v923 = vunpack.c.l.b16 %v432
    %v924 = vunpack.c.h.b16 %v432
    %v925 = vunpack.c.l.b16 %v433
    %v926 = vunpack.c.l.b16 %v434
    %v927 = vunpack.c.h.b16 %v434
    %v928 = vunpack.c.l.b16 %v435
    %v929 = vunpack.c.l.b16 %v436
    %v930 = vunpack.c.h.b16 %v436
    %v931 = vunpack.c.l.b16 %v437
    %v932 = vunpack.c.l.b16 %v438
    %v933 = vunpack.c.h.b16 %v438
    %v934 = vunpack.c.l.b16 %v439
    %v935 = vunpack.c.l.b16 %v440
    %v936 = vunpack.c.h.b16 %v440
    %v937 = vunpack.c.l.b16 %v441
    %v938 = vunpack.c.l.b16 %v442
    %v939 = vunpack.c.h.b16 %v442
    %v940 = vunpack.c.l.b16 %v443
    %v941 = vunpack.c.l.b16 %v444
    %v942 = vunpack.c.h.b16 %v444
    %v943 = vunpack.c.l.b16 %v445
    %v944 = vpack.c.b16 %v899, %v896
    %v945 = vpack.c.b16 %v900, %v897
    %v946 = vpack.c.b16 %v901, %v898
    %v947 = vpack.c.b16 %v905, %v902
    %v948 = vpack.c.b16 %v906, %v903
    %v949 = vpack.c.b16 %v907, %v904
    %v950 = vpack.c.b16 %v911, %v908
    %v951 = vpack.c.b16 %v912, %v909
    %v952 = vpack.c.b16 %v913, %v910
    %v953 = vpack.c.b16 %v917, %v914
    %v954 = vpack.c.b16 %v918, %v915
    %v955 = vpack.c.b16 %v919, %v916
    %v956 = vpack.c.b16 %v923, %v920
    %v957 = vpack.c.b16 %v924, %v921
    %v958 = vpack.c.b16 %v925, %v922
    %v959 = vpack.c.b16 %v929, %v926
    %v960 = vpack.c.b16 %v930, %v927
    %v961 = vpack.c.b16 %v931, %v928
    %v962 = vpack.c.b16 %v935, %v932
    %v963 = vpack.c.b16 %v936, %v933
    %v964 = vpack.c.b16 %v937, %v934
    %v965 = vpack.c.b16 %v941, %v938
    %v966 = vpack.c.b16 %v942, %v939
    %v967 = vpack.c.b16 %v943, %v940
    %992 = vmatpush.bf16.msra.mxu0 %v965
    %993 = vmatpush.bf16.msra.mxu0 %v962
    %994 = vmatpush.bf16.msra.mxu0 %v959
    %995 = vmatpush.bf16.msra.mxu0 %v956
    %996 = vmatpush.bf16.msra.mxu0 %v953
    %997 = vmatpush.bf16.msra.mxu0 %v950
    %998 = vmatpush.bf16.msra.mxu0 %v947
    %999 = vmatpush.bf16.msra.mxu0 %v944
    %1000 = vmatmul.bf16.gmra.mxu0 %v863
    %v1001 = vpop.f32.mrf.mxu0
    %v1002 = vadd.f32 %v368, %v1001
    %v1003 = vpop.f32.mrf.mxu0
    %1004 = vdwg.mxu0
    %1005 = vmatpush.bf16.msra.mxu0 %v966
    %1006 = vmatpush.bf16.msra.mxu0 %v963
    %1007 = vmatpush.bf16.msra.mxu0 %v960
    %1008 = vmatpush.bf16.msra.mxu0 %v957
    %1009 = vmatpush.bf16.msra.mxu0 %v954
    %1010 = vmatpush.bf16.msra.mxu0 %v951
    %1011 = vmatpush.bf16.msra.mxu0 %v948
    %1012 = vmatpush.bf16.msra.mxu0 %v945
    %1013 = vmatmul.bf16.gmra.mxu0 %v863
    %v1014 = vpop.f32.mrf.mxu0
    %v1015 = vadd.f32 %v369, %v1014
    %v1016 = vpop.f32.mrf.mxu0
    %1017 = vdwg.mxu0
    %1018 = vmatpush.bf16.msra.mxu0 %v967
    %1019 = vmatpush.bf16.msra.mxu0 %v964
    %1020 = vmatpush.bf16.msra.mxu0 %v961
    %1021 = vmatpush.bf16.msra.mxu0 %v958
    %1022 = vmatpush.bf16.msra.mxu0 %v955
    %1023 = vmatpush.bf16.msra.mxu0 %v952
    %1024 = vmatpush.bf16.msra.mxu0 %v949
    %1025 = vmatpush.bf16.msra.mxu0 %v946
    %1026 = vmatmul.bf16.gmra.mxu0 %v863
    %v1027 = vpop.f32.mrf.mxu0
    %v1028 = vadd.f32 %v370, %v1027
    %v1029 = vpop.f32.mrf.mxu0
    %1030 = vdwg.mxu0
    %v1031 = vadd.f32 %v1002, %v620
    %v1032 = vxor.u32 %v1031, 2147483648
    %v1033 = vmul.f32 %v1032, 1.442695
    %v1034 = vpow.pop %v1033
    %v1035 = vadd.f32 %v1034, 1.0
    %v1036 = vrcp.pop %v1035
    %v1037 = vmul.f32 %v1035, %v1036
    %v1038 = vsub.f32 1.0, %v1037
    %v1039 = vmul.f32 %v1036, %v1038
    %v1040 = vadd.f32 %v1036, %v1039
    %vm1041 = vweird.f32 %v1035
    %vm1042 = vweird.f32 %v1036
    %vm1043 = vmor %vm1041, %vm1042
    %v1044 = vsel %vm1043, %v1036, %v1040
    %v1045 = vand.u32 2147483647, %v1035
    %vm1046 = vcmp.eq.f32.partialorder %v1045, 8.507059e+37
    %v1047 = vand.u32 %v1035, 2147483648
    %v1048 = vor.u32 1.1754944e-38, %v1047
    %v1049 = vsel %vm1046, %v1048, %v1044
    %v1050 = vmul.f32 1.0, %v1049
    %v1051 = vmul.f32 %v1050, %v646
    %v1052 = vadd.f32 %v1028, %v1051
    %v1053 = vtanh.pop %v1052
    %v1054 = vadd.f32 %v1015, %v633
    %v1055 = vxor.u32 %v1054, 2147483648
    %v1056 = vmul.f32 %v1055, 1.442695
    %v1057 = vpow.pop %v1056
    %v1058 = vadd.f32 %v1057, 1.0
    %v1059 = vrcp.pop %v1058
    %v1060 = vmul.f32 %v1058, %v1059
    %v1061 = vsub.f32 1.0, %v1060
    %v1062 = vmul.f32 %v1059, %v1061
    %v1063 = vadd.f32 %v1059, %v1062
    %vm1064 = vweird.f32 %v1058
    %vm1065 = vweird.f32 %v1059
    %vm1066 = vmor %vm1064, %vm1065
    %v1067 = vsel %vm1066, %v1059, %v1063
    %v1068 = vand.u32 2147483647, %v1058
    %vm1069 = vcmp.eq.f32.partialorder %v1068, 8.507059e+37
    %v1070 = vand.u32 %v1058, 2147483648
    %v1071 = vor.u32 1.1754944e-38, %v1070
    %v1072 = vsel %vm1069, %v1071, %v1067
    %v1073 = vmul.f32 1.0, %v1072
    %v1074 = vsub.f32 %v480, %v1053
    %v1075 = vmul.f32 %v1073, %v1074
    %v1076 = vadd.f32 %v1053, %v1075
    %v1077 = vpack.c.bf16 %v1076, %v1076
    %1078 = vst [vmem:[#allocation2] sm:$0xf] %v1077
    %1079 = vmatpush.bf16.msra.mxu0 %v583
    %1080 = vmatpush.bf16.msra.mxu0 %v580
    %1081 = vmatpush.bf16.msra.mxu0 %v577
    %1082 = vmatpush.bf16.msra.mxu0 %v574
    %1083 = vmatpush.bf16.msra.mxu0 %v571
    %1084 = vmatpush.bf16.msra.mxu0 %v568
    %1085 = vmatpush.bf16.msra.mxu0 %v565
    %1086 = vmatpush.bf16.msra.mxu0 %v562
    %1087 = vmatmul.bf16.gmra.mxu0 %v1077
    %v1088 = vpop.f32.mrf.mxu0
    %v1089 = vadd.f32 %v376, %v1088
    %v1090 = vpop.f32.mrf.mxu0
    %1091 = vdwg.mxu0
    %1092 = vmatpush.bf16.msra.mxu0 %v584
    %1093 = vmatpush.bf16.msra.mxu0 %v581
    %1094 = vmatpush.bf16.msra.mxu0 %v578
    %1095 = vmatpush.bf16.msra.mxu0 %v575
    %1096 = vmatpush.bf16.msra.mxu0 %v572
    %1097 = vmatpush.bf16.msra.mxu0 %v569
    %1098 = vmatpush.bf16.msra.mxu0 %v566
    %1099 = vmatpush.bf16.msra.mxu0 %v563
    %1100 = vmatmul.bf16.gmra.mxu0 %v1077
    %v1101 = vpop.f32.mrf.mxu0
    %v1102 = vadd.f32 %v377, %v1101
    %v1103 = vpop.f32.mrf.mxu0
    %1104 = vdwg.mxu0
    %1105 = vmatpush.bf16.msra.mxu0 %v585
    %1106 = vmatpush.bf16.msra.mxu0 %v582
    %1107 = vmatpush.bf16.msra.mxu0 %v579
    %1108 = vmatpush.bf16.msra.mxu0 %v576
    %1109 = vmatpush.bf16.msra.mxu0 %v573
    %1110 = vmatpush.bf16.msra.mxu0 %v570
    %1111 = vmatpush.bf16.msra.mxu0 %v567
    %1112 = vmatpush.bf16.msra.mxu0 %v564
    %1113 = vmatmul.bf16.gmra.mxu0 %v1077
    %v1114 = vpop.f32.mrf.mxu0
    %v1115 = vadd.f32 %v378, %v1114
    %v1116 = vpop.f32.mrf.mxu0
    %1117 = vdwg.mxu0
    %1118 = vmatpush.bf16.msra.mxu0 %v751
    %1119 = vmatpush.bf16.msra.mxu0 %v748
    %1120 = vmatpush.bf16.msra.mxu0 %v745
    %1121 = vmatpush.bf16.msra.mxu0 %v742
    %1122 = vmatpush.bf16.msra.mxu0 %v739
    %1123 = vmatpush.bf16.msra.mxu0 %v736
    %1124 = vmatpush.bf16.msra.mxu0 %v733
    %1125 = vmatpush.bf16.msra.mxu0 %v730
    %1126 = vmatmul.bf16.gmra.mxu0 %v863
    %v1127 = vpop.f32.mrf.mxu0
    %v1128 = vadd.f32 %v360, %v1127
    %v1129 = vpop.f32.mrf.mxu0
    %1130 = vdwg.mxu0
    %1131 = vmatpush.bf16.msra.mxu0 %v752
    %1132 = vmatpush.bf16.msra.mxu0 %v749
    %1133 = vmatpush.bf16.msra.mxu0 %v746
    %1134 = vmatpush.bf16.msra.mxu0 %v743
    %1135 = vmatpush.bf16.msra.mxu0 %v740
    %1136 = vmatpush.bf16.msra.mxu0 %v737
    %1137 = vmatpush.bf16.msra.mxu0 %v734
    %1138 = vmatpush.bf16.msra.mxu0 %v731
    %1139 = vmatmul.bf16.gmra.mxu0 %v863
    %v1140 = vpop.f32.mrf.mxu0
    %v1141 = vadd.f32 %v361, %v1140
    %v1142 = vpop.f32.mrf.mxu0
    %1143 = vdwg.mxu0
    %1144 = vmatpush.bf16.msra.mxu0 %v753
    %1145 = vmatpush.bf16.msra.mxu0 %v750
    %1146 = vmatpush.bf16.msra.mxu0 %v747
    %1147 = vmatpush.bf16.msra.mxu0 %v744
    %1148 = vmatpush.bf16.msra.mxu0 %v741
    %1149 = vmatpush.bf16.msra.mxu0 %v738
    %1150 = vmatpush.bf16.msra.mxu0 %v735
    %1151 = vmatpush.bf16.msra.mxu0 %v732
    %1152 = vmatmul.bf16.gmra.mxu0 %v863
    %v1153 = vpop.f32.mrf.mxu0
    %v1154 = vadd.f32 %v362, %v1153
    %v1155 = vpop.f32.mrf.mxu0
    %1156 = vdwg.mxu0
    %v1157 = vadd.f32 %v283, %v1128
    %v1158 = vxor.u32 %v1157, 2147483648
    %v1159 = vmul.f32 %v1158, 1.442695
    %v1160 = vpow.pop %v1159
    %v1161 = vadd.f32 %v1160, 1.0
    %v1162 = vrcp.pop %v1161
    %v1163 = vmul.f32 %v1161, %v1162
    %v1164 = vsub.f32 1.0, %v1163
    %v1165 = vmul.f32 %v1162, %v1164
    %v1166 = vadd.f32 %v1162, %v1165
    %vm1167 = vweird.f32 %v1161
    %vm1168 = vweird.f32 %v1162
    %vm1169 = vmor %vm1167, %vm1168
    %v1170 = vsel %vm1169, %v1162, %v1166
    %v1171 = vand.u32 2147483647, %v1161
    %vm1172 = vcmp.eq.f32.partialorder %v1171, 8.507059e+37
    %v1173 = vand.u32 %v1161, 2147483648
    %v1174 = vor.u32 1.1754944e-38, %v1173
    %v1175 = vsel %vm1172, %v1174, %v1170
    %v1176 = vmul.f32 1.0, %v1175
    %v1177 = vmul.f32 %v1176, %v1154
    %v1178 = vadd.f32 %v341, %v1177
    %v1179 = vtanh.pop %v1178
    %v1180 = vadd.f32 %v312, %v1141
    %v1181 = vxor.u32 %v1180, 2147483648
    %v1182 = vmul.f32 %v1181, 1.442695
    %v1183 = vpow.pop %v1182
    %v1184 = vadd.f32 %v1183, 1.0
    %v1185 = vrcp.pop %v1184
    %v1186 = vmul.f32 %v1184, %v1185
    %v1187 = vsub.f32 1.0, %v1186
    %v1188 = vmul.f32 %v1185, %v1187
    %v1189 = vadd.f32 %v1185, %v1188
    %vm1190 = vweird.f32 %v1184
    %vm1191 = vweird.f32 %v1185
    %vm1192 = vmor %vm1190, %vm1191
    %v1193 = vsel %vm1192, %v1185, %v1189
    %v1194 = vand.u32 2147483647, %v1184
    %vm1195 = vcmp.eq.f32.partialorder %v1194, 8.507059e+37
    %v1196 = vand.u32 %v1184, 2147483648
    %v1197 = vor.u32 1.1754944e-38, %v1196
    %v1198 = vsel %vm1195, %v1197, %v1193
    %v1199 = vmul.f32 1.0, %v1198
    %v1200 = vsub.f32 %v862, %v1179
    %v1201 = vmul.f32 %v1199, %v1200
    %v1202 = vadd.f32 %v1179, %v1201
    %v1203 = vpack.c.bf16 %v1202, %v1202
    %1204 = vmatpush.bf16.msra.mxu0 %v965
    %1205 = vmatpush.bf16.msra.mxu0 %v962
    %1206 = vmatpush.bf16.msra.mxu0 %v959
    %1207 = vmatpush.bf16.msra.mxu0 %v956
    %1208 = vmatpush.bf16.msra.mxu0 %v953
    %1209 = vmatpush.bf16.msra.mxu0 %v950
    %1210 = vmatpush.bf16.msra.mxu0 %v947
    %1211 = vmatpush.bf16.msra.mxu0 %v944
    %1212 = vmatmul.bf16.gmra.mxu0 %v1203
    %v1213 = vpop.f32.mrf.mxu0
    %v1214 = vadd.f32 %v368, %v1213
    %v1215 = vpop.f32.mrf.mxu0
    %1216 = vdwg.mxu0
    %1217 = vmatpush.bf16.msra.mxu0 %v966
    %1218 = vmatpush.bf16.msra.mxu0 %v963
    %1219 = vmatpush.bf16.msra.mxu0 %v960
    %1220 = vmatpush.bf16.msra.mxu0 %v957
    %1221 = vmatpush.bf16.msra.mxu0 %v954
    %1222 = vmatpush.bf16.msra.mxu0 %v951
    %1223 = vmatpush.bf16.msra.mxu0 %v948
    %1224 = vmatpush.bf16.msra.mxu0 %v945
    %1225 = vmatmul.bf16.gmra.mxu0 %v1203
    %v1226 = vpop.f32.mrf.mxu0
    %v1227 = vadd.f32 %v369, %v1226
    %v1228 = vpop.f32.mrf.mxu0
    %1229 = vdwg.mxu0
    %1230 = vmatpush.bf16.msra.mxu0 %v967
    %1231 = vmatpush.bf16.msra.mxu0 %v964
    %1232 = vmatpush.bf16.msra.mxu0 %v961
    %1233 = vmatpush.bf16.msra.mxu0 %v958
    %1234 = vmatpush.bf16.msra.mxu0 %v955
    %1235 = vmatpush.bf16.msra.mxu0 %v952
    %1236 = vmatpush.bf16.msra.mxu0 %v949
    %1237 = vmatpush.bf16.msra.mxu0 %v946
    %1238 = vmatmul.bf16.gmra.mxu0 %v1203
    %v1239 = vpop.f32.mrf.mxu0
    %v1240 = vadd.f32 %v370, %v1239
    %v1241 = vpop.f32.mrf.mxu0
    %1242 = vdwg.mxu0
    %v1243 = vadd.f32 %v1214, %v1089
    %v1244 = vxor.u32 %v1243, 2147483648
    %v1245 = vmul.f32 %v1244, 1.442695
    %v1246 = vpow.pop %v1245
    %v1247 = vadd.f32 %v1246, 1.0
    %v1248 = vrcp.pop %v1247
    %v1249 = vmul.f32 %v1247, %v1248
    %v1250 = vsub.f32 1.0, %v1249
    %v1251 = vmul.f32 %v1248, %v1250
    %v1252 = vadd.f32 %v1248, %v1251
    %vm1253 = vweird.f32 %v1247
    %vm1254 = vweird.f32 %v1248
    %vm1255 = vmor %vm1253, %vm1254
    %v1256 = vsel %vm1255, %v1248, %v1252
    %v1257 = vand.u32 2147483647, %v1247
    %vm1258 = vcmp.eq.f32.partialorder %v1257, 8.507059e+37
    %v1259 = vand.u32 %v1247, 2147483648
    %v1260 = vor.u32 1.1754944e-38, %v1259
    %v1261 = vsel %vm1258, %v1260, %v1256
    %v1262 = vmul.f32 1.0, %v1261
    %v1263 = vmul.f32 %v1262, %v1115
    %v1264 = vadd.f32 %v1240, %v1263
    %v1265 = vtanh.pop %v1264
    %v1266 = vadd.f32 %v1227, %v1102
    %v1267 = vxor.u32 %v1266, 2147483648
    %v1268 = vmul.f32 %v1267, 1.442695
    %v1269 = vpow.pop %v1268
    %v1270 = vadd.f32 %v1269, 1.0
    %v1271 = vrcp.pop %v1270
    %v1272 = vmul.f32 %v1270, %v1271
    %v1273 = vsub.f32 1.0, %v1272
    %v1274 = vmul.f32 %v1271, %v1273
    %v1275 = vadd.f32 %v1271, %v1274
    %vm1276 = vweird.f32 %v1270
    %vm1277 = vweird.f32 %v1271
    %vm1278 = vmor %vm1276, %vm1277
    %v1279 = vsel %vm1278, %v1271, %v1275
    %v1280 = vand.u32 2147483647, %v1270
    %vm1281 = vcmp.eq.f32.partialorder %v1280, 8.507059e+37
    %v1282 = vand.u32 %v1270, 2147483648
    %v1283 = vor.u32 1.1754944e-38, %v1282
    %v1284 = vsel %vm1281, %v1283, %v1279
    %v1285 = vmul.f32 1.0, %v1284
    %v1286 = vsub.f32 %v1076, %v1265
    %v1287 = vmul.f32 %v1285, %v1286
    %v1288 = vadd.f32 %v1265, %v1287
    %v1289 = vpack.c.bf16 %v1288, %v1288
    %s1290 = scalar_lea.vmem [#allocation2], 4
    %1291 = vst [vmem:[%s1290] sm:$0xf] %v1289
    %1292 = vmatpush.bf16.msra.mxu0 %v583
    %1293 = vmatpush.bf16.msra.mxu0 %v580
    %1294 = vmatpush.bf16.msra.mxu0 %v577
    %1295 = vmatpush.bf16.msra.mxu0 %v574
    %1296 = vmatpush.bf16.msra.mxu0 %v571
    %1297 = vmatpush.bf16.msra.mxu0 %v568
    %1298 = vmatpush.bf16.msra.mxu0 %v565
    %1299 = vmatpush.bf16.msra.mxu0 %v562
    %1300 = vmatmul.bf16.gmra.mxu0 %v1289
    %v1301 = vpop.f32.mrf.mxu0
    %v1302 = vadd.f32 %v376, %v1301
    %v1303 = vpop.f32.mrf.mxu0
    %1304 = vdwg.mxu0
    %1305 = vmatpush.bf16.msra.mxu0 %v584
    %1306 = vmatpush.bf16.msra.mxu0 %v581
    %1307 = vmatpush.bf16.msra.mxu0 %v578
    %1308 = vmatpush.bf16.msra.mxu0 %v575
    %1309 = vmatpush.bf16.msra.mxu0 %v572
    %1310 = vmatpush.bf16.msra.mxu0 %v569
    %1311 = vmatpush.bf16.msra.mxu0 %v566
    %1312 = vmatpush.bf16.msra.mxu0 %v563
    %1313 = vmatmul.bf16.gmra.mxu0 %v1289
    %v1314 = vpop.f32.mrf.mxu0
    %v1315 = vadd.f32 %v377, %v1314
    %v1316 = vpop.f32.mrf.mxu0
    %1317 = vdwg.mxu0
    %1318 = vmatpush.bf16.msra.mxu0 %v585
    %1319 = vmatpush.bf16.msra.mxu0 %v582
    %1320 = vmatpush.bf16.msra.mxu0 %v579
    %1321 = vmatpush.bf16.msra.mxu0 %v576
    %1322 = vmatpush.bf16.msra.mxu0 %v573
    %1323 = vmatpush.bf16.msra.mxu0 %v570
    %1324 = vmatpush.bf16.msra.mxu0 %v567
    %1325 = vmatpush.bf16.msra.mxu0 %v564
    %1326 = vmatmul.bf16.gmra.mxu0 %v1289
    %v1327 = vpop.f32.mrf.mxu0
    %v1328 = vadd.f32 %v378, %v1327
    %v1329 = vpop.f32.mrf.mxu0
    %1330 = vdwg.mxu0
    %1331 = vmatpush.bf16.msra.mxu0 %v751
    %1332 = vmatpush.bf16.msra.mxu0 %v748
    %1333 = vmatpush.bf16.msra.mxu0 %v745
    %1334 = vmatpush.bf16.msra.mxu0 %v742
    %1335 = vmatpush.bf16.msra.mxu0 %v739
    %1336 = vmatpush.bf16.msra.mxu0 %v736
    %1337 = vmatpush.bf16.msra.mxu0 %v733
    %1338 = vmatpush.bf16.msra.mxu0 %v730
    %1339 = vmatmul.bf16.gmra.mxu0 %v1203
    %v1340 = vpop.f32.mrf.mxu0
    %v1341 = vadd.f32 %v360, %v1340
    %v1342 = vpop.f32.mrf.mxu0
    %1343 = vdwg.mxu0
    %1344 = vmatpush.bf16.msra.mxu0 %v752
    %1345 = vmatpush.bf16.msra.mxu0 %v749
    %1346 = vmatpush.bf16.msra.mxu0 %v746
    %1347 = vmatpush.bf16.msra.mxu0 %v743
    %1348 = vmatpush.bf16.msra.mxu0 %v740
    %1349 = vmatpush.bf16.msra.mxu0 %v737
    %1350 = vmatpush.bf16.msra.mxu0 %v734
    %1351 = vmatpush.bf16.msra.mxu0 %v731
    %1352 = vmatmul.bf16.gmra.mxu0 %v1203
    %v1353 = vpop.f32.mrf.mxu0
    %v1354 = vadd.f32 %v361, %v1353
    %v1355 = vpop.f32.mrf.mxu0
    %1356 = vdwg.mxu0
    %1357 = vmatpush.bf16.msra.mxu0 %v753
    %1358 = vmatpush.bf16.msra.mxu0 %v750
    %1359 = vmatpush.bf16.msra.mxu0 %v747
    %1360 = vmatpush.bf16.msra.mxu0 %v744
    %1361 = vmatpush.bf16.msra.mxu0 %v741
    %1362 = vmatpush.bf16.msra.mxu0 %v738
    %1363 = vmatpush.bf16.msra.mxu0 %v735
    %1364 = vmatpush.bf16.msra.mxu0 %v732
    %1365 = vmatmul.bf16.gmra.mxu0 %v1203
    %v1366 = vpop.f32.mrf.mxu0
    %v1367 = vadd.f32 %v362, %v1366
    %v1368 = vpop.f32.mrf.mxu0
    %1369 = vdwg.mxu0
    %v1370 = vadd.f32 %v286, %v1341
    %v1371 = vxor.u32 %v1370, 2147483648
    %v1372 = vmul.f32 %v1371, 1.442695
    %v1373 = vpow.pop %v1372
    %v1374 = vadd.f32 %v1373, 1.0
    %v1375 = vrcp.pop %v1374
    %v1376 = vmul.f32 %v1374, %v1375
    %v1377 = vsub.f32 1.0, %v1376
    %v1378 = vmul.f32 %v1375, %v1377
    %v1379 = vadd.f32 %v1375, %v1378
    %vm1380 = vweird.f32 %v1374
    %vm1381 = vweird.f32 %v1375
    %vm1382 = vmor %vm1380, %vm1381
    %v1383 = vsel %vm1382, %v1375, %v1379
    %v1384 = vand.u32 2147483647, %v1374
    %vm1385 = vcmp.eq.f32.partialorder %v1384, 8.507059e+37
    %v1386 = vand.u32 %v1374, 2147483648
    %v1387 = vor.u32 1.1754944e-38, %v1386
    %v1388 = vsel %vm1385, %v1387, %v1383
    %v1389 = vmul.f32 1.0, %v1388
    %v1390 = vmul.f32 %v1389, %v1367
    %v1391 = vadd.f32 %v344, %v1390
    %v1392 = vtanh.pop %v1391
    %v1393 = vadd.f32 %v315, %v1354
    %v1394 = vxor.u32 %v1393, 2147483648
    %v1395 = vmul.f32 %v1394, 1.442695
    %v1396 = vpow.pop %v1395
    %v1397 = vadd.f32 %v1396, 1.0
    %v1398 = vrcp.pop %v1397
    %v1399 = vmul.f32 %v1397, %v1398
    %v1400 = vsub.f32 1.0, %v1399
    %v1401 = vmul.f32 %v1398, %v1400
    %v1402 = vadd.f32 %v1398, %v1401
    %vm1403 = vweird.f32 %v1397
    %vm1404 = vweird.f32 %v1398
    %vm1405 = vmor %vm1403, %vm1404
    %v1406 = vsel %vm1405, %v1398, %v1402
    %v1407 = vand.u32 2147483647, %v1397
    %vm1408 = vcmp.eq.f32.partialorder %v1407, 8.507059e+37
    %v1409 = vand.u32 %v1397, 2147483648
    %v1410 = vor.u32 1.1754944e-38, %v1409
    %v1411 = vsel %vm1408, %v1410, %v1406
    %v1412 = vmul.f32 1.0, %v1411
    %v1413 = vsub.f32 %v1202, %v1392
    %v1414 = vmul.f32 %v1412, %v1413
    %v1415 = vadd.f32 %v1392, %v1414
    %v1416 = vpack.c.bf16 %v1415, %v1415
    %1417 = vmatpush.bf16.msra.mxu0 %v965
    %1418 = vmatpush.bf16.msra.mxu0 %v962
    %1419 = vmatpush.bf16.msra.mxu0 %v959
    %1420 = vmatpush.bf16.msra.mxu0 %v956
    %1421 = vmatpush.bf16.msra.mxu0 %v953
    %1422 = vmatpush.bf16.msra.mxu0 %v950
    %1423 = vmatpush.bf16.msra.mxu0 %v947
    %1424 = vmatpush.bf16.msra.mxu0 %v944
    %1425 = vmatmul.bf16.gmra.mxu0 %v1416
    %v1426 = vpop.f32.mrf.mxu0
    %v1427 = vadd.f32 %v368, %v1426
    %v1428 = vpop.f32.mrf.mxu0
    %1429 = vdwg.mxu0
    %1430 = vmatpush.bf16.msra.mxu0 %v966
    %1431 = vmatpush.bf16.msra.mxu0 %v963
    %1432 = vmatpush.bf16.msra.mxu0 %v960
    %1433 = vmatpush.bf16.msra.mxu0 %v957
    %1434 = vmatpush.bf16.msra.mxu0 %v954
    %1435 = vmatpush.bf16.msra.mxu0 %v951
    %1436 = vmatpush.bf16.msra.mxu0 %v948
    %1437 = vmatpush.bf16.msra.mxu0 %v945
    %1438 = vmatmul.bf16.gmra.mxu0 %v1416
    %v1439 = vpop.f32.mrf.mxu0
    %v1440 = vadd.f32 %v369, %v1439
    %v1441 = vpop.f32.mrf.mxu0
    %1442 = vdwg.mxu0
    %1443 = vmatpush.bf16.msra.mxu0 %v967
    %1444 = vmatpush.bf16.msra.mxu0 %v964
    %1445 = vmatpush.bf16.msra.mxu0 %v961
    %1446 = vmatpush.bf16.msra.mxu0 %v958
    %1447 = vmatpush.bf16.msra.mxu0 %v955
    %1448 = vmatpush.bf16.msra.mxu0 %v952
    %1449 = vmatpush.bf16.msra.mxu0 %v949
    %1450 = vmatpush.bf16.msra.mxu0 %v946
    %1451 = vmatmul.bf16.gmra.mxu0 %v1416
    %v1452 = vpop.f32.mrf.mxu0
    %v1453 = vadd.f32 %v370, %v1452
    %v1454 = vpop.f32.mrf.mxu0
    %1455 = vdwg.mxu0
    %v1456 = vadd.f32 %v1427, %v1302
    %v1457 = vxor.u32 %v1456, 2147483648
    %v1458 = vmul.f32 %v1457, 1.442695
    %v1459 = vpow.pop %v1458
    %v1460 = vadd.f32 %v1459, 1.0
    %v1461 = vrcp.pop %v1460
    %v1462 = vmul.f32 %v1460, %v1461
    %v1463 = vsub.f32 1.0, %v1462
    %v1464 = vmul.f32 %v1461, %v1463
    %v1465 = vadd.f32 %v1461, %v1464
    %vm1466 = vweird.f32 %v1460
    %vm1467 = vweird.f32 %v1461
    %vm1468 = vmor %vm1466, %vm1467
    %v1469 = vsel %vm1468, %v1461, %v1465
    %v1470 = vand.u32 2147483647, %v1460
    %vm1471 = vcmp.eq.f32.partialorder %v1470, 8.507059e+37
    %v1472 = vand.u32 %v1460, 2147483648
    %v1473 = vor.u32 1.1754944e-38, %v1472
    %v1474 = vsel %vm1471, %v1473, %v1469
    %v1475 = vmul.f32 1.0, %v1474
    %v1476 = vmul.f32 %v1475, %v1328
    %v1477 = vadd.f32 %v1453, %v1476
    %v1478 = vtanh.pop %v1477
    %v1479 = vadd.f32 %v1440, %v1315
    %v1480 = vxor.u32 %v1479, 2147483648
    %v1481 = vmul.f32 %v1480, 1.442695
    %v1482 = vpow.pop %v1481
    %v1483 = vadd.f32 %v1482, 1.0
    %v1484 = vrcp.pop %v1483
    %v1485 = vmul.f32 %v1483, %v1484
    %v1486 = vsub.f32 1.0, %v1485
    %v1487 = vmul.f32 %v1484, %v1486
    %v1488 = vadd.f32 %v1484, %v1487
    %vm1489 = vweird.f32 %v1483
    %vm1490 = vweird.f32 %v1484
    %vm1491 = vmor %vm1489, %vm1490
    %v1492 = vsel %vm1491, %v1484, %v1488
    %v1493 = vand.u32 2147483647, %v1483
    %vm1494 = vcmp.eq.f32.partialorder %v1493, 8.507059e+37
    %v1495 = vand.u32 %v1483, 2147483648
    %v1496 = vor.u32 1.1754944e-38, %v1495
    %v1497 = vsel %vm1494, %v1496, %v1492
    %v1498 = vmul.f32 1.0, %v1497
    %v1499 = vsub.f32 %v1288, %v1478
    %v1500 = vmul.f32 %v1498, %v1499
    %v1501 = vadd.f32 %v1478, %v1500
    %v1502 = vpack.c.bf16 %v1501, %v1501
    %s1503 = scalar_lea.vmem [#allocation2], 8
    %1504 = vst [vmem:[%s1503] sm:$0xf] %v1502
    %1505 = vmatpush.bf16.msra.mxu0 %v583
    %1506 = vmatpush.bf16.msra.mxu0 %v580
    %1507 = vmatpush.bf16.msra.mxu0 %v577
    %1508 = vmatpush.bf16.msra.mxu0 %v574
    %1509 = vmatpush.bf16.msra.mxu0 %v571
    %1510 = vmatpush.bf16.msra.mxu0 %v568
    %1511 = vmatpush.bf16.msra.mxu0 %v565
    %1512 = vmatpush.bf16.msra.mxu0 %v562
    %1513 = vmatmul.bf16.gmra.mxu0 %v1502
    %v1514 = vpop.f32.mrf.mxu0
    %v1515 = vadd.f32 %v376, %v1514
    %v1516 = vpop.f32.mrf.mxu0
    %1517 = vdwg.mxu0
    %1518 = vmatpush.bf16.msra.mxu0 %v584
    %1519 = vmatpush.bf16.msra.mxu0 %v581
    %1520 = vmatpush.bf16.msra.mxu0 %v578
    %1521 = vmatpush.bf16.msra.mxu0 %v575
    %1522 = vmatpush.bf16.msra.mxu0 %v572
    %1523 = vmatpush.bf16.msra.mxu0 %v569
    %1524 = vmatpush.bf16.msra.mxu0 %v566
    %1525 = vmatpush.bf16.msra.mxu0 %v563
    %1526 = vmatmul.bf16.gmra.mxu0 %v1502
    %v1527 = vpop.f32.mrf.mxu0
    %v1528 = vadd.f32 %v377, %v1527
    %v1529 = vpop.f32.mrf.mxu0
    %1530 = vdwg.mxu0
    %1531 = vmatpush.bf16.msra.mxu0 %v585
    %1532 = vmatpush.bf16.msra.mxu0 %v582
    %1533 = vmatpush.bf16.msra.mxu0 %v579
    %1534 = vmatpush.bf16.msra.mxu0 %v576
    %1535 = vmatpush.bf16.msra.mxu0 %v573
    %1536 = vmatpush.bf16.msra.mxu0 %v570
    %1537 = vmatpush.bf16.msra.mxu0 %v567
    %1538 = vmatpush.bf16.msra.mxu0 %v564
    %1539 = vmatmul.bf16.gmra.mxu0 %v1502
    %v1540 = vpop.f32.mrf.mxu0
    %v1541 = vadd.f32 %v378, %v1540
    %v1542 = vpop.f32.mrf.mxu0
    %1543 = vdwg.mxu0
    %1544 = vmatpush.bf16.msra.mxu0 %v751
    %1545 = vmatpush.bf16.msra.mxu0 %v748
    %1546 = vmatpush.bf16.msra.mxu0 %v745
    %1547 = vmatpush.bf16.msra.mxu0 %v742
    %1548 = vmatpush.bf16.msra.mxu0 %v739
    %1549 = vmatpush.bf16.msra.mxu0 %v736
    %1550 = vmatpush.bf16.msra.mxu0 %v733
    %1551 = vmatpush.bf16.msra.mxu0 %v730
    %1552 = vmatmul.bf16.gmra.mxu0 %v1416
    %v1553 = vpop.f32.mrf.mxu0
    %v1554 = vadd.f32 %v360, %v1553
    %v1555 = vpop.f32.mrf.mxu0
    %1556 = vdwg.mxu0
    %1557 = vmatpush.bf16.msra.mxu0 %v752
    %1558 = vmatpush.bf16.msra.mxu0 %v749
    %1559 = vmatpush.bf16.msra.mxu0 %v746
    %1560 = vmatpush.bf16.msra.mxu0 %v743
    %1561 = vmatpush.bf16.msra.mxu0 %v740
    %1562 = vmatpush.bf16.msra.mxu0 %v737
    %1563 = vmatpush.bf16.msra.mxu0 %v734
    %1564 = vmatpush.bf16.msra.mxu0 %v731
    %1565 = vmatmul.bf16.gmra.mxu0 %v1416
    %v1566 = vpop.f32.mrf.mxu0
    %v1567 = vadd.f32 %v361, %v1566
    %v1568 = vpop.f32.mrf.mxu0
    %1569 = vdwg.mxu0
    %1570 = vmatpush.bf16.msra.mxu0 %v753
    %1571 = vmatpush.bf16.msra.mxu0 %v750
    %1572 = vmatpush.bf16.msra.mxu0 %v747
    %1573 = vmatpush.bf16.msra.mxu0 %v744
    %1574 = vmatpush.bf16.msra.mxu0 %v741
    %1575 = vmatpush.bf16.msra.mxu0 %v738
    %1576 = vmatpush.bf16.msra.mxu0 %v735
    %1577 = vmatpush.bf16.msra.mxu0 %v732
    %1578 = vmatmul.bf16.gmra.mxu0 %v1416
    %v1579 = vpop.f32.mrf.mxu0
    %v1580 = vadd.f32 %v362, %v1579
    %v1581 = vpop.f32.mrf.mxu0
    %1582 = vdwg.mxu0
    %v1583 = vadd.f32 %v288, %v1554
    %v1584 = vxor.u32 %v1583, 2147483648
    %v1585 = vmul.f32 %v1584, 1.442695
    %v1586 = vpow.pop %v1585
    %v1587 = vadd.f32 %v1586, 1.0
    %v1588 = vrcp.pop %v1587
    %v1589 = vmul.f32 %v1587, %v1588
    %v1590 = vsub.f32 1.0, %v1589
    %v1591 = vmul.f32 %v1588, %v1590
    %v1592 = vadd.f32 %v1588, %v1591
    %vm1593 = vweird.f32 %v1587
    %vm1594 = vweird.f32 %v1588
    %vm1595 = vmor %vm1593, %vm1594
    %v1596 = vsel %vm1595, %v1588, %v1592
    %v1597 = vand.u32 2147483647, %v1587
    %vm1598 = vcmp.eq.f32.partialorder %v1597, 8.507059e+37
    %v1599 = vand.u32 %v1587, 2147483648
    %v1600 = vor.u32 1.1754944e-38, %v1599
    %v1601 = vsel %vm1598, %v1600, %v1596
    %v1602 = vmul.f32 1.0, %v1601
    %v1603 = vmul.f32 %v1602, %v1580
    %v1604 = vadd.f32 %v346, %v1603
    %v1605 = vtanh.pop %v1604
    %v1606 = vadd.f32 %v317, %v1567
    %v1607 = vxor.u32 %v1606, 2147483648
    %v1608 = vmul.f32 %v1607, 1.442695
    %v1609 = vpow.pop %v1608
    %v1610 = vadd.f32 %v1609, 1.0
    %v1611 = vrcp.pop %v1610
    %v1612 = vmul.f32 %v1610, %v1611
    %v1613 = vsub.f32 1.0, %v1612
    %v1614 = vmul.f32 %v1611, %v1613
    %v1615 = vadd.f32 %v1611, %v1614
    %vm1616 = vweird.f32 %v1610
    %vm1617 = vweird.f32 %v1611
    %vm1618 = vmor %vm1616, %vm1617
    %v1619 = vsel %vm1618, %v1611, %v1615
    %v1620 = vand.u32 2147483647, %v1610
    %vm1621 = vcmp.eq.f32.partialorder %v1620, 8.507059e+37
    %v1622 = vand.u32 %v1610, 2147483648
    %v1623 = vor.u32 1.1754944e-38, %v1622
    %v1624 = vsel %vm1621, %v1623, %v1619
    %v1625 = vmul.f32 1.0, %v1624
    %v1626 = vsub.f32 %v1415, %v1605
    %v1627 = vmul.f32 %v1625, %v1626
    %v1628 = vadd.f32 %v1605, %v1627
    %v1629 = vpack.c.bf16 %v1628, %v1628
    %1630 = vmatpush.bf16.msra.mxu0 %v965
    %1631 = vmatpush.bf16.msra.mxu0 %v962
    %1632 = vmatpush.bf16.msra.mxu0 %v959
    %1633 = vmatpush.bf16.msra.mxu0 %v956
    %1634 = vmatpush.bf16.msra.mxu0 %v953
    %1635 = vmatpush.bf16.msra.mxu0 %v950
    %1636 = vmatpush.bf16.msra.mxu0 %v947
    %1637 = vmatpush.bf16.msra.mxu0 %v944
    %1638 = vmatmul.bf16.gmra.mxu0 %v1629
    %v1639 = vpop.f32.mrf.mxu0
    %v1640 = vadd.f32 %v368, %v1639
    %v1641 = vpop.f32.mrf.mxu0
    %1642 = vdwg.mxu0
    %1643 = vmatpush.bf16.msra.mxu0 %v966
    %1644 = vmatpush.bf16.msra.mxu0 %v963
    %1645 = vmatpush.bf16.msra.mxu0 %v960
    %1646 = vmatpush.bf16.msra.mxu0 %v957
    %1647 = vmatpush.bf16.msra.mxu0 %v954
    %1648 = vmatpush.bf16.msra.mxu0 %v951
    %1649 = vmatpush.bf16.msra.mxu0 %v948
    %1650 = vmatpush.bf16.msra.mxu0 %v945
    %1651 = vmatmul.bf16.gmra.mxu0 %v1629
    %v1652 = vpop.f32.mrf.mxu0
    %v1653 = vadd.f32 %v369, %v1652
    %v1654 = vpop.f32.mrf.mxu0
    %1655 = vdwg.mxu0
    %1656 = vmatpush.bf16.msra.mxu0 %v967
    %1657 = vmatpush.bf16.msra.mxu0 %v964
    %1658 = vmatpush.bf16.msra.mxu0 %v961
    %1659 = vmatpush.bf16.msra.mxu0 %v958
    %1660 = vmatpush.bf16.msra.mxu0 %v955
    %1661 = vmatpush.bf16.msra.mxu0 %v952
    %1662 = vmatpush.bf16.msra.mxu0 %v949
    %1663 = vmatpush.bf16.msra.mxu0 %v946
    %1664 = vmatmul.bf16.gmra.mxu0 %v1629
    %v1665 = vpop.f32.mrf.mxu0
    %v1666 = vadd.f32 %v370, %v1665
    %v1667 = vpop.f32.mrf.mxu0
    %1668 = vdwg.mxu0
    %v1669 = vadd.f32 %v1640, %v1515
    %v1670 = vxor.u32 %v1669, 2147483648
    %v1671 = vmul.f32 %v1670, 1.442695
    %v1672 = vpow.pop %v1671
    %v1673 = vadd.f32 %v1672, 1.0
    %v1674 = vrcp.pop %v1673
    %v1675 = vmul.f32 %v1673, %v1674
    %v1676 = vsub.f32 1.0, %v1675
    %v1677 = vmul.f32 %v1674, %v1676
    %v1678 = vadd.f32 %v1674, %v1677
    %vm1679 = vweird.f32 %v1673
    %vm1680 = vweird.f32 %v1674
    %vm1681 = vmor %vm1679, %vm1680
    %v1682 = vsel %vm1681, %v1674, %v1678
    %v1683 = vand.u32 2147483647, %v1673
    %vm1684 = vcmp.eq.f32.partialorder %v1683, 8.507059e+37
    %v1685 = vand.u32 %v1673, 2147483648
    %v1686 = vor.u32 1.1754944e-38, %v1685
    %v1687 = vsel %vm1684, %v1686, %v1682
    %v1688 = vmul.f32 1.0, %v1687
    %v1689 = vmul.f32 %v1688, %v1541
    %v1690 = vadd.f32 %v1666, %v1689
    %v1691 = vtanh.pop %v1690
    %v1692 = vadd.f32 %v1653, %v1528
    %v1693 = vxor.u32 %v1692, 2147483648
    %v1694 = vmul.f32 %v1693, 1.442695
    %v1695 = vpow.pop %v1694
    %v1696 = vadd.f32 %v1695, 1.0
    %v1697 = vrcp.pop %v1696
    %v1698 = vmul.f32 %v1696, %v1697
    %v1699 = vsub.f32 1.0, %v1698
    %v1700 = vmul.f32 %v1697, %v1699
    %v1701 = vadd.f32 %v1697, %v1700
    %vm1702 = vweird.f32 %v1696
    %vm1703 = vweird.f32 %v1697
    %vm1704 = vmor %vm1702, %vm1703
    %v1705 = vsel %vm1704, %v1697, %v1701
    %v1706 = vand.u32 2147483647, %v1696
    %vm1707 = vcmp.eq.f32.partialorder %v1706, 8.507059e+37
    %v1708 = vand.u32 %v1696, 2147483648
    %v1709 = vor.u32 1.1754944e-38, %v1708
    %v1710 = vsel %vm1707, %v1709, %v1705
    %v1711 = vmul.f32 1.0, %v1710
    %v1712 = vsub.f32 %v1501, %v1691
    %v1713 = vmul.f32 %v1711, %v1712
    %v1714 = vadd.f32 %v1691, %v1713
    %v1715 = vpack.c.bf16 %v1714, %v1714
    %s1716 = scalar_lea.vmem [#allocation2], 12
    %1717 = vst [vmem:[%s1716] sm:$0xf] %v1715
    %1718 = vmatpush.bf16.msra.mxu0 %v583
    %1719 = vmatpush.bf16.msra.mxu0 %v580
    %1720 = vmatpush.bf16.msra.mxu0 %v577
    %1721 = vmatpush.bf16.msra.mxu0 %v574
    %1722 = vmatpush.bf16.msra.mxu0 %v571
    %1723 = vmatpush.bf16.msra.mxu0 %v568
    %1724 = vmatpush.bf16.msra.mxu0 %v565
    %1725 = vmatpush.bf16.msra.mxu0 %v562
    %1726 = vmatmul.bf16.gmra.mxu0 %v1715
    %v1727 = vpop.f32.mrf.mxu0
    %v1728 = vadd.f32 %v376, %v1727
    %v1729 = vpop.f32.mrf.mxu0
    %1730 = vdwg.mxu0
    %1731 = vmatpush.bf16.msra.mxu0 %v584
    %1732 = vmatpush.bf16.msra.mxu0 %v581
    %1733 = vmatpush.bf16.msra.mxu0 %v578
    %1734 = vmatpush.bf16.msra.mxu0 %v575
    %1735 = vmatpush.bf16.msra.mxu0 %v572
    %1736 = vmatpush.bf16.msra.mxu0 %v569
    %1737 = vmatpush.bf16.msra.mxu0 %v566
    %1738 = vmatpush.bf16.msra.mxu0 %v563
    %1739 = vmatmul.bf16.gmra.mxu0 %v1715
    %v1740 = vpop.f32.mrf.mxu0
    %v1741 = vadd.f32 %v377, %v1740
    %v1742 = vpop.f32.mrf.mxu0
    %1743 = vdwg.mxu0
    %1744 = vmatpush.bf16.msra.mxu0 %v585
    %1745 = vmatpush.bf16.msra.mxu0 %v582
    %1746 = vmatpush.bf16.msra.mxu0 %v579
    %1747 = vmatpush.bf16.msra.mxu0 %v576
    %1748 = vmatpush.bf16.msra.mxu0 %v573
    %1749 = vmatpush.bf16.msra.mxu0 %v570
    %1750 = vmatpush.bf16.msra.mxu0 %v567
    %1751 = vmatpush.bf16.msra.mxu0 %v564
    %1752 = vmatmul.bf16.gmra.mxu0 %v1715
    %v1753 = vpop.f32.mrf.mxu0
    %v1754 = vadd.f32 %v378, %v1753
    %v1755 = vpop.f32.mrf.mxu0
    %1756 = vdwg.mxu0
    %1757 = vmatpush.bf16.msra.mxu0 %v751
    %1758 = vmatpush.bf16.msra.mxu0 %v748
    %1759 = vmatpush.bf16.msra.mxu0 %v745
    %1760 = vmatpush.bf16.msra.mxu0 %v742
    %1761 = vmatpush.bf16.msra.mxu0 %v739
    %1762 = vmatpush.bf16.msra.mxu0 %v736
    %1763 = vmatpush.bf16.msra.mxu0 %v733
    %1764 = vmatpush.bf16.msra.mxu0 %v730
    %1765 = vmatmul.bf16.gmra.mxu0 %v1629
    %v1766 = vpop.f32.mrf.mxu0
    %v1767 = vadd.f32 %v360, %v1766
    %v1768 = vpop.f32.mrf.mxu0
    %1769 = vdwg.mxu0
    %1770 = vmatpush.bf16.msra.mxu0 %v752
    %1771 = vmatpush.bf16.msra.mxu0 %v749
    %1772 = vmatpush.bf16.msra.mxu0 %v746
    %1773 = vmatpush.bf16.msra.mxu0 %v743
    %1774 = vmatpush.bf16.msra.mxu0 %v740
    %1775 = vmatpush.bf16.msra.mxu0 %v737
    %1776 = vmatpush.bf16.msra.mxu0 %v734
    %1777 = vmatpush.bf16.msra.mxu0 %v731
    %1778 = vmatmul.bf16.gmra.mxu0 %v1629
    %v1779 = vpop.f32.mrf.mxu0
    %v1780 = vadd.f32 %v361, %v1779
    %v1781 = vpop.f32.mrf.mxu0
    %1782 = vdwg.mxu0
    %1783 = vmatpush.bf16.msra.mxu0 %v753
    %1784 = vmatpush.bf16.msra.mxu0 %v750
    %1785 = vmatpush.bf16.msra.mxu0 %v747
    %1786 = vmatpush.bf16.msra.mxu0 %v744
    %1787 = vmatpush.bf16.msra.mxu0 %v741
    %1788 = vmatpush.bf16.msra.mxu0 %v738
    %1789 = vmatpush.bf16.msra.mxu0 %v735
    %1790 = vmatpush.bf16.msra.mxu0 %v732
    %1791 = vmatmul.bf16.gmra.mxu0 %v1629
    %v1792 = vpop.f32.mrf.mxu0
    %v1793 = vadd.f32 %v362, %v1792
    %v1794 = vpop.f32.mrf.mxu0
    %1795 = vdwg.mxu0
    %v1796 = vadd.f32 %v291, %v1767
    %v1797 = vxor.u32 %v1796, 2147483648
    %v1798 = vmul.f32 %v1797, 1.442695
    %v1799 = vpow.pop %v1798
    %v1800 = vadd.f32 %v1799, 1.0
    %v1801 = vrcp.pop %v1800
    %v1802 = vmul.f32 %v1800, %v1801
    %v1803 = vsub.f32 1.0, %v1802
    %v1804 = vmul.f32 %v1801, %v1803
    %v1805 = vadd.f32 %v1801, %v1804
    %vm1806 = vweird.f32 %v1800
    %vm1807 = vweird.f32 %v1801
    %vm1808 = vmor %vm1806, %vm1807
    %v1809 = vsel %vm1808, %v1801, %v1805
    %v1810 = vand.u32 2147483647, %v1800
    %vm1811 = vcmp.eq.f32.partialorder %v1810, 8.507059e+37
    %v1812 = vand.u32 %v1800, 2147483648
    %v1813 = vor.u32 1.1754944e-38, %v1812
    %v1814 = vsel %vm1811, %v1813, %v1809
    %v1815 = vmul.f32 1.0, %v1814
    %v1816 = vmul.f32 %v1815, %v1793
    %v1817 = vadd.f32 %v349, %v1816
    %v1818 = vtanh.pop %v1817
    %v1819 = vadd.f32 %v320, %v1780
    %v1820 = vxor.u32 %v1819, 2147483648
    %v1821 = vmul.f32 %v1820, 1.442695
    %v1822 = vpow.pop %v1821
    %v1823 = vadd.f32 %v1822, 1.0
    %v1824 = vrcp.pop %v1823
    %v1825 = vmul.f32 %v1823, %v1824
    %v1826 = vsub.f32 1.0, %v1825
    %v1827 = vmul.f32 %v1824, %v1826
    %v1828 = vadd.f32 %v1824, %v1827
    %vm1829 = vweird.f32 %v1823
    %vm1830 = vweird.f32 %v1824
    %vm1831 = vmor %vm1829, %vm1830
    %v1832 = vsel %vm1831, %v1824, %v1828
    %v1833 = vand.u32 2147483647, %v1823
    %vm1834 = vcmp.eq.f32.partialorder %v1833, 8.507059e+37
    %v1835 = vand.u32 %v1823, 2147483648
    %v1836 = vor.u32 1.1754944e-38, %v1835
    %v1837 = vsel %vm1834, %v1836, %v1832
    %v1838 = vmul.f32 1.0, %v1837
    %v1839 = vsub.f32 %v1628, %v1818
    %v1840 = vmul.f32 %v1838, %v1839
    %v1841 = vadd.f32 %v1818, %v1840
    %v1842 = vpack.c.bf16 %v1841, %v1841
    %1843 = vmatpush.bf16.msra.mxu0 %v965
    %1844 = vmatpush.bf16.msra.mxu0 %v962
    %1845 = vmatpush.bf16.msra.mxu0 %v959
    %1846 = vmatpush.bf16.msra.mxu0 %v956
    %1847 = vmatpush.bf16.msra.mxu0 %v953
    %1848 = vmatpush.bf16.msra.mxu0 %v950
    %1849 = vmatpush.bf16.msra.mxu0 %v947
    %1850 = vmatpush.bf16.msra.mxu0 %v944
    %1851 = vmatmul.bf16.gmra.mxu0 %v1842
    %v1852 = vpop.f32.mrf.mxu0
    %v1853 = vadd.f32 %v368, %v1852
    %v1854 = vpop.f32.mrf.mxu0
    %1855 = vdwg.mxu0
    %1856 = vmatpush.bf16.msra.mxu0 %v966
    %1857 = vmatpush.bf16.msra.mxu0 %v963
    %1858 = vmatpush.bf16.msra.mxu0 %v960
    %1859 = vmatpush.bf16.msra.mxu0 %v957
    %1860 = vmatpush.bf16.msra.mxu0 %v954
    %1861 = vmatpush.bf16.msra.mxu0 %v951
    %1862 = vmatpush.bf16.msra.mxu0 %v948
    %1863 = vmatpush.bf16.msra.mxu0 %v945
    %1864 = vmatmul.bf16.gmra.mxu0 %v1842
    %v1865 = vpop.f32.mrf.mxu0
    %v1866 = vadd.f32 %v369, %v1865
    %v1867 = vpop.f32.mrf.mxu0
    %1868 = vdwg.mxu0
    %1869 = vmatpush.bf16.msra.mxu0 %v967
    %1870 = vmatpush.bf16.msra.mxu0 %v964
    %1871 = vmatpush.bf16.msra.mxu0 %v961
    %1872 = vmatpush.bf16.msra.mxu0 %v958
    %1873 = vmatpush.bf16.msra.mxu0 %v955
    %1874 = vmatpush.bf16.msra.mxu0 %v952
    %1875 = vmatpush.bf16.msra.mxu0 %v949
    %1876 = vmatpush.bf16.msra.mxu0 %v946
    %1877 = vmatmul.bf16.gmra.mxu0 %v1842
    %v1878 = vpop.f32.mrf.mxu0
    %v1879 = vadd.f32 %v370, %v1878
    %v1880 = vpop.f32.mrf.mxu0
    %1881 = vdwg.mxu0
    %v1882 = vadd.f32 %v1853, %v1728
    %v1883 = vxor.u32 %v1882, 2147483648
    %v1884 = vmul.f32 %v1883, 1.442695
    %v1885 = vpow.pop %v1884
    %v1886 = vadd.f32 %v1885, 1.0
    %v1887 = vrcp.pop %v1886
    %v1888 = vmul.f32 %v1886, %v1887
    %v1889 = vsub.f32 1.0, %v1888
    %v1890 = vmul.f32 %v1887, %v1889
    %v1891 = vadd.f32 %v1887, %v1890
    %vm1892 = vweird.f32 %v1886
    %vm1893 = vweird.f32 %v1887
    %vm1894 = vmor %vm1892, %vm1893
    %v1895 = vsel %vm1894, %v1887, %v1891
    %v1896 = vand.u32 2147483647, %v1886
    %vm1897 = vcmp.eq.f32.partialorder %v1896, 8.507059e+37
    %v1898 = vand.u32 %v1886, 2147483648
    %v1899 = vor.u32 1.1754944e-38, %v1898
    %v1900 = vsel %vm1897, %v1899, %v1895
    %v1901 = vmul.f32 1.0, %v1900
    %v1902 = vmul.f32 %v1901, %v1754
    %v1903 = vadd.f32 %v1879, %v1902
    %v1904 = vtanh.pop %v1903
    %v1905 = vadd.f32 %v1866, %v1741
    %v1906 = vxor.u32 %v1905, 2147483648
    %v1907 = vmul.f32 %v1906, 1.442695
    %v1908 = vpow.pop %v1907
    %v1909 = vadd.f32 %v1908, 1.0
    %v1910 = vrcp.pop %v1909
    %v1911 = vmul.f32 %v1909, %v1910
    %v1912 = vsub.f32 1.0, %v1911
    %v1913 = vmul.f32 %v1910, %v1912
    %v1914 = vadd.f32 %v1910, %v1913
    %vm1915 = vweird.f32 %v1909
    %vm1916 = vweird.f32 %v1910
    %vm1917 = vmor %vm1915, %vm1916
    %v1918 = vsel %vm1917, %v1910, %v1914
    %v1919 = vand.u32 2147483647, %v1909
    %vm1920 = vcmp.eq.f32.partialorder %v1919, 8.507059e+37
    %v1921 = vand.u32 %v1909, 2147483648
    %v1922 = vor.u32 1.1754944e-38, %v1921
    %v1923 = vsel %vm1920, %v1922, %v1918
    %v1924 = vmul.f32 1.0, %v1923
    %v1925 = vsub.f32 %v1714, %v1904
    %v1926 = vmul.f32 %v1924, %v1925
    %v1927 = vadd.f32 %v1904, %v1926
    %v1928 = vpack.c.bf16 %v1927, %v1927
    %s1929 = scalar_lea.vmem [#allocation2], 16
    %1930 = vst [vmem:[%s1929] sm:$0xf] %v1928
    %1931 = vmatpush.bf16.msra.mxu0 %v583
    %1932 = vmatpush.bf16.msra.mxu0 %v580
    %1933 = vmatpush.bf16.msra.mxu0 %v577
    %1934 = vmatpush.bf16.msra.mxu0 %v574
    %1935 = vmatpush.bf16.msra.mxu0 %v571
    %1936 = vmatpush.bf16.msra.mxu0 %v568
    %1937 = vmatpush.bf16.msra.mxu0 %v565
    %1938 = vmatpush.bf16.msra.mxu0 %v562
    %1939 = vmatmul.bf16.gmra.mxu0 %v1928
    %v1940 = vpop.f32.mrf.mxu0
    %v1941 = vadd.f32 %v376, %v1940
    %v1942 = vpop.f32.mrf.mxu0
    %1943 = vdwg.mxu0
    %1944 = vmatpush.bf16.msra.mxu0 %v584
    %1945 = vmatpush.bf16.msra.mxu0 %v581
    %1946 = vmatpush.bf16.msra.mxu0 %v578
    %1947 = vmatpush.bf16.msra.mxu0 %v575
    %1948 = vmatpush.bf16.msra.mxu0 %v572
    %1949 = vmatpush.bf16.msra.mxu0 %v569
    %1950 = vmatpush.bf16.msra.mxu0 %v566
    %1951 = vmatpush.bf16.msra.mxu0 %v563
    %1952 = vmatmul.bf16.gmra.mxu0 %v1928
    %v1953 = vpop.f32.mrf.mxu0
    %v1954 = vadd.f32 %v377, %v1953
    %v1955 = vpop.f32.mrf.mxu0
    %1956 = vdwg.mxu0
    %1957 = vmatpush.bf16.msra.mxu0 %v585
    %1958 = vmatpush.bf16.msra.mxu0 %v582
    %1959 = vmatpush.bf16.msra.mxu0 %v579
    %1960 = vmatpush.bf16.msra.mxu0 %v576
    %1961 = vmatpush.bf16.msra.mxu0 %v573
    %1962 = vmatpush.bf16.msra.mxu0 %v570
    %1963 = vmatpush.bf16.msra.mxu0 %v567
    %1964 = vmatpush.bf16.msra.mxu0 %v564
    %1965 = vmatmul.bf16.gmra.mxu0 %v1928
    %v1966 = vpop.f32.mrf.mxu0
    %v1967 = vadd.f32 %v378, %v1966
    %v1968 = vpop.f32.mrf.mxu0
    %1969 = vdwg.mxu0
    %1970 = vmatpush.bf16.msra.mxu0 %v751
    %1971 = vmatpush.bf16.msra.mxu0 %v748
    %1972 = vmatpush.bf16.msra.mxu0 %v745
    %1973 = vmatpush.bf16.msra.mxu0 %v742
    %1974 = vmatpush.bf16.msra.mxu0 %v739
    %1975 = vmatpush.bf16.msra.mxu0 %v736
    %1976 = vmatpush.bf16.msra.mxu0 %v733
    %1977 = vmatpush.bf16.msra.mxu0 %v730
    %1978 = vmatmul.bf16.gmra.mxu0 %v1842
    %v1979 = vpop.f32.mrf.mxu0
    %v1980 = vadd.f32 %v360, %v1979
    %v1981 = vpop.f32.mrf.mxu0
    %1982 = vdwg.mxu0
    %1983 = vmatpush.bf16.msra.mxu0 %v752
    %1984 = vmatpush.bf16.msra.mxu0 %v749
    %1985 = vmatpush.bf16.msra.mxu0 %v746
    %1986 = vmatpush.bf16.msra.mxu0 %v743
    %1987 = vmatpush.bf16.msra.mxu0 %v740
    %1988 = vmatpush.bf16.msra.mxu0 %v737
    %1989 = vmatpush.bf16.msra.mxu0 %v734
    %1990 = vmatpush.bf16.msra.mxu0 %v731
    %1991 = vmatmul.bf16.gmra.mxu0 %v1842
    %v1992 = vpop.f32.mrf.mxu0
    %v1993 = vadd.f32 %v361, %v1992
    %v1994 = vpop.f32.mrf.mxu0
    %1995 = vdwg.mxu0
    %1996 = vmatpush.bf16.msra.mxu0 %v753
    %1997 = vmatpush.bf16.msra.mxu0 %v750
    %1998 = vmatpush.bf16.msra.mxu0 %v747
    %1999 = vmatpush.bf16.msra.mxu0 %v744
    %2000 = vmatpush.bf16.msra.mxu0 %v741
    %2001 = vmatpush.bf16.msra.mxu0 %v738
    %2002 = vmatpush.bf16.msra.mxu0 %v735
    %2003 = vmatpush.bf16.msra.mxu0 %v732
    %2004 = vmatmul.bf16.gmra.mxu0 %v1842
    %v2005 = vpop.f32.mrf.mxu0
    %v2006 = vadd.f32 %v362, %v2005
    %v2007 = vpop.f32.mrf.mxu0
    %2008 = vdwg.mxu0
    %v2009 = vadd.f32 %v293, %v1980
    %v2010 = vxor.u32 %v2009, 2147483648
    %v2011 = vmul.f32 %v2010, 1.442695
    %v2012 = vpow.pop %v2011
    %v2013 = vadd.f32 %v2012, 1.0
    %v2014 = vrcp.pop %v2013
    %v2015 = vmul.f32 %v2013, %v2014
    %v2016 = vsub.f32 1.0, %v2015
    %v2017 = vmul.f32 %v2014, %v2016
    %v2018 = vadd.f32 %v2014, %v2017
    %vm2019 = vweird.f32 %v2013
    %vm2020 = vweird.f32 %v2014
    %vm2021 = vmor %vm2019, %vm2020
    %v2022 = vsel %vm2021, %v2014, %v2018
    %v2023 = vand.u32 2147483647, %v2013
    %vm2024 = vcmp.eq.f32.partialorder %v2023, 8.507059e+37
    %v2025 = vand.u32 %v2013, 2147483648
    %v2026 = vor.u32 1.1754944e-38, %v2025
    %v2027 = vsel %vm2024, %v2026, %v2022
    %v2028 = vmul.f32 1.0, %v2027
    %v2029 = vmul.f32 %v2028, %v2006
    %v2030 = vadd.f32 %v351, %v2029
    %v2031 = vtanh.pop %v2030
    %v2032 = vadd.f32 %v322, %v1993
    %v2033 = vxor.u32 %v2032, 2147483648
    %v2034 = vmul.f32 %v2033, 1.442695
    %v2035 = vpow.pop %v2034
    %v2036 = vadd.f32 %v2035, 1.0
    %v2037 = vrcp.pop %v2036
    %v2038 = vmul.f32 %v2036, %v2037
    %v2039 = vsub.f32 1.0, %v2038
    %v2040 = vmul.f32 %v2037, %v2039
    %v2041 = vadd.f32 %v2037, %v2040
    %vm2042 = vweird.f32 %v2036
    %vm2043 = vweird.f32 %v2037
    %vm2044 = vmor %vm2042, %vm2043
    %v2045 = vsel %vm2044, %v2037, %v2041
    %v2046 = vand.u32 2147483647, %v2036
    %vm2047 = vcmp.eq.f32.partialorder %v2046, 8.507059e+37
    %v2048 = vand.u32 %v2036, 2147483648
    %v2049 = vor.u32 1.1754944e-38, %v2048
    %v2050 = vsel %vm2047, %v2049, %v2045
    %v2051 = vmul.f32 1.0, %v2050
    %v2052 = vsub.f32 %v1841, %v2031
    %v2053 = vmul.f32 %v2051, %v2052
    %v2054 = vadd.f32 %v2031, %v2053
    %v2055 = vpack.c.bf16 %v2054, %v2054
    %2056 = vmatpush.bf16.msra.mxu0 %v965
    %2057 = vmatpush.bf16.msra.mxu0 %v962
    %2058 = vmatpush.bf16.msra.mxu0 %v959
    %2059 = vmatpush.bf16.msra.mxu0 %v956
    %2060 = vmatpush.bf16.msra.mxu0 %v953
    %2061 = vmatpush.bf16.msra.mxu0 %v950
    %2062 = vmatpush.bf16.msra.mxu0 %v947
    %2063 = vmatpush.bf16.msra.mxu0 %v944
    %2064 = vmatmul.bf16.gmra.mxu0 %v2055
    %v2065 = vpop.f32.mrf.mxu0
    %v2066 = vadd.f32 %v368, %v2065
    %v2067 = vpop.f32.mrf.mxu0
    %2068 = vdwg.mxu0
    %2069 = vmatpush.bf16.msra.mxu0 %v966
    %2070 = vmatpush.bf16.msra.mxu0 %v963
    %2071 = vmatpush.bf16.msra.mxu0 %v960
    %2072 = vmatpush.bf16.msra.mxu0 %v957
    %2073 = vmatpush.bf16.msra.mxu0 %v954
    %2074 = vmatpush.bf16.msra.mxu0 %v951
    %2075 = vmatpush.bf16.msra.mxu0 %v948
    %2076 = vmatpush.bf16.msra.mxu0 %v945
    %2077 = vmatmul.bf16.gmra.mxu0 %v2055
    %v2078 = vpop.f32.mrf.mxu0
    %v2079 = vadd.f32 %v369, %v2078
    %v2080 = vpop.f32.mrf.mxu0
    %2081 = vdwg.mxu0
    %2082 = vmatpush.bf16.msra.mxu0 %v967
    %2083 = vmatpush.bf16.msra.mxu0 %v964
    %2084 = vmatpush.bf16.msra.mxu0 %v961
    %2085 = vmatpush.bf16.msra.mxu0 %v958
    %2086 = vmatpush.bf16.msra.mxu0 %v955
    %2087 = vmatpush.bf16.msra.mxu0 %v952
    %2088 = vmatpush.bf16.msra.mxu0 %v949
    %2089 = vmatpush.bf16.msra.mxu0 %v946
    %2090 = vmatmul.bf16.gmra.mxu0 %v2055
    %v2091 = vpop.f32.mrf.mxu0
    %v2092 = vadd.f32 %v370, %v2091
    %v2093 = vpop.f32.mrf.mxu0
    %2094 = vdwg.mxu0
    %v2095 = vadd.f32 %v2066, %v1941
    %v2096 = vxor.u32 %v2095, 2147483648
    %v2097 = vmul.f32 %v2096, 1.442695
    %v2098 = vpow.pop %v2097
    %v2099 = vadd.f32 %v2098, 1.0
    %v2100 = vrcp.pop %v2099
    %v2101 = vmul.f32 %v2099, %v2100
    %v2102 = vsub.f32 1.0, %v2101
    %v2103 = vmul.f32 %v2100, %v2102
    %v2104 = vadd.f32 %v2100, %v2103
    %vm2105 = vweird.f32 %v2099
    %vm2106 = vweird.f32 %v2100
    %vm2107 = vmor %vm2105, %vm2106
    %v2108 = vsel %vm2107, %v2100, %v2104
    %v2109 = vand.u32 2147483647, %v2099
    %vm2110 = vcmp.eq.f32.partialorder %v2109, 8.507059e+37
    %v2111 = vand.u32 %v2099, 2147483648
    %v2112 = vor.u32 1.1754944e-38, %v2111
    %v2113 = vsel %vm2110, %v2112, %v2108
    %v2114 = vmul.f32 1.0, %v2113
    %v2115 = vmul.f32 %v2114, %v1967
    %v2116 = vadd.f32 %v2092, %v2115
    %v2117 = vtanh.pop %v2116
    %v2118 = vadd.f32 %v2079, %v1954
    %v2119 = vxor.u32 %v2118, 2147483648
    %v2120 = vmul.f32 %v2119, 1.442695
    %v2121 = vpow.pop %v2120
    %v2122 = vadd.f32 %v2121, 1.0
    %v2123 = vrcp.pop %v2122
    %v2124 = vmul.f32 %v2122, %v2123
    %v2125 = vsub.f32 1.0, %v2124
    %v2126 = vmul.f32 %v2123, %v2125
    %v2127 = vadd.f32 %v2123, %v2126
    %vm2128 = vweird.f32 %v2122
    %vm2129 = vweird.f32 %v2123
    %vm2130 = vmor %vm2128, %vm2129
    %v2131 = vsel %vm2130, %v2123, %v2127
    %v2132 = vand.u32 2147483647, %v2122
    %vm2133 = vcmp.eq.f32.partialorder %v2132, 8.507059e+37
    %v2134 = vand.u32 %v2122, 2147483648
    %v2135 = vor.u32 1.1754944e-38, %v2134
    %v2136 = vsel %vm2133, %v2135, %v2131
    %v2137 = vmul.f32 1.0, %v2136
    %v2138 = vsub.f32 %v1927, %v2117
    %v2139 = vmul.f32 %v2137, %v2138
    %v2140 = vadd.f32 %v2117, %v2139
    %v2141 = vpack.c.bf16 %v2140, %v2140
    %s2142 = scalar_lea.vmem [#allocation2], 20
    %2143 = vst [vmem:[%s2142] sm:$0xf] %v2141
    %2144 = vmatpush.bf16.msra.mxu0 %v583
    %2145 = vmatpush.bf16.msra.mxu0 %v580
    %2146 = vmatpush.bf16.msra.mxu0 %v577
    %2147 = vmatpush.bf16.msra.mxu0 %v574
    %2148 = vmatpush.bf16.msra.mxu0 %v571
    %2149 = vmatpush.bf16.msra.mxu0 %v568
    %2150 = vmatpush.bf16.msra.mxu0 %v565
    %2151 = vmatpush.bf16.msra.mxu0 %v562
    %2152 = vmatmul.bf16.gmra.mxu0 %v2141
    %v2153 = vpop.f32.mrf.mxu0
    %v2154 = vadd.f32 %v376, %v2153
    %v2155 = vpop.f32.mrf.mxu0
    %2156 = vdwg.mxu0
    %2157 = vmatpush.bf16.msra.mxu0 %v584
    %2158 = vmatpush.bf16.msra.mxu0 %v581
    %2159 = vmatpush.bf16.msra.mxu0 %v578
    %2160 = vmatpush.bf16.msra.mxu0 %v575
    %2161 = vmatpush.bf16.msra.mxu0 %v572
    %2162 = vmatpush.bf16.msra.mxu0 %v569
    %2163 = vmatpush.bf16.msra.mxu0 %v566
    %2164 = vmatpush.bf16.msra.mxu0 %v563
    %2165 = vmatmul.bf16.gmra.mxu0 %v2141
    %v2166 = vpop.f32.mrf.mxu0
    %v2167 = vadd.f32 %v377, %v2166
    %v2168 = vpop.f32.mrf.mxu0
    %2169 = vdwg.mxu0
    %2170 = vmatpush.bf16.msra.mxu0 %v585
    %2171 = vmatpush.bf16.msra.mxu0 %v582
    %2172 = vmatpush.bf16.msra.mxu0 %v579
    %2173 = vmatpush.bf16.msra.mxu0 %v576
    %2174 = vmatpush.bf16.msra.mxu0 %v573
    %2175 = vmatpush.bf16.msra.mxu0 %v570
    %2176 = vmatpush.bf16.msra.mxu0 %v567
    %2177 = vmatpush.bf16.msra.mxu0 %v564
    %2178 = vmatmul.bf16.gmra.mxu0 %v2141
    %v2179 = vpop.f32.mrf.mxu0
    %v2180 = vadd.f32 %v378, %v2179
    %v2181 = vpop.f32.mrf.mxu0
    %2182 = vdwg.mxu0
    %2183 = vmatpush.bf16.msra.mxu0 %v751
    %2184 = vmatpush.bf16.msra.mxu0 %v748
    %2185 = vmatpush.bf16.msra.mxu0 %v745
    %2186 = vmatpush.bf16.msra.mxu0 %v742
    %2187 = vmatpush.bf16.msra.mxu0 %v739
    %2188 = vmatpush.bf16.msra.mxu0 %v736
    %2189 = vmatpush.bf16.msra.mxu0 %v733
    %2190 = vmatpush.bf16.msra.mxu0 %v730
    %2191 = vmatmul.bf16.gmra.mxu0 %v2055
    %v2192 = vpop.f32.mrf.mxu0
    %v2193 = vadd.f32 %v360, %v2192
    %v2194 = vpop.f32.mrf.mxu0
    %2195 = vdwg.mxu0
    %2196 = vmatpush.bf16.msra.mxu0 %v752
    %2197 = vmatpush.bf16.msra.mxu0 %v749
    %2198 = vmatpush.bf16.msra.mxu0 %v746
    %2199 = vmatpush.bf16.msra.mxu0 %v743
    %2200 = vmatpush.bf16.msra.mxu0 %v740
    %2201 = vmatpush.bf16.msra.mxu0 %v737
    %2202 = vmatpush.bf16.msra.mxu0 %v734
    %2203 = vmatpush.bf16.msra.mxu0 %v731
    %2204 = vmatmul.bf16.gmra.mxu0 %v2055
    %v2205 = vpop.f32.mrf.mxu0
    %v2206 = vadd.f32 %v361, %v2205
    %v2207 = vpop.f32.mrf.mxu0
    %2208 = vdwg.mxu0
    %2209 = vmatpush.bf16.msra.mxu0 %v753
    %2210 = vmatpush.bf16.msra.mxu0 %v750
    %2211 = vmatpush.bf16.msra.mxu0 %v747
    %2212 = vmatpush.bf16.msra.mxu0 %v744
    %2213 = vmatpush.bf16.msra.mxu0 %v741
    %2214 = vmatpush.bf16.msra.mxu0 %v738
    %2215 = vmatpush.bf16.msra.mxu0 %v735
    %2216 = vmatpush.bf16.msra.mxu0 %v732
    %2217 = vmatmul.bf16.gmra.mxu0 %v2055
    %v2218 = vpop.f32.mrf.mxu0
    %v2219 = vadd.f32 %v362, %v2218
    %v2220 = vpop.f32.mrf.mxu0
    %2221 = vdwg.mxu0
    %v2222 = vadd.f32 %v296, %v2193
    %v2223 = vxor.u32 %v2222, 2147483648
    %v2224 = vmul.f32 %v2223, 1.442695
    %v2225 = vpow.pop %v2224
    %v2226 = vadd.f32 %v2225, 1.0
    %v2227 = vrcp.pop %v2226
    %v2228 = vmul.f32 %v2226, %v2227
    %v2229 = vsub.f32 1.0, %v2228
    %v2230 = vmul.f32 %v2227, %v2229
    %v2231 = vadd.f32 %v2227, %v2230
    %vm2232 = vweird.f32 %v2226
    %vm2233 = vweird.f32 %v2227
    %vm2234 = vmor %vm2232, %vm2233
    %v2235 = vsel %vm2234, %v2227, %v2231
    %v2236 = vand.u32 2147483647, %v2226
    %vm2237 = vcmp.eq.f32.partialorder %v2236, 8.507059e+37
    %v2238 = vand.u32 %v2226, 2147483648
    %v2239 = vor.u32 1.1754944e-38, %v2238
    %v2240 = vsel %vm2237, %v2239, %v2235
    %v2241 = vmul.f32 1.0, %v2240
    %v2242 = vmul.f32 %v2241, %v2219
    %v2243 = vadd.f32 %v354, %v2242
    %v2244 = vtanh.pop %v2243
    %v2245 = vadd.f32 %v325, %v2206
    %v2246 = vxor.u32 %v2245, 2147483648
    %v2247 = vmul.f32 %v2246, 1.442695
    %v2248 = vpow.pop %v2247
    %v2249 = vadd.f32 %v2248, 1.0
    %v2250 = vrcp.pop %v2249
    %v2251 = vmul.f32 %v2249, %v2250
    %v2252 = vsub.f32 1.0, %v2251
    %v2253 = vmul.f32 %v2250, %v2252
    %v2254 = vadd.f32 %v2250, %v2253
    %vm2255 = vweird.f32 %v2249
    %vm2256 = vweird.f32 %v2250
    %vm2257 = vmor %vm2255, %vm2256
    %v2258 = vsel %vm2257, %v2250, %v2254
    %v2259 = vand.u32 2147483647, %v2249
    %vm2260 = vcmp.eq.f32.partialorder %v2259, 8.507059e+37
    %v2261 = vand.u32 %v2249, 2147483648
    %v2262 = vor.u32 1.1754944e-38, %v2261
    %v2263 = vsel %vm2260, %v2262, %v2258
    %v2264 = vmul.f32 1.0, %v2263
    %v2265 = vsub.f32 %v2054, %v2244
    %v2266 = vmul.f32 %v2264, %v2265
    %v2267 = vadd.f32 %v2244, %v2266
    %v2268 = vpack.c.bf16 %v2267, %v2267
    %2269 = vmatpush.bf16.msra.mxu0 %v965
    %2270 = vmatpush.bf16.msra.mxu0 %v962
    %2271 = vmatpush.bf16.msra.mxu0 %v959
    %2272 = vmatpush.bf16.msra.mxu0 %v956
    %2273 = vmatpush.bf16.msra.mxu0 %v953
    %2274 = vmatpush.bf16.msra.mxu0 %v950
    %2275 = vmatpush.bf16.msra.mxu0 %v947
    %2276 = vmatpush.bf16.msra.mxu0 %v944
    %2277 = vmatmul.bf16.gmra.mxu0 %v2268
    %v2278 = vpop.f32.mrf.mxu0
    %v2279 = vadd.f32 %v368, %v2278
    %v2280 = vpop.f32.mrf.mxu0
    %2281 = vdwg.mxu0
    %2282 = vmatpush.bf16.msra.mxu0 %v966
    %2283 = vmatpush.bf16.msra.mxu0 %v963
    %2284 = vmatpush.bf16.msra.mxu0 %v960
    %2285 = vmatpush.bf16.msra.mxu0 %v957
    %2286 = vmatpush.bf16.msra.mxu0 %v954
    %2287 = vmatpush.bf16.msra.mxu0 %v951
    %2288 = vmatpush.bf16.msra.mxu0 %v948
    %2289 = vmatpush.bf16.msra.mxu0 %v945
    %2290 = vmatmul.bf16.gmra.mxu0 %v2268
    %v2291 = vpop.f32.mrf.mxu0
    %v2292 = vadd.f32 %v369, %v2291
    %v2293 = vpop.f32.mrf.mxu0
    %2294 = vdwg.mxu0
    %2295 = vmatpush.bf16.msra.mxu0 %v967
    %2296 = vmatpush.bf16.msra.mxu0 %v964
    %2297 = vmatpush.bf16.msra.mxu0 %v961
    %2298 = vmatpush.bf16.msra.mxu0 %v958
    %2299 = vmatpush.bf16.msra.mxu0 %v955
    %2300 = vmatpush.bf16.msra.mxu0 %v952
    %2301 = vmatpush.bf16.msra.mxu0 %v949
    %2302 = vmatpush.bf16.msra.mxu0 %v946
    %2303 = vmatmul.bf16.gmra.mxu0 %v2268
    %v2304 = vpop.f32.mrf.mxu0
    %v2305 = vadd.f32 %v370, %v2304
    %v2306 = vpop.f32.mrf.mxu0
    %2307 = vdwg.mxu0
    %v2308 = vadd.f32 %v2279, %v2154
    %v2309 = vxor.u32 %v2308, 2147483648
    %v2310 = vmul.f32 %v2309, 1.442695
    %v2311 = vpow.pop %v2310
    %v2312 = vadd.f32 %v2311, 1.0
    %v2313 = vrcp.pop %v2312
    %v2314 = vmul.f32 %v2312, %v2313
    %v2315 = vsub.f32 1.0, %v2314
    %v2316 = vmul.f32 %v2313, %v2315
    %v2317 = vadd.f32 %v2313, %v2316
    %vm2318 = vweird.f32 %v2312
    %vm2319 = vweird.f32 %v2313
    %vm2320 = vmor %vm2318, %vm2319
    %v2321 = vsel %vm2320, %v2313, %v2317
    %v2322 = vand.u32 2147483647, %v2312
    %vm2323 = vcmp.eq.f32.partialorder %v2322, 8.507059e+37
    %v2324 = vand.u32 %v2312, 2147483648
    %v2325 = vor.u32 1.1754944e-38, %v2324
    %v2326 = vsel %vm2323, %v2325, %v2321
    %v2327 = vmul.f32 1.0, %v2326
    %v2328 = vmul.f32 %v2327, %v2180
    %v2329 = vadd.f32 %v2305, %v2328
    %v2330 = vtanh.pop %v2329
    %v2331 = vadd.f32 %v2292, %v2167
    %v2332 = vxor.u32 %v2331, 2147483648
    %v2333 = vmul.f32 %v2332, 1.442695
    %v2334 = vpow.pop %v2333
    %v2335 = vadd.f32 %v2334, 1.0
    %v2336 = vrcp.pop %v2335
    %v2337 = vmul.f32 %v2335, %v2336
    %v2338 = vsub.f32 1.0, %v2337
    %v2339 = vmul.f32 %v2336, %v2338
    %v2340 = vadd.f32 %v2336, %v2339
    %vm2341 = vweird.f32 %v2335
    %vm2342 = vweird.f32 %v2336
    %vm2343 = vmor %vm2341, %vm2342
    %v2344 = vsel %vm2343, %v2336, %v2340
    %v2345 = vand.u32 2147483647, %v2335
    %vm2346 = vcmp.eq.f32.partialorder %v2345, 8.507059e+37
    %v2347 = vand.u32 %v2335, 2147483648
    %v2348 = vor.u32 1.1754944e-38, %v2347
    %v2349 = vsel %vm2346, %v2348, %v2344
    %v2350 = vmul.f32 1.0, %v2349
    %v2351 = vsub.f32 %v2140, %v2330
    %v2352 = vmul.f32 %v2350, %v2351
    %v2353 = vadd.f32 %v2330, %v2352
    %v2354 = vpack.c.bf16 %v2353, %v2353
    %s2355 = scalar_lea.vmem [#allocation2], 24
    %2356 = vst [vmem:[%s2355] sm:$0xf] %v2354
    %2357 = vmatpush.bf16.msra.mxu0 %v583
    %2358 = vmatpush.bf16.msra.mxu0 %v580
    %2359 = vmatpush.bf16.msra.mxu0 %v577
    %2360 = vmatpush.bf16.msra.mxu0 %v574
    %2361 = vmatpush.bf16.msra.mxu0 %v571
    %2362 = vmatpush.bf16.msra.mxu0 %v568
    %2363 = vmatpush.bf16.msra.mxu0 %v565
    %2364 = vmatpush.bf16.msra.mxu0 %v562
    %2365 = vmatmul.bf16.gmra.mxu0 %v2354
    %v2366 = vpop.f32.mrf.mxu0
    %v2367 = vadd.f32 %v376, %v2366
    %v2368 = vpop.f32.mrf.mxu0
    %2369 = vdwg.mxu0
    %2370 = vmatpush.bf16.msra.mxu0 %v584
    %2371 = vmatpush.bf16.msra.mxu0 %v581
    %2372 = vmatpush.bf16.msra.mxu0 %v578
    %2373 = vmatpush.bf16.msra.mxu0 %v575
    %2374 = vmatpush.bf16.msra.mxu0 %v572
    %2375 = vmatpush.bf16.msra.mxu0 %v569
    %2376 = vmatpush.bf16.msra.mxu0 %v566
    %2377 = vmatpush.bf16.msra.mxu0 %v563
    %2378 = vmatmul.bf16.gmra.mxu0 %v2354
    %v2379 = vpop.f32.mrf.mxu0
    %v2380 = vadd.f32 %v377, %v2379
    %v2381 = vpop.f32.mrf.mxu0
    %2382 = vdwg.mxu0
    %2383 = vmatpush.bf16.msra.mxu0 %v585
    %2384 = vmatpush.bf16.msra.mxu0 %v582
    %2385 = vmatpush.bf16.msra.mxu0 %v579
    %2386 = vmatpush.bf16.msra.mxu0 %v576
    %2387 = vmatpush.bf16.msra.mxu0 %v573
    %2388 = vmatpush.bf16.msra.mxu0 %v570
    %2389 = vmatpush.bf16.msra.mxu0 %v567
    %2390 = vmatpush.bf16.msra.mxu0 %v564
    %2391 = vmatmul.bf16.gmra.mxu0 %v2354
    %v2392 = vpop.f32.mrf.mxu0
    %v2393 = vadd.f32 %v378, %v2392
    %v2394 = vpop.f32.mrf.mxu0
    %2395 = vdwg.mxu0
    %2396 = vmatpush.bf16.msra.mxu0 %v751
    %2397 = vmatpush.bf16.msra.mxu0 %v748
    %2398 = vmatpush.bf16.msra.mxu0 %v745
    %2399 = vmatpush.bf16.msra.mxu0 %v742
    %2400 = vmatpush.bf16.msra.mxu0 %v739
    %2401 = vmatpush.bf16.msra.mxu0 %v736
    %2402 = vmatpush.bf16.msra.mxu0 %v733
    %2403 = vmatpush.bf16.msra.mxu0 %v730
    %2404 = vmatmul.bf16.gmra.mxu0 %v2268
    %v2405 = vpop.f32.mrf.mxu0
    %v2406 = vadd.f32 %v360, %v2405
    %v2407 = vpop.f32.mrf.mxu0
    %2408 = vdwg.mxu0
    %2409 = vmatpush.bf16.msra.mxu0 %v752
    %2410 = vmatpush.bf16.msra.mxu0 %v749
    %2411 = vmatpush.bf16.msra.mxu0 %v746
    %2412 = vmatpush.bf16.msra.mxu0 %v743
    %2413 = vmatpush.bf16.msra.mxu0 %v740
    %2414 = vmatpush.bf16.msra.mxu0 %v737
    %2415 = vmatpush.bf16.msra.mxu0 %v734
    %2416 = vmatpush.bf16.msra.mxu0 %v731
    %2417 = vmatmul.bf16.gmra.mxu0 %v2268
    %v2418 = vpop.f32.mrf.mxu0
    %v2419 = vadd.f32 %v361, %v2418
    %v2420 = vpop.f32.mrf.mxu0
    %2421 = vdwg.mxu0
    %2422 = vmatpush.bf16.msra.mxu0 %v753
    %2423 = vmatpush.bf16.msra.mxu0 %v750
    %2424 = vmatpush.bf16.msra.mxu0 %v747
    %2425 = vmatpush.bf16.msra.mxu0 %v744
    %2426 = vmatpush.bf16.msra.mxu0 %v741
    %2427 = vmatpush.bf16.msra.mxu0 %v738
    %2428 = vmatpush.bf16.msra.mxu0 %v735
    %2429 = vmatpush.bf16.msra.mxu0 %v732
    %2430 = vmatmul.bf16.gmra.mxu0 %v2268
    %v2431 = vpop.f32.mrf.mxu0
    %v2432 = vadd.f32 %v362, %v2431
    %v2433 = vpop.f32.mrf.mxu0
    %2434 = vdwg.mxu0
    %v2435 = vadd.f32 %v298, %v2406
    %v2436 = vxor.u32 %v2435, 2147483648
    %v2437 = vmul.f32 %v2436, 1.442695
    %v2438 = vpow.pop %v2437
    %v2439 = vadd.f32 %v2438, 1.0
    %v2440 = vrcp.pop %v2439
    %v2441 = vmul.f32 %v2439, %v2440
    %v2442 = vsub.f32 1.0, %v2441
    %v2443 = vmul.f32 %v2440, %v2442
    %v2444 = vadd.f32 %v2440, %v2443
    %vm2445 = vweird.f32 %v2439
    %vm2446 = vweird.f32 %v2440
    %vm2447 = vmor %vm2445, %vm2446
    %v2448 = vsel %vm2447, %v2440, %v2444
    %v2449 = vand.u32 2147483647, %v2439
    %vm2450 = vcmp.eq.f32.partialorder %v2449, 8.507059e+37
    %v2451 = vand.u32 %v2439, 2147483648
    %v2452 = vor.u32 1.1754944e-38, %v2451
    %v2453 = vsel %vm2450, %v2452, %v2448
    %v2454 = vmul.f32 1.0, %v2453
    %v2455 = vmul.f32 %v2454, %v2432
    %v2456 = vadd.f32 %v356, %v2455
    %v2457 = vtanh.pop %v2456
    %v2458 = vadd.f32 %v327, %v2419
    %v2459 = vxor.u32 %v2458, 2147483648
    %v2460 = vmul.f32 %v2459, 1.442695
    %v2461 = vpow.pop %v2460
    %v2462 = vadd.f32 %v2461, 1.0
    %v2463 = vrcp.pop %v2462
    %v2464 = vmul.f32 %v2462, %v2463
    %v2465 = vsub.f32 1.0, %v2464
    %v2466 = vmul.f32 %v2463, %v2465
    %v2467 = vadd.f32 %v2463, %v2466
    %vm2468 = vweird.f32 %v2462
    %vm2469 = vweird.f32 %v2463
    %vm2470 = vmor %vm2468, %vm2469
    %v2471 = vsel %vm2470, %v2463, %v2467
    %v2472 = vand.u32 2147483647, %v2462
    %vm2473 = vcmp.eq.f32.partialorder %v2472, 8.507059e+37
    %v2474 = vand.u32 %v2462, 2147483648
    %v2475 = vor.u32 1.1754944e-38, %v2474
    %v2476 = vsel %vm2473, %v2475, %v2471
    %v2477 = vmul.f32 1.0, %v2476
    %v2478 = vsub.f32 %v2267, %v2457
    %v2479 = vmul.f32 %v2477, %v2478
    %v2480 = vadd.f32 %v2457, %v2479
    %v2481 = vpack.c.bf16 %v2480, %v2480
    %2482 = vmatpush.bf16.msra.mxu0 %v965
    %2483 = vmatpush.bf16.msra.mxu0 %v962
    %2484 = vmatpush.bf16.msra.mxu0 %v959
    %2485 = vmatpush.bf16.msra.mxu0 %v956
    %2486 = vmatpush.bf16.msra.mxu0 %v953
    %2487 = vmatpush.bf16.msra.mxu0 %v950
    %2488 = vmatpush.bf16.msra.mxu0 %v947
    %2489 = vmatpush.bf16.msra.mxu0 %v944
    %2490 = vmatmul.bf16.gmra.mxu0 %v2481
    %v2491 = vpop.f32.mrf.mxu0
    %v2492 = vadd.f32 %v368, %v2491
    %v2493 = vpop.f32.mrf.mxu0
    %2494 = vdwg.mxu0
    %2495 = vmatpush.bf16.msra.mxu0 %v966
    %2496 = vmatpush.bf16.msra.mxu0 %v963
    %2497 = vmatpush.bf16.msra.mxu0 %v960
    %2498 = vmatpush.bf16.msra.mxu0 %v957
    %2499 = vmatpush.bf16.msra.mxu0 %v954
    %2500 = vmatpush.bf16.msra.mxu0 %v951
    %2501 = vmatpush.bf16.msra.mxu0 %v948
    %2502 = vmatpush.bf16.msra.mxu0 %v945
    %2503 = vmatmul.bf16.gmra.mxu0 %v2481
    %v2504 = vpop.f32.mrf.mxu0
    %v2505 = vadd.f32 %v369, %v2504
    %v2506 = vpop.f32.mrf.mxu0
    %2507 = vdwg.mxu0
    %2508 = vmatpush.bf16.msra.mxu0 %v967
    %2509 = vmatpush.bf16.msra.mxu0 %v964
    %2510 = vmatpush.bf16.msra.mxu0 %v961
    %2511 = vmatpush.bf16.msra.mxu0 %v958
    %2512 = vmatpush.bf16.msra.mxu0 %v955
    %2513 = vmatpush.bf16.msra.mxu0 %v952
    %2514 = vmatpush.bf16.msra.mxu0 %v949
    %2515 = vmatpush.bf16.msra.mxu0 %v946
    %2516 = vmatmul.bf16.gmra.mxu0 %v2481
    %v2517 = vpop.f32.mrf.mxu0
    %v2518 = vadd.f32 %v370, %v2517
    %v2519 = vpop.f32.mrf.mxu0
    %2520 = vdwg.mxu0
    %v2521 = vadd.f32 %v2492, %v2367
    %v2522 = vxor.u32 %v2521, 2147483648
    %v2523 = vmul.f32 %v2522, 1.442695
    %v2524 = vpow.pop %v2523
    %v2525 = vadd.f32 %v2524, 1.0
    %v2526 = vrcp.pop %v2525
    %v2527 = vmul.f32 %v2525, %v2526
    %v2528 = vsub.f32 1.0, %v2527
    %v2529 = vmul.f32 %v2526, %v2528
    %v2530 = vadd.f32 %v2526, %v2529
    %vm2531 = vweird.f32 %v2525
    %vm2532 = vweird.f32 %v2526
    %vm2533 = vmor %vm2531, %vm2532
    %v2534 = vsel %vm2533, %v2526, %v2530
    %v2535 = vand.u32 2147483647, %v2525
    %vm2536 = vcmp.eq.f32.partialorder %v2535, 8.507059e+37
    %v2537 = vand.u32 %v2525, 2147483648
    %v2538 = vor.u32 1.1754944e-38, %v2537
    %v2539 = vsel %vm2536, %v2538, %v2534
    %v2540 = vmul.f32 1.0, %v2539
    %v2541 = vmul.f32 %v2540, %v2393
    %v2542 = vadd.f32 %v2518, %v2541
    %v2543 = vtanh.pop %v2542
    %v2544 = vadd.f32 %v2505, %v2380
    %v2545 = vxor.u32 %v2544, 2147483648
    %v2546 = vmul.f32 %v2545, 1.442695
    %v2547 = vpow.pop %v2546
    %v2548 = vadd.f32 %v2547, 1.0
    %v2549 = vrcp.pop %v2548
    %v2550 = vmul.f32 %v2548, %v2549
    %v2551 = vsub.f32 1.0, %v2550
    %v2552 = vmul.f32 %v2549, %v2551
    %v2553 = vadd.f32 %v2549, %v2552
    %vm2554 = vweird.f32 %v2548
    %vm2555 = vweird.f32 %v2549
    %vm2556 = vmor %vm2554, %vm2555
    %v2557 = vsel %vm2556, %v2549, %v2553
    %v2558 = vand.u32 2147483647, %v2548
    %vm2559 = vcmp.eq.f32.partialorder %v2558, 8.507059e+37
    %v2560 = vand.u32 %v2548, 2147483648
    %v2561 = vor.u32 1.1754944e-38, %v2560
    %v2562 = vsel %vm2559, %v2561, %v2557
    %v2563 = vmul.f32 1.0, %v2562
    %v2564 = vsub.f32 %v2353, %v2543
    %v2565 = vmul.f32 %v2563, %v2564
    %v2566 = vadd.f32 %v2543, %v2565
    %v2567 = vpack.c.bf16 %v2566, %v2566
    %s2568 = scalar_lea.vmem [#allocation2], 28
    %2569 = vst [vmem:[%s2568] sm:$0xf] %v2567
    %2570 = vst [vmem:[#allocation10] sm:$0xff] %v2480
    %s2571 = scalar_lea.vmem [#allocation10], 8
    %2572 = vst [vmem:[%s2571] sm:$0xff] %v2566
    %v2573 = vld [vmem:[#allocation2] sm:$0xf]
    %v2574 = vld [vmem:[#allocation2 + $0x4] sm:$0xf]
    %v2575 = vld [vmem:[#allocation2 + $0x8] sm:$0xf]
    %v2576 = vld [vmem:[#allocation2 + $0xc] sm:$0xf]
    %v2577 = vld [vmem:[#allocation2 + $0x10] sm:$0xf]
    %v2578 = vld [vmem:[#allocation2 + $0x14] sm:$0xf]
    %v2579 = vld [vmem:[#allocation2 + $0x18] sm:$0xf]
    %v2580 = vld [vmem:[#allocation2 + $0x1c] sm:$0xf]
    %v2581 = vrot.slane %v2577, 4
    %vm2582 = vcmask 1047556
    %v2583 = vsel %vm2582, %v2581, %v2573
    %v2585 = vunpack.c.l.s4 1983009808
    %v2586 = vunpack.c.0.s8 %v2585
    %v2587 = vperm.slane %v2583, %v2586
    %v2588 = vrot.slane %v2579, 4
    %v2589 = vsel %vm2582, %v2588, %v2575
    %v2591 = vunpack.c.l.s4 1983009808
    %v2592 = vunpack.c.0.s8 %v2591
    %v2593 = vperm.slane %v2589, %v2592
    %v2594 = vrot.slane %v2593, 4
    %v2595 = vsel %vm2582, %v2594, %v2587
    %v2596 = vrot.slane %v2587, 4
    %v2597 = vsel %vm2582, %v2593, %v2596
    %v2599 = vunpack.c.l.s4 1934713408
    %v2600 = vunpack.c.0.s8 %v2599
    %v2601 = vperm.slane %v2595, %v2600
    %v2603 = vunpack.c.l.s4 1934713408
    %v2604 = vunpack.c.0.s8 %v2603
    %v2605 = vperm.slane %v2597, %v2604
    %v2606 = vrot.slane %v2601, 4
    %v2607 = vsel %vm2582, 0, %v2606
    %v2608 = vrot.slane %v2605, 4
    %v2609 = vsel %vm2582, 0, %v2608
    %v2610 = vrot.slane %v2578, 4
    %v2611 = vsel %vm2582, %v2610, %v2574
    %v2613 = vunpack.c.l.s4 1983009808
    %v2614 = vunpack.c.0.s8 %v2613
    %v2615 = vperm.slane %v2611, %v2614
    %v2616 = vrot.slane %v2580, 4
    %v2617 = vsel %vm2582, %v2616, %v2576
    %v2619 = vunpack.c.l.s4 1983009808
    %v2620 = vunpack.c.0.s8 %v2619
    %v2621 = vperm.slane %v2617, %v2620
    %v2622 = vrot.slane %v2621, 4
    %v2623 = vsel %vm2582, %v2622, %v2615
    %v2624 = vrot.slane %v2615, 4
    %v2625 = vsel %vm2582, %v2621, %v2624
    %v2627 = vunpack.c.l.s4 1934713408
    %v2628 = vunpack.c.0.s8 %v2627
    %v2629 = vperm.slane %v2623, %v2628
    %v2631 = vunpack.c.l.s4 1934713408
    %v2632 = vunpack.c.0.s8 %v2631
    %v2633 = vperm.slane %v2625, %v2632
    %v2634 = vrot.slane %v2629, 4
    %v2635 = vsel %vm2582, 0, %v2634
    %v2636 = vrot.slane %v2633, 4
    %v2637 = vsel %vm2582, 0, %v2636
    %v2640 = vpack.i.b16 %v2629, %v2601
    %v2641 = vshrl.u32 %v2601, 16
    %v2642 = vshrl.u32 %v2629, 16
    %v2643 = vpack.i.b16 %v2642, %v2641
    %v2646 = vpack.i.b16 %v2635, %v2607
    %v2647 = vshrl.u32 %v2607, 16
    %v2648 = vshrl.u32 %v2635, 16
    %v2649 = vpack.i.b16 %v2648, %v2647
    %v2652 = vpack.i.b16 %v2633, %v2605
    %v2653 = vshrl.u32 %v2605, 16
    %v2654 = vshrl.u32 %v2633, 16
    %v2655 = vpack.i.b16 %v2654, %v2653
    %v2658 = vpack.i.b16 %v2637, %v2609
    %v2659 = vshrl.u32 %v2609, 16
    %v2660 = vshrl.u32 %v2637, 16
    %v2661 = vpack.i.b16 %v2660, %v2659
    %v2662 = vld [vmem:[#allocation8] sm:$0xf]
    %v2663 = vld [vmem:[#allocation8 + $0x4] sm:$0xf]
    %v2664 = vld [vmem:[#allocation8 + $0x8] sm:$0xf]
    %v2665 = vld [vmem:[#allocation8 + $0xc] sm:$0xf]
    %v2666 = vld [vmem:[#allocation8 + $0x10] sm:$0xf]
    %v2667 = vld [vmem:[#allocation8 + $0x14] sm:$0xf]
    %v2668 = vld [vmem:[#allocation8 + $0x18] sm:$0xf]
    %v2669 = vld [vmem:[#allocation8 + $0x1c] sm:$0xf]
    %v2670 = vld [vmem:[#allocation8 + $0x20] sm:$0xf]
    %v2671 = vld [vmem:[#allocation8 + $0x24] sm:$0xf]
    %v2672 = vld [vmem:[#allocation8 + $0x28] sm:$0xf]
    %v2673 = vld [vmem:[#allocation8 + $0x2c] sm:$0xf]
    %v2674 = vld [vmem:[#allocation8 + $0x30] sm:$0xf]
    %v2675 = vld [vmem:[#allocation8 + $0x34] sm:$0xf]
    %v2676 = vld [vmem:[#allocation8 + $0x38] sm:$0xf]
    %v2677 = vld [vmem:[#allocation8 + $0x3c] sm:$0xf]
    %v2678 = vld [vmem:[%s11] sm:$0x1]
    %v2680 = vperm.slane %v2678, 0
    %v2682 = vunpack.c.l.b16 %v2640
    %v2683 = vunpack.c.l.b16 %v2643
    %v2684 = vunpack.c.l.b16 %v2646
    %v2685 = vunpack.c.l.b16 %v2649
    %v2686 = vunpack.c.l.b16 %v2652
    %v2687 = vunpack.c.l.b16 %v2655
    %v2688 = vunpack.c.l.b16 %v2658
    %v2689 = vunpack.c.l.b16 %v2661
    %v2690 = vpack.c.b16 %v2683, %v2682
    %v2691 = vpack.c.b16 %v2685, %v2684
    %v2692 = vpack.c.b16 %v2687, %v2686
    %v2693 = vpack.c.b16 %v2689, %v2688
    %v2714 = vunpack.c.l.b16 %v2662
    %v2715 = vunpack.c.l.b16 %v2663
    %v2716 = vunpack.c.l.b16 %v2664
    %v2717 = vunpack.c.l.b16 %v2665
    %v2718 = vunpack.c.l.b16 %v2666
    %v2719 = vunpack.c.l.b16 %v2667
    %v2720 = vunpack.c.l.b16 %v2668
    %v2721 = vunpack.c.l.b16 %v2669
    %v2722 = vunpack.c.l.b16 %v2670
    %v2723 = vunpack.c.l.b16 %v2671
    %v2724 = vunpack.c.l.b16 %v2672
    %v2725 = vunpack.c.l.b16 %v2673
    %v2726 = vunpack.c.l.b16 %v2674
    %v2727 = vunpack.c.l.b16 %v2675
    %v2728 = vunpack.c.l.b16 %v2676
    %v2729 = vunpack.c.l.b16 %v2677
    %v2730 = vpack.c.b16 %v2715, %v2714
    %v2731 = vpack.c.b16 %v2717, %v2716
    %v2732 = vpack.c.b16 %v2719, %v2718
    %v2733 = vpack.c.b16 %v2721, %v2720
    %v2734 = vpack.c.b16 %v2723, %v2722
    %v2735 = vpack.c.b16 %v2725, %v2724
    %v2736 = vpack.c.b16 %v2727, %v2726
    %v2737 = vpack.c.b16 %v2729, %v2728
    %2746 = vmatpush.bf16.msra.mxu0 %v2737
    %2747 = vmatpush.bf16.msra.mxu0 %v2736
    %2748 = vmatpush.bf16.msra.mxu0 %v2735
    %2749 = vmatpush.bf16.msra.mxu0 %v2734
    %2750 = vmatpush.bf16.msra.mxu0 %v2733
    %2751 = vmatpush.bf16.msra.mxu0 %v2732
    %2752 = vmatpush.bf16.msra.mxu0 %v2731
    %2753 = vmatpush.bf16.msra.mxu0 %v2730
    %2754 = vmatmul.bf16.gmra.mxu0 %v2690
    %v2755 = vpop.f32.mrf.mxu0
    %v2756 = vadd.f32 %v2680, %v2755
    %v2757 = vpop.f32.mrf.mxu0
    %v2758 = vadd.f32 %v2680, %v2757
    %2759 = vmatmul.bf16.gmra.mxu0 %v2691
    %v2760 = vpop.f32.mrf.mxu0
    %v2761 = vadd.f32 %v2680, %v2760
    %v2762 = vpop.f32.mrf.mxu0
    %v2763 = vadd.f32 %v2680, %v2762
    %2764 = vmatmul.bf16.gmra.mxu0 %v2692
    %v2765 = vpop.f32.mrf.mxu0
    %v2766 = vadd.f32 %v2680, %v2765
    %v2767 = vpop.f32.mrf.mxu0
    %v2768 = vadd.f32 %v2680, %v2767
    %2769 = vmatmul.bf16.gmra.mxu0 %v2693
    %v2770 = vpop.f32.mrf.mxu0
    %v2771 = vadd.f32 %v2680, %v2770
    %v2772 = vpop.f32.mrf.mxu0
    %v2773 = vadd.f32 %v2680, %v2772
    %2774 = vdwg.mxu0
    %2775 = vst [vmem:[#allocation9] sm:$0xff] %v2756
    %2776 = vst [vmem:[#allocation9 + $0x8] sm:$0xff] %v2758
    %2777 = vst [vmem:[#allocation9 + $0x10] sm:$0xff] %v2761
    %2778 = vst [vmem:[#allocation9 + $0x18] sm:$0xff] %v2763
    %2779 = vst [vmem:[#allocation9 + $0x20] sm:$0xff] %v2766
    %2780 = vst [vmem:[#allocation9 + $0x28] sm:$0xff] %v2768
    %2781 = vst [vmem:[#allocation9 + $0x30] sm:$0xff] %v2771
    %2782 = vst [vmem:[#allocation9 + $0x38] sm:$0xff] %v2773
    // Predicated region
    $region62: #{char_rnn_forward.1} parent=1 // pred_check
      _
    $region63: #{char_rnn_forward.1} parent=1 // pred_check_branch
      %2784 = sbr.rel (0) target = $region65
    $region64: #{char_rnn_forward.1} parent=1 // pred_region
      %2786 = vsyncadd [#allocation5], 0
      %s2787 = sshll.u32 [#allocation9], 4
      %s2788 = int_to_ptr.vmem [resolvable:$true] %s2787
      %s2789 = sshll.u32 %s12, 4
      %s2790 = int_to_ptr.hbm [resolvable:$true] %s2789
      %2795 = dma.vmem_to_hbm [thread:$0]  %s2788, 1024, %s2790, [#allocation5], 128, 128, 8
    $region65: #{char_rnn_forward.1} parent=1 // pred_fallthru
      _
    // Predicated region
    $region66: #{char_rnn_forward.1} parent=1 // pred_check
      _
    $region67: #{char_rnn_forward.1} parent=1 // pred_check_branch
      %2797 = sbr.rel (0) target = $region69
    $region68: #{char_rnn_forward.1} parent=1 // pred_region
      %2799 = vsyncadd [#allocation11], 0
      %s2800 = sshll.u32 [#allocation10], 4
      %s2801 = int_to_ptr.vmem [resolvable:$true] %s2800
      %s2802 = sshll.u32 %s13, 4
      %s2803 = int_to_ptr.hbm [resolvable:$true] %s2802
      %2808 = dma.vmem_to_hbm [thread:$0]  %s2801, 256, %s2803, [#allocation11], 128, 128, 8
    $region69: #{char_rnn_forward.1} parent=1 // pred_fallthru
      _
    // Predicated region
    $region70: #{char_rnn_forward.1} parent=1 // pred_check
      _
    $region71: #{char_rnn_forward.1} parent=1 // pred_check_branch
      %2810 = sbr.rel (0) target = $region73
    $region72: #{char_rnn_forward.1} parent=1 // pred_region
      %2812 = dma.done [#allocation5], 1024
    $region73: #{char_rnn_forward.1} parent=1 // pred_fallthru
      _
    // Predicated region
    $region74: #{char_rnn_forward.1} parent=1 // pred_check
      _
    $region75: #{char_rnn_forward.1} parent=1 // pred_check_branch
      %2814 = sbr.rel (0) target = $region77
    $region76: #{char_rnn_forward.1} parent=1 // pred_region
      %2816 = dma.done [#allocation11], 256
    $region77: #{char_rnn_forward.1} parent=1 // pred_fallthru
      _
    %2817 = vsyncpa [#allocation4], 1
    %2818 = vsyncpa [#allocation7], 1
    %2819 = vsyncpa [#allocation5], 1
    %2820 = vsyncpa [#allocation11], 1

</llo_original>
